<compile_context>
chip_gen: v6e
topology: v6e:2x2x1
jax: 0.10.0
libtpu: 0.0.40
codegen_flags: <defaults>
</compile_context>

<pallas_src>
import jax
import jax.numpy as jnp
import numpy as np
from jax.experimental import pallas as pl
from jax.experimental.pallas import tpu as pltpu


def _round_up(x, m):
    return (x + m - 1) // m * m


def _sigmoid(x):
    # One EUP transcendental (tanh) instead of exp + reciprocal.
    return 0.5 * (jnp.tanh(0.5 * x) + 1.0)


def _make_lstm_kernel(t_total, t_chunk, h_pad):
    n_chunks = -(-t_total // t_chunk)
    tail_len = t_total - (n_chunks - 1) * t_chunk          # in (0, t_chunk]

    def kernel(x_ref, wih_ref, whh_ref, b_ref, h_ref, c_scr):
        c_idx = pl.program_id(1)                           # time-chunk axis

        @pl.when(c_idx == 0)
        def _():
            h_ref[...] = jnp.zeros_like(h_ref)             # h state lives in the output ref
            c_scr[...] = jnp.zeros_like(c_scr)

        wih = wih_ref[...]                                 # (D,     4*h_pad) compute dtype
        whh = whh_ref[...]                                 # (h_pad, 4*h_pad) compute dtype
        bias = b_ref[...]                                  # (1,     4*h_pad) f32
        h = h_ref[...].astype(whh.dtype)                   # carry in compute dtype
        c = c_scr[...]                                     # f32

        # Scalar predicate, only consumed on statically-padded tail steps.
        not_last_chunk = c_idx != pl.num_programs(1) - 1

        for t in range(t_chunk):                           # fully static / unrolled
            # Per-step input projection: independent of the h/c carry, so it is
            # hidden under the serial recurrent-matmul -> EUP -> VPU chain.
            x_t = x_ref[t]                                 # (b_blk, D)
            gates = (jnp.dot(x_t, wih, preferred_element_type=jnp.float32)
                     + jnp.dot(h, whh, preferred_element_type=jnp.float32)
                     + bias)                               # (b_blk, 4*h_pad) f32
            # Gate slices are 128-lane aligned (h_pad is a multiple of 128).
            i_g = _sigmoid(gates[:, 0 * h_pad:1 * h_pad])
            f_g = _sigmoid(gates[:, 1 * h_pad:2 * h_pad])
            g_g = jnp.tanh(gates[:, 2 * h_pad:3 * h_pad])
            o_g = _sigmoid(gates[:, 3 * h_pad:4 * h_pad])
            c_new = f_g * c + i_g * g_g
            h_new = (o_g * jnp.tanh(c_new)).astype(whh.dtype)
            if t < tail_len:
                # Statically known to be a real timestep in every chunk.
                c = c_new
                h = h_new
            else:
                # Only padded tail steps of the last chunk need masking
                # (without it, gates = bias + h@Whh would corrupt h/c).
                c = jnp.where(not_last_chunk, c_new, c)
                h = jnp.where(not_last_chunk, h_new, h)

        h_ref[...] = h.astype(jnp.float32)
        c_scr[...] = c

    return kernel


def _pack_gates_t(w, in_dim_pad, h, h_pad):
    """PyTorch gate-stacked (4H, K) weight -> transposed (in_dim_pad, 4*h_pad);
    each gate block placed at [g*h_pad : g*h_pad + H]; pad entries are zero."""
    k = w.shape[1]
    out = jnp.zeros((in_dim_pad, 4 * h_pad), jnp.float32)
    for gate in range(4):
        blk = jnp.transpose(w[gate * h:(gate + 1) * h, :])        # (K, H)
        out = out.at[:k, gate * h_pad:gate * h_pad + h].set(blk)
    return out


def _pack_bias(b, h, h_pad):
    out = jnp.zeros((1, 4 * h_pad), jnp.float32)
    for gate in range(4):
        out = out.at[0, gate * h_pad:gate * h_pad + h].set(b[gate * h:(gate + 1) * h])
    return out


def rnn_model_forward(x, params, *, t_chunk=16, compute_dtype=jnp.bfloat16,
                      b_block=None):
    """x: (B, T, D) batch-first (PyTorch convention). Returns (B,)."""
    B, T, D = x.shape
    H = params["w_hh"].shape[1]
    H_pad = _round_up(H, 128)                      # lane-align each gate block
    itemsize = jnp.dtype(compute_dtype).itemsize
    sub = 8 * (4 // itemsize)                      # dtype-aware sublane packing (8/16/32)
    B_pad = _round_up(B, sub)
    if b_block is None:
        b_block = B_pad                            # single batch block (v5e/v6e / small B)
    else:
        b_block = _round_up(b_block, sub)          # v7x: shard batch across 2 TCs
        B_pad = _round_up(B_pad, b_block)
    n_bblk = B_pad // b_block
    G = 4 * H_pad
    n_chunks = pl.cdiv(T, t_chunk)
    T_pad = n_chunks * t_chunk

    # Time-major + pad.  x is the smallest tensor involved; the projection stays
    # fused per-step inside the kernel, so there is no (T, B, 4H) intermediate.
    x_tm = jnp.transpose(x, (1, 0, 2)).astype(compute_dtype)
    x_tm = jnp.pad(x_tm, ((0, T_pad - T), (0, B_pad - B), (0, 0)))

    wih = _pack_gates_t(params["w_ih"], D, H, H_pad).astype(compute_dtype)       # (D, G)
    whh = _pack_gates_t(params["w_hh"], H_pad, H, H_pad).astype(compute_dtype)   # (H_pad, G)
    bias = _pack_bias(params["b_ih"] + params["b_hh"], H, H_pad)                 # (1, G) f32

    # Explicit VMEM budget (double-buffered x chunk + weights + out block + c).
    budget = (2 * t_chunk * b_block * D * itemsize
              + 2 * ((D + H_pad) * G * itemsize + G * 4)
              + 2 * b_block * H_pad * 4
              + b_block * H_pad * 4)
    vmem_limit = int(min(64 << 20, max(32 << 20, 2 * budget)))

    cost = pl.CostEstimate(
        flops=int(2 * T_pad * B_pad * G * (D + H_pad)),
        transcendentals=int(5 * T_pad * B_pad * H_pad),
        bytes_accessed=int(x_tm.size * itemsize + (D + H_pad) * G * itemsize
                           + G * 4 + B_pad * H_pad * 4),
    )

    h_last = pl.pallas_call(
        _make_lstm_kernel(T, t_chunk, H_pad),
        out_shape=jax.ShapeDtypeStruct((B_pad, H_pad), jnp.float32),
        grid_spec=pltpu.PrefetchScalarGridSpec(
            num_scalar_prefetch=0,
            grid=(n_bblk, n_chunks),
            in_specs=[
                pl.BlockSpec((t_chunk, b_block, D), lambda b, c: (c, b, 0)),  # x chunk
                pl.BlockSpec((D, G), lambda b, c: (0, 0)),                    # W_ih^T (padded)
                pl.BlockSpec((H_pad, G), lambda b, c: (0, 0)),                # W_hh^T (padded)
                pl.BlockSpec((1, G), lambda b, c: (0, 0)),                    # fused bias
            ],
            out_specs=pl.BlockSpec((b_block, H_pad), lambda b, c: (b, 0)),    # h_last (resident)
            scratch_shapes=[
                pltpu.VMEM((b_block, H_pad), jnp.float32),                    # c state
            ],
        ),
        compiler_params=pltpu.CompilerParams(
            dimension_semantics=("parallel", "arbitrary"),   # batch || ; time carries state
            vmem_limit_bytes=vmem_limit),
        cost_estimate=cost,
    )(x_tm, wih, whh, bias)

    # Tiny (B, H) @ (H, 1) head + bias in plain XLA (kernel output stays lane-dense).
    h = h_last[:B, :H]
    y = h @ jnp.transpose(params["w_fc"]) + params["b_fc"]
    return y.reshape(B)   # matches .squeeze() for B > 1 (cosmetic diff at B == 1)


def init_params(key, input_size, hidden_size):
    """Deterministic init mimicking PyTorch's U(-1/sqrt(H), 1/sqrt(H))."""
    k = 1.0 / np.sqrt(hidden_size)
    keys = jax.random.split(key, 6)
    u = lambda kk, shape: jax.random.uniform(kk, shape, jnp.float32, -k, k)
    return {
        "w_ih": u(keys[0], (4 * hidden_size, input_size)),
        "w_hh": u(keys[1], (4 * hidden_size, hidden_size)),
        "b_ih": u(keys[2], (4 * hidden_size,)),
        "b_hh": u(keys[3], (4 * hidden_size,)),
        "w_fc": u(keys[4], (1, hidden_size)),
        "b_fc": u(keys[5], (1,)),
    }


def _reference_forward(x, params):
    """Pure-JAX reference of the PyTorch module (for correctness check)."""
    B, T, D = x.shape
    H = params["w_hh"].shape[1]
    wih = params["w_ih"]
    whh = params["w_hh"]
    b = params["b_ih"] + params["b_hh"]

    def step(carry, x_t):
        h, c = carry
        gates = x_t @ wih.T + h @ whh.T + b
        i = jax.nn.sigmoid(gates[:, :H])
        f = jax.nn.sigmoid(gates[:, H:2 * H])
        g = jnp.tanh(gates[:, 2 * H:3 * H])
        o = jax.nn.sigmoid(gates[:, 3 * H:])
        c = f * c + i * g
        h = o * jnp.tanh(c)
        return (h, c), None

    h0 = jnp.zeros((B, H), jnp.float32)
    c0 = jnp.zeros((B, H), jnp.float32)
    (h_last, _), _ = jax.lax.scan(step, (h0, c0), jnp.transpose(x, (1, 0, 2)))
    return (h_last @ params["w_fc"].T + params["b_fc"]).reshape(B)


if __name__ == "__main__":
    B, T, D, H = 2, 8, 16, 64     # hidden_size=64 matches the module default
    key = jax.random.PRNGKey(0)
    kx, kp = jax.random.split(key)
    x = jax.random.normal(kx, (B, T, D), jnp.float32)
    params = init_params(kp, D, H)

    y_ref = _reference_forward(x, params)

    # f32 numerics path (matches PyTorch): single chunk, masked padded tail steps.
    y = rnn_model_forward(x, params, t_chunk=16, compute_dtype=jnp.float32)
    jax.block_until_ready(y)
    assert y.shape == (B,)
    np.testing.assert_allclose(np.asarray(y), np.asarray(y_ref),
                               rtol=1e-5, atol=1e-5)

    # Multi-chunk f32 path (exercises the chunked recurrence / resident h,c state).
    y_chunked = rnn_model_forward(x, params, t_chunk=4, compute_dtype=jnp.float32)
    jax.block_until_ready(y_chunked)
    np.testing.assert_allclose(np.asarray(y_chunked), np.asarray(y_ref),
                               rtol=1e-5, atol=1e-5)

    # Default bf16 MXU-native path (f32 accumulation; f32 resident h/c state).
    y_bf16 = rnn_model_forward(x, params)
    jax.block_until_ready(y_bf16)
    np.testing.assert_allclose(np.asarray(y_bf16), np.asarray(y_ref),
                               rtol=5e-2, atol=5e-2)

    print("KERNEL_OK")
</pallas_src>

<mosaic_0001>
module attributes {stable_mosaic.version = 11 : i64} {
  func.func @kernel(%arg0: i32, %arg1: i32, %arg2: memref<16x8x16xf32, #tpu.memory_space<vmem>>, %arg3: memref<16x512xf32, #tpu.memory_space<vmem>>, %arg4: memref<128x512xf32, #tpu.memory_space<vmem>>, %arg5: memref<1x512xf32, #tpu.memory_space<vmem>>, %arg6: memref<8x128xf32, #tpu.memory_space<vmem>>, %arg7: memref<8x128xf32, #tpu.memory_space<vmem>>) attributes {dimension_semantics = [#tpu.dimension_semantics<parallel>, #tpu.dimension_semantics<arbitrary>], iteration_bounds = array<i64: 1, 1>, scalar_prefetch = 0 : i64, scratch_operands = 1 : i64, tpu.core_type = #tpu.core_type<tc>, window_params = [{transform_indices = @transform_0, window_bounds = array<i64: 16, 8, 16>}, {pipeline_mode = #tpu.pipeline_mode<synchronous>, transform_indices = @transform_1, window_bounds = array<i64: 16, 512>}, {pipeline_mode = #tpu.pipeline_mode<synchronous>, transform_indices = @transform_2, window_bounds = array<i64: 128, 512>}, {pipeline_mode = #tpu.pipeline_mode<synchronous>, transform_indices = @transform_3, window_bounds = array<i64: 1, 512>}, {transform_indices = @transform_4, window_bounds = array<i64: 8, 128>}]} {
    %c0_i32 = arith.constant 0 : i32
    %0 = arith.cmpi eq, %arg1, %c0_i32 : i32
    %1 = arith.extui %0 : i1 to i32
    %c0_i32_0 = arith.constant 0 : i32
    %2 = arith.cmpi ne, %1, %c0_i32_0 : i32
    scf.if %2 {
      %cst_223 = arith.constant 0.000000e+00 : f32
      %635 = vector.broadcast %cst_223 : f32 to vector<8x128xf32>
      %c0_224 = arith.constant 0 : index
      %c0_225 = arith.constant 0 : index
      %636 = vector.load %arg6[%c0_224, %c0_225] : memref<8x128xf32, #tpu.memory_space<vmem>>, vector<8x128xf32>
      tpu.vector_store %arg6[%c0_224, %c0_225], %635 {strides = array<i32>} : memref<8x128xf32, #tpu.memory_space<vmem>>, vector<8x128xf32>,
      %cst_226 = arith.constant 0.000000e+00 : f32
      %637 = vector.broadcast %cst_226 : f32 to vector<8x128xf32>
      %c0_227 = arith.constant 0 : index
      %c0_228 = arith.constant 0 : index
      %638 = vector.load %arg7[%c0_227, %c0_228] : memref<8x128xf32, #tpu.memory_space<vmem>>, vector<8x128xf32>
      tpu.vector_store %arg7[%c0_227, %c0_228], %637 {strides = array<i32>} : memref<8x128xf32, #tpu.memory_space<vmem>>, vector<8x128xf32>,
    } else {
    }
    %c0 = arith.constant 0 : index
    %c0_1 = arith.constant 0 : index
    %3 = vector.load %arg3[%c0, %c0_1] : memref<16x512xf32, #tpu.memory_space<vmem>>, vector<16x512xf32>
    %c0_2 = arith.constant 0 : index
    %c0_3 = arith.constant 0 : index
    %4 = vector.load %arg4[%c0_2, %c0_3] : memref<128x512xf32, #tpu.memory_space<vmem>>, vector<128x512xf32>
    %c0_4 = arith.constant 0 : index
    %c0_5 = arith.constant 0 : index
    %5 = vector.load %arg5[%c0_4, %c0_5] : memref<1x512xf32, #tpu.memory_space<vmem>>, vector<1x512xf32>
    %c0_6 = arith.constant 0 : index
    %c0_7 = arith.constant 0 : index
    %6 = vector.load %arg6[%c0_6, %c0_7] : memref<8x128xf32, #tpu.memory_space<vmem>>, vector<8x128xf32>
    %c0_8 = arith.constant 0 : index
    %c0_9 = arith.constant 0 : index
    %7 = vector.load %arg7[%c0_8, %c0_9] : memref<8x128xf32, #tpu.memory_space<vmem>>, vector<8x128xf32>
    %c0_i32_10 = arith.constant 0 : i32
    %8 = arith.cmpi ne, %arg1, %c0_i32_10 : i32
    %c0_11 = arith.constant 0 : index
    %c0_12 = arith.constant 0 : index
    %c0_13 = arith.constant 0 : index
    %9 = vector.load %arg2[%c0_11, %c0_12, %c0_13] : memref<16x8x16xf32, #tpu.memory_space<vmem>>, vector<1x8x16xf32>
    %10 = vector.shape_cast %9 : vector<1x8x16xf32> to vector<8x16xf32>
    %cst = arith.constant dense<0.000000e+00> : vector<8x512xf32>
    %11 = tpu.matmul %10, %3, %cst {dimension_numbers = #tpu.dot_dimension_numbers<[1], [0], [0], [1], [0, 0, 1, 1], [], []>} : vector<8x16xf32>, vector<16x512xf32>, vector<8x512xf32> -> vector<8x512xf32>
    %cst_14 = arith.constant dense<0.000000e+00> : vector<8x512xf32>
    %12 = tpu.matmul %6, %4, %cst_14 {dimension_numbers = #tpu.dot_dimension_numbers<[1], [0], [0], [1], [0, 0, 1, 1], [], []>} : vector<8x128xf32>, vector<128x512xf32>, vector<8x512xf32> -> vector<8x512xf32>
    %13 = arith.addf %11, %12 : vector<8x512xf32>
    %14 = vector.broadcast %5 : vector<1x512xf32> to vector<8x512xf32>
    %15 = arith.addf %13, %14 : vector<8x512xf32>
    %16 = vector.extract_strided_slice %15 {offsets = [0, 0], sizes = [8, 128], strides = [1, 1]} : vector<8x512xf32> to vector<8x128xf32>
    %cst_15 = arith.constant 5.000000e-01 : f32
    %17 = vector.broadcast %cst_15 : f32 to vector<8x128xf32>
    %18 = arith.mulf %17, %16 : vector<8x128xf32>
    %19 = math.tanh %18 : vector<8x128xf32>
    %cst_16 = arith.constant 1.000000e+00 : f32
    %20 = vector.broadcast %cst_16 : f32 to vector<8x128xf32>
    %21 = arith.addf %19, %20 : vector<8x128xf32>
    %cst_17 = arith.constant 5.000000e-01 : f32
    %22 = vector.broadcast %cst_17 : f32 to vector<8x128xf32>
    %23 = arith.mulf %22, %21 : vector<8x128xf32>
    %24 = vector.extract_strided_slice %15 {offsets = [0, 128], sizes = [8, 128], strides = [1, 1]} : vector<8x512xf32> to vector<8x128xf32>
    %cst_18 = arith.constant 5.000000e-01 : f32
    %25 = vector.broadcast %cst_18 : f32 to vector<8x128xf32>
    %26 = arith.mulf %25, %24 : vector<8x128xf32>
    %27 = math.tanh %26 : vector<8x128xf32>
    %cst_19 = arith.constant 1.000000e+00 : f32
    %28 = vector.broadcast %cst_19 : f32 to vector<8x128xf32>
    %29 = arith.addf %27, %28 : vector<8x128xf32>
    %cst_20 = arith.constant 5.000000e-01 : f32
    %30 = vector.broadcast %cst_20 : f32 to vector<8x128xf32>
    %31 = arith.mulf %30, %29 : vector<8x128xf32>
    %32 = vector.extract_strided_slice %15 {offsets = [0, 256], sizes = [8, 128], strides = [1, 1]} : vector<8x512xf32> to vector<8x128xf32>
    %33 = math.tanh %32 : vector<8x128xf32>
    %34 = vector.extract_strided_slice %15 {offsets = [0, 384], sizes = [8, 128], strides = [1, 1]} : vector<8x512xf32> to vector<8x128xf32>
    %cst_21 = arith.constant 5.000000e-01 : f32
    %35 = vector.broadcast %cst_21 : f32 to vector<8x128xf32>
    %36 = arith.mulf %35, %34 : vector<8x128xf32>
    %37 = math.tanh %36 : vector<8x128xf32>
    %cst_22 = arith.constant 1.000000e+00 : f32
    %38 = vector.broadcast %cst_22 : f32 to vector<8x128xf32>
    %39 = arith.addf %37, %38 : vector<8x128xf32>
    %cst_23 = arith.constant 5.000000e-01 : f32
    %40 = vector.broadcast %cst_23 : f32 to vector<8x128xf32>
    %41 = arith.mulf %40, %39 : vector<8x128xf32>
    %42 = arith.mulf %31, %7 : vector<8x128xf32>
    %43 = arith.mulf %23, %33 : vector<8x128xf32>
    %44 = arith.addf %42, %43 : vector<8x128xf32>
    %45 = math.tanh %44 : vector<8x128xf32>
    %46 = arith.mulf %41, %45 : vector<8x128xf32>
    %c1 = arith.constant 1 : index
    %c0_24 = arith.constant 0 : index
    %c0_25 = arith.constant 0 : index
    %47 = vector.load %arg2[%c1, %c0_24, %c0_25] : memref<16x8x16xf32, #tpu.memory_space<vmem>>, vector<1x8x16xf32>
    %48 = vector.shape_cast %47 : vector<1x8x16xf32> to vector<8x16xf32>
    %cst_26 = arith.constant dense<0.000000e+00> : vector<8x512xf32>
    %49 = tpu.matmul %48, %3, %cst_26 {dimension_numbers = #tpu.dot_dimension_numbers<[1], [0], [0], [1], [0, 0, 1, 1], [], []>} : vector<8x16xf32>, vector<16x512xf32>, vector<8x512xf32> -> vector<8x512xf32>
    %cst_27 = arith.constant dense<0.000000e+00> : vector<8x512xf32>
    %50 = tpu.matmul %46, %4, %cst_27 {dimension_numbers = #tpu.dot_dimension_numbers<[1], [0], [0], [1], [0, 0, 1, 1], [], []>} : vector<8x128xf32>, vector<128x512xf32>, vector<8x512xf32> -> vector<8x512xf32>
    %51 = arith.addf %49, %50 : vector<8x512xf32>
    %52 = vector.broadcast %5 : vector<1x512xf32> to vector<8x512xf32>
    %53 = arith.addf %51, %52 : vector<8x512xf32>
    %54 = vector.extract_strided_slice %53 {offsets = [0, 0], sizes = [8, 128], strides = [1, 1]} : vector<8x512xf32> to vector<8x128xf32>
    %cst_28 = arith.constant 5.000000e-01 : f32
    %55 = vector.broadcast %cst_28 : f32 to vector<8x128xf32>
    %56 = arith.mulf %55, %54 : vector<8x128xf32>
    %57 = math.tanh %56 : vector<8x128xf32>
    %cst_29 = arith.constant 1.000000e+00 : f32
    %58 = vector.broadcast %cst_29 : f32 to vector<8x128xf32>
    %59 = arith.addf %57, %58 : vector<8x128xf32>
    %cst_30 = arith.constant 5.000000e-01 : f32
    %60 = vector.broadcast %cst_30 : f32 to vector<8x128xf32>
    %61 = arith.mulf %60, %59 : vector<8x128xf32>
    %62 = vector.extract_strided_slice %53 {offsets = [0, 128], sizes = [8, 128], strides = [1, 1]} : vector<8x512xf32> to vector<8x128xf32>
    %cst_31 = arith.constant 5.000000e-01 : f32
    %63 = vector.broadcast %cst_31 : f32 to vector<8x128xf32>
    %64 = arith.mulf %63, %62 : vector<8x128xf32>
    %65 = math.tanh %64 : vector<8x128xf32>
    %cst_32 = arith.constant 1.000000e+00 : f32
    %66 = vector.broadcast %cst_32 : f32 to vector<8x128xf32>
    %67 = arith.addf %65, %66 : vector<8x128xf32>
    %cst_33 = arith.constant 5.000000e-01 : f32
    %68 = vector.broadcast %cst_33 : f32 to vector<8x128xf32>
    %69 = arith.mulf %68, %67 : vector<8x128xf32>
    %70 = vector.extract_strided_slice %53 {offsets = [0, 256], sizes = [8, 128], strides = [1, 1]} : vector<8x512xf32> to vector<8x128xf32>
    %71 = math.tanh %70 : vector<8x128xf32>
    %72 = vector.extract_strided_slice %53 {offsets = [0, 384], sizes = [8, 128], strides = [1, 1]} : vector<8x512xf32> to vector<8x128xf32>
    %cst_34 = arith.constant 5.000000e-01 : f32
    %73 = vector.broadcast %cst_34 : f32 to vector<8x128xf32>
    %74 = arith.mulf %73, %72 : vector<8x128xf32>
    %75 = math.tanh %74 : vector<8x128xf32>
    %cst_35 = arith.constant 1.000000e+00 : f32
    %76 = vector.broadcast %cst_35 : f32 to vector<8x128xf32>
    %77 = arith.addf %75, %76 : vector<8x128xf32>
    %cst_36 = arith.constant 5.000000e-01 : f32
    %78 = vector.broadcast %cst_36 : f32 to vector<8x128xf32>
    %79 = arith.mulf %78, %77 : vector<8x128xf32>
    %80 = arith.mulf %69, %44 : vector<8x128xf32>
    %81 = arith.mulf %61, %71 : vector<8x128xf32>
    %82 = arith.addf %80, %81 : vector<8x128xf32>
    %83 = math.tanh %82 : vector<8x128xf32>
    %84 = arith.mulf %79, %83 : vector<8x128xf32>
    %c2 = arith.constant 2 : index
    %c0_37 = arith.constant 0 : index
    %c0_38 = arith.constant 0 : index
    %85 = vector.load %arg2[%c2, %c0_37, %c0_38] : memref<16x8x16xf32, #tpu.memory_space<vmem>>, vector<1x8x16xf32>
    %86 = vector.shape_cast %85 : vector<1x8x16xf32> to vector<8x16xf32>
    %cst_39 = arith.constant dense<0.000000e+00> : vector<8x512xf32>
    %87 = tpu.matmul %86, %3, %cst_39 {dimension_numbers = #tpu.dot_dimension_numbers<[1], [0], [0], [1], [0, 0, 1, 1], [], []>} : vector<8x16xf32>, vector<16x512xf32>, vector<8x512xf32> -> vector<8x512xf32>
    %cst_40 = arith.constant dense<0.000000e+00> : vector<8x512xf32>
    %88 = tpu.matmul %84, %4, %cst_40 {dimension_numbers = #tpu.dot_dimension_numbers<[1], [0], [0], [1], [0, 0, 1, 1], [], []>} : vector<8x128xf32>, vector<128x512xf32>, vector<8x512xf32> -> vector<8x512xf32>
    %89 = arith.addf %87, %88 : vector<8x512xf32>
    %90 = vector.broadcast %5 : vector<1x512xf32> to vector<8x512xf32>
    %91 = arith.addf %89, %90 : vector<8x512xf32>
    %92 = vector.extract_strided_slice %91 {offsets = [0, 0], sizes = [8, 128], strides = [1, 1]} : vector<8x512xf32> to vector<8x128xf32>
    %cst_41 = arith.constant 5.000000e-01 : f32
    %93 = vector.broadcast %cst_41 : f32 to vector<8x128xf32>
    %94 = arith.mulf %93, %92 : vector<8x128xf32>
    %95 = math.tanh %94 : vector<8x128xf32>
    %cst_42 = arith.constant 1.000000e+00 : f32
    %96 = vector.broadcast %cst_42 : f32 to vector<8x128xf32>
    %97 = arith.addf %95, %96 : vector<8x128xf32>
    %cst_43 = arith.constant 5.000000e-01 : f32
    %98 = vector.broadcast %cst_43 : f32 to vector<8x128xf32>
    %99 = arith.mulf %98, %97 : vector<8x128xf32>
    %100 = vector.extract_strided_slice %91 {offsets = [0, 128], sizes = [8, 128], strides = [1, 1]} : vector<8x512xf32> to vector<8x128xf32>
    %cst_44 = arith.constant 5.000000e-01 : f32
    %101 = vector.broadcast %cst_44 : f32 to vector<8x128xf32>
    %102 = arith.mulf %101, %100 : vector<8x128xf32>
    %103 = math.tanh %102 : vector<8x128xf32>
    %cst_45 = arith.constant 1.000000e+00 : f32
    %104 = vector.broadcast %cst_45 : f32 to vector<8x128xf32>
    %105 = arith.addf %103, %104 : vector<8x128xf32>
    %cst_46 = arith.constant 5.000000e-01 : f32
    %106 = vector.broadcast %cst_46 : f32 to vector<8x128xf32>
    %107 = arith.mulf %106, %105 : vector<8x128xf32>
    %108 = vector.extract_strided_slice %91 {offsets = [0, 256], sizes = [8, 128], strides = [1, 1]} : vector<8x512xf32> to vector<8x128xf32>
    %109 = math.tanh %108 : vector<8x128xf32>
    %110 = vector.extract_strided_slice %91 {offsets = [0, 384], sizes = [8, 128], strides = [1, 1]} : vector<8x512xf32> to vector<8x128xf32>
    %cst_47 = arith.constant 5.000000e-01 : f32
    %111 = vector.broadcast %cst_47 : f32 to vector<8x128xf32>
    %112 = arith.mulf %111, %110 : vector<8x128xf32>
    %113 = math.tanh %112 : vector<8x128xf32>
    %cst_48 = arith.constant 1.000000e+00 : f32
    %114 = vector.broadcast %cst_48 : f32 to vector<8x128xf32>
    %115 = arith.addf %113, %114 : vector<8x128xf32>
    %cst_49 = arith.constant 5.000000e-01 : f32
    %116 = vector.broadcast %cst_49 : f32 to vector<8x128xf32>
    %117 = arith.mulf %116, %115 : vector<8x128xf32>
    %118 = arith.mulf %107, %82 : vector<8x128xf32>
    %119 = arith.mulf %99, %109 : vector<8x128xf32>
    %120 = arith.addf %118, %119 : vector<8x128xf32>
    %121 = math.tanh %120 : vector<8x128xf32>
    %122 = arith.mulf %117, %121 : vector<8x128xf32>
    %c3 = arith.constant 3 : index
    %c0_50 = arith.constant 0 : index
    %c0_51 = arith.constant 0 : index
    %123 = vector.load %arg2[%c3, %c0_50, %c0_51] : memref<16x8x16xf32, #tpu.memory_space<vmem>>, vector<1x8x16xf32>
    %124 = vector.shape_cast %123 : vector<1x8x16xf32> to vector<8x16xf32>
    %cst_52 = arith.constant dense<0.000000e+00> : vector<8x512xf32>
    %125 = tpu.matmul %124, %3, %cst_52 {dimension_numbers = #tpu.dot_dimension_numbers<[1], [0], [0], [1], [0, 0, 1, 1], [], []>} : vector<8x16xf32>, vector<16x512xf32>, vector<8x512xf32> -> vector<8x512xf32>
    %cst_53 = arith.constant dense<0.000000e+00> : vector<8x512xf32>
    %126 = tpu.matmul %122, %4, %cst_53 {dimension_numbers = #tpu.dot_dimension_numbers<[1], [0], [0], [1], [0, 0, 1, 1], [], []>} : vector<8x128xf32>, vector<128x512xf32>, vector<8x512xf32> -> vector<8x512xf32>
    %127 = arith.addf %125, %126 : vector<8x512xf32>
    %128 = vector.broadcast %5 : vector<1x512xf32> to vector<8x512xf32>
    %129 = arith.addf %127, %128 : vector<8x512xf32>
    %130 = vector.extract_strided_slice %129 {offsets = [0, 0], sizes = [8, 128], strides = [1, 1]} : vector<8x512xf32> to vector<8x128xf32>
    %cst_54 = arith.constant 5.000000e-01 : f32
    %131 = vector.broadcast %cst_54 : f32 to vector<8x128xf32>
    %132 = arith.mulf %131, %130 : vector<8x128xf32>
    %133 = math.tanh %132 : vector<8x128xf32>
    %cst_55 = arith.constant 1.000000e+00 : f32
    %134 = vector.broadcast %cst_55 : f32 to vector<8x128xf32>
    %135 = arith.addf %133, %134 : vector<8x128xf32>
    %cst_56 = arith.constant 5.000000e-01 : f32
    %136 = vector.broadcast %cst_56 : f32 to vector<8x128xf32>
    %137 = arith.mulf %136, %135 : vector<8x128xf32>
    %138 = vector.extract_strided_slice %129 {offsets = [0, 128], sizes = [8, 128], strides = [1, 1]} : vector<8x512xf32> to vector<8x128xf32>
    %cst_57 = arith.constant 5.000000e-01 : f32
    %139 = vector.broadcast %cst_57 : f32 to vector<8x128xf32>
    %140 = arith.mulf %139, %138 : vector<8x128xf32>
    %141 = math.tanh %140 : vector<8x128xf32>
    %cst_58 = arith.constant 1.000000e+00 : f32
    %142 = vector.broadcast %cst_58 : f32 to vector<8x128xf32>
    %143 = arith.addf %141, %142 : vector<8x128xf32>
    %cst_59 = arith.constant 5.000000e-01 : f32
    %144 = vector.broadcast %cst_59 : f32 to vector<8x128xf32>
    %145 = arith.mulf %144, %143 : vector<8x128xf32>
    %146 = vector.extract_strided_slice %129 {offsets = [0, 256], sizes = [8, 128], strides = [1, 1]} : vector<8x512xf32> to vector<8x128xf32>
    %147 = math.tanh %146 : vector<8x128xf32>
    %148 = vector.extract_strided_slice %129 {offsets = [0, 384], sizes = [8, 128], strides = [1, 1]} : vector<8x512xf32> to vector<8x128xf32>
    %cst_60 = arith.constant 5.000000e-01 : f32
    %149 = vector.broadcast %cst_60 : f32 to vector<8x128xf32>
    %150 = arith.mulf %149, %148 : vector<8x128xf32>
    %151 = math.tanh %150 : vector<8x128xf32>
    %cst_61 = arith.constant 1.000000e+00 : f32
    %152 = vector.broadcast %cst_61 : f32 to vector<8x128xf32>
    %153 = arith.addf %151, %152 : vector<8x128xf32>
    %cst_62 = arith.constant 5.000000e-01 : f32
    %154 = vector.broadcast %cst_62 : f32 to vector<8x128xf32>
    %155 = arith.mulf %154, %153 : vector<8x128xf32>
    %156 = arith.mulf %145, %120 : vector<8x128xf32>
    %157 = arith.mulf %137, %147 : vector<8x128xf32>
    %158 = arith.addf %156, %157 : vector<8x128xf32>
    %159 = math.tanh %158 : vector<8x128xf32>
    %160 = arith.mulf %155, %159 : vector<8x128xf32>
    %c4 = arith.constant 4 : index
    %c0_63 = arith.constant 0 : index
    %c0_64 = arith.constant 0 : index
    %161 = vector.load %arg2[%c4, %c0_63, %c0_64] : memref<16x8x16xf32, #tpu.memory_space<vmem>>, vector<1x8x16xf32>
    %162 = vector.shape_cast %161 : vector<1x8x16xf32> to vector<8x16xf32>
    %cst_65 = arith.constant dense<0.000000e+00> : vector<8x512xf32>
    %163 = tpu.matmul %162, %3, %cst_65 {dimension_numbers = #tpu.dot_dimension_numbers<[1], [0], [0], [1], [0, 0, 1, 1], [], []>} : vector<8x16xf32>, vector<16x512xf32>, vector<8x512xf32> -> vector<8x512xf32>
    %cst_66 = arith.constant dense<0.000000e+00> : vector<8x512xf32>
    %164 = tpu.matmul %160, %4, %cst_66 {dimension_numbers = #tpu.dot_dimension_numbers<[1], [0], [0], [1], [0, 0, 1, 1], [], []>} : vector<8x128xf32>, vector<128x512xf32>, vector<8x512xf32> -> vector<8x512xf32>
    %165 = arith.addf %163, %164 : vector<8x512xf32>
    %166 = vector.broadcast %5 : vector<1x512xf32> to vector<8x512xf32>
    %167 = arith.addf %165, %166 : vector<8x512xf32>
    %168 = vector.extract_strided_slice %167 {offsets = [0, 0], sizes = [8, 128], strides = [1, 1]} : vector<8x512xf32> to vector<8x128xf32>
    %cst_67 = arith.constant 5.000000e-01 : f32
    %169 = vector.broadcast %cst_67 : f32 to vector<8x128xf32>
    %170 = arith.mulf %169, %168 : vector<8x128xf32>
    %171 = math.tanh %170 : vector<8x128xf32>
    %cst_68 = arith.constant 1.000000e+00 : f32
    %172 = vector.broadcast %cst_68 : f32 to vector<8x128xf32>
    %173 = arith.addf %171, %172 : vector<8x128xf32>
    %cst_69 = arith.constant 5.000000e-01 : f32
    %174 = vector.broadcast %cst_69 : f32 to vector<8x128xf32>
    %175 = arith.mulf %174, %173 : vector<8x128xf32>
    %176 = vector.extract_strided_slice %167 {offsets = [0, 128], sizes = [8, 128], strides = [1, 1]} : vector<8x512xf32> to vector<8x128xf32>
    %cst_70 = arith.constant 5.000000e-01 : f32
    %177 = vector.broadcast %cst_70 : f32 to vector<8x128xf32>
    %178 = arith.mulf %177, %176 : vector<8x128xf32>
    %179 = math.tanh %178 : vector<8x128xf32>
    %cst_71 = arith.constant 1.000000e+00 : f32
    %180 = vector.broadcast %cst_71 : f32 to vector<8x128xf32>
    %181 = arith.addf %179, %180 : vector<8x128xf32>
    %cst_72 = arith.constant 5.000000e-01 : f32
    %182 = vector.broadcast %cst_72 : f32 to vector<8x128xf32>
    %183 = arith.mulf %182, %181 : vector<8x128xf32>
    %184 = vector.extract_strided_slice %167 {offsets = [0, 256], sizes = [8, 128], strides = [1, 1]} : vector<8x512xf32> to vector<8x128xf32>
    %185 = math.tanh %184 : vector<8x128xf32>
    %186 = vector.extract_strided_slice %167 {offsets = [0, 384], sizes = [8, 128], strides = [1, 1]} : vector<8x512xf32> to vector<8x128xf32>
    %cst_73 = arith.constant 5.000000e-01 : f32
    %187 = vector.broadcast %cst_73 : f32 to vector<8x128xf32>
    %188 = arith.mulf %187, %186 : vector<8x128xf32>
    %189 = math.tanh %188 : vector<8x128xf32>
    %cst_74 = arith.constant 1.000000e+00 : f32
    %190 = vector.broadcast %cst_74 : f32 to vector<8x128xf32>
    %191 = arith.addf %189, %190 : vector<8x128xf32>
    %cst_75 = arith.constant 5.000000e-01 : f32
    %192 = vector.broadcast %cst_75 : f32 to vector<8x128xf32>
    %193 = arith.mulf %192, %191 : vector<8x128xf32>
    %194 = arith.mulf %183, %158 : vector<8x128xf32>
    %195 = arith.mulf %175, %185 : vector<8x128xf32>
    %196 = arith.addf %194, %195 : vector<8x128xf32>
    %197 = math.tanh %196 : vector<8x128xf32>
    %198 = arith.mulf %193, %197 : vector<8x128xf32>
    %c5 = arith.constant 5 : index
    %c0_76 = arith.constant 0 : index
    %c0_77 = arith.constant 0 : index
    %199 = vector.load %arg2[%c5, %c0_76, %c0_77] : memref<16x8x16xf32, #tpu.memory_space<vmem>>, vector<1x8x16xf32>
    %200 = vector.shape_cast %199 : vector<1x8x16xf32> to vector<8x16xf32>
    %cst_78 = arith.constant dense<0.000000e+00> : vector<8x512xf32>
    %201 = tpu.matmul %200, %3, %cst_78 {dimension_numbers = #tpu.dot_dimension_numbers<[1], [0], [0], [1], [0, 0, 1, 1], [], []>} : vector<8x16xf32>, vector<16x512xf32>, vector<8x512xf32> -> vector<8x512xf32>
    %cst_79 = arith.constant dense<0.000000e+00> : vector<8x512xf32>
    %202 = tpu.matmul %198, %4, %cst_79 {dimension_numbers = #tpu.dot_dimension_numbers<[1], [0], [0], [1], [0, 0, 1, 1], [], []>} : vector<8x128xf32>, vector<128x512xf32>, vector<8x512xf32> -> vector<8x512xf32>
    %203 = arith.addf %201, %202 : vector<8x512xf32>
    %204 = vector.broadcast %5 : vector<1x512xf32> to vector<8x512xf32>
    %205 = arith.addf %203, %204 : vector<8x512xf32>
    %206 = vector.extract_strided_slice %205 {offsets = [0, 0], sizes = [8, 128], strides = [1, 1]} : vector<8x512xf32> to vector<8x128xf32>
    %cst_80 = arith.constant 5.000000e-01 : f32
    %207 = vector.broadcast %cst_80 : f32 to vector<8x128xf32>
    %208 = arith.mulf %207, %206 : vector<8x128xf32>
    %209 = math.tanh %208 : vector<8x128xf32>
    %cst_81 = arith.constant 1.000000e+00 : f32
    %210 = vector.broadcast %cst_81 : f32 to vector<8x128xf32>
    %211 = arith.addf %209, %210 : vector<8x128xf32>
    %cst_82 = arith.constant 5.000000e-01 : f32
    %212 = vector.broadcast %cst_82 : f32 to vector<8x128xf32>
    %213 = arith.mulf %212, %211 : vector<8x128xf32>
    %214 = vector.extract_strided_slice %205 {offsets = [0, 128], sizes = [8, 128], strides = [1, 1]} : vector<8x512xf32> to vector<8x128xf32>
    %cst_83 = arith.constant 5.000000e-01 : f32
    %215 = vector.broadcast %cst_83 : f32 to vector<8x128xf32>
    %216 = arith.mulf %215, %214 : vector<8x128xf32>
    %217 = math.tanh %216 : vector<8x128xf32>
    %cst_84 = arith.constant 1.000000e+00 : f32
    %218 = vector.broadcast %cst_84 : f32 to vector<8x128xf32>
    %219 = arith.addf %217, %218 : vector<8x128xf32>
    %cst_85 = arith.constant 5.000000e-01 : f32
    %220 = vector.broadcast %cst_85 : f32 to vector<8x128xf32>
    %221 = arith.mulf %220, %219 : vector<8x128xf32>
    %222 = vector.extract_strided_slice %205 {offsets = [0, 256], sizes = [8, 128], strides = [1, 1]} : vector<8x512xf32> to vector<8x128xf32>
    %223 = math.tanh %222 : vector<8x128xf32>
    %224 = vector.extract_strided_slice %205 {offsets = [0, 384], sizes = [8, 128], strides = [1, 1]} : vector<8x512xf32> to vector<8x128xf32>
    %cst_86 = arith.constant 5.000000e-01 : f32
    %225 = vector.broadcast %cst_86 : f32 to vector<8x128xf32>
    %226 = arith.mulf %225, %224 : vector<8x128xf32>
    %227 = math.tanh %226 : vector<8x128xf32>
    %cst_87 = arith.constant 1.000000e+00 : f32
    %228 = vector.broadcast %cst_87 : f32 to vector<8x128xf32>
    %229 = arith.addf %227, %228 : vector<8x128xf32>
    %cst_88 = arith.constant 5.000000e-01 : f32
    %230 = vector.broadcast %cst_88 : f32 to vector<8x128xf32>
    %231 = arith.mulf %230, %229 : vector<8x128xf32>
    %232 = arith.mulf %221, %196 : vector<8x128xf32>
    %233 = arith.mulf %213, %223 : vector<8x128xf32>
    %234 = arith.addf %232, %233 : vector<8x128xf32>
    %235 = math.tanh %234 : vector<8x128xf32>
    %236 = arith.mulf %231, %235 : vector<8x128xf32>
    %c6 = arith.constant 6 : index
    %c0_89 = arith.constant 0 : index
    %c0_90 = arith.constant 0 : index
    %237 = vector.load %arg2[%c6, %c0_89, %c0_90] : memref<16x8x16xf32, #tpu.memory_space<vmem>>, vector<1x8x16xf32>
    %238 = vector.shape_cast %237 : vector<1x8x16xf32> to vector<8x16xf32>
    %cst_91 = arith.constant dense<0.000000e+00> : vector<8x512xf32>
    %239 = tpu.matmul %238, %3, %cst_91 {dimension_numbers = #tpu.dot_dimension_numbers<[1], [0], [0], [1], [0, 0, 1, 1], [], []>} : vector<8x16xf32>, vector<16x512xf32>, vector<8x512xf32> -> vector<8x512xf32>
    %cst_92 = arith.constant dense<0.000000e+00> : vector<8x512xf32>
    %240 = tpu.matmul %236, %4, %cst_92 {dimension_numbers = #tpu.dot_dimension_numbers<[1], [0], [0], [1], [0, 0, 1, 1], [], []>} : vector<8x128xf32>, vector<128x512xf32>, vector<8x512xf32> -> vector<8x512xf32>
    %241 = arith.addf %239, %240 : vector<8x512xf32>
    %242 = vector.broadcast %5 : vector<1x512xf32> to vector<8x512xf32>
    %243 = arith.addf %241, %242 : vector<8x512xf32>
    %244 = vector.extract_strided_slice %243 {offsets = [0, 0], sizes = [8, 128], strides = [1, 1]} : vector<8x512xf32> to vector<8x128xf32>
    %cst_93 = arith.constant 5.000000e-01 : f32
    %245 = vector.broadcast %cst_93 : f32 to vector<8x128xf32>
    %246 = arith.mulf %245, %244 : vector<8x128xf32>
    %247 = math.tanh %246 : vector<8x128xf32>
    %cst_94 = arith.constant 1.000000e+00 : f32
    %248 = vector.broadcast %cst_94 : f32 to vector<8x128xf32>
    %249 = arith.addf %247, %248 : vector<8x128xf32>
    %cst_95 = arith.constant 5.000000e-01 : f32
    %250 = vector.broadcast %cst_95 : f32 to vector<8x128xf32>
    %251 = arith.mulf %250, %249 : vector<8x128xf32>
    %252 = vector.extract_strided_slice %243 {offsets = [0, 128], sizes = [8, 128], strides = [1, 1]} : vector<8x512xf32> to vector<8x128xf32>
    %cst_96 = arith.constant 5.000000e-01 : f32
    %253 = vector.broadcast %cst_96 : f32 to vector<8x128xf32>
    %254 = arith.mulf %253, %252 : vector<8x128xf32>
    %255 = math.tanh %254 : vector<8x128xf32>
    %cst_97 = arith.constant 1.000000e+00 : f32
    %256 = vector.broadcast %cst_97 : f32 to vector<8x128xf32>
    %257 = arith.addf %255, %256 : vector<8x128xf32>
    %cst_98 = arith.constant 5.000000e-01 : f32
    %258 = vector.broadcast %cst_98 : f32 to vector<8x128xf32>
    %259 = arith.mulf %258, %257 : vector<8x128xf32>
    %260 = vector.extract_strided_slice %243 {offsets = [0, 256], sizes = [8, 128], strides = [1, 1]} : vector<8x512xf32> to vector<8x128xf32>
    %261 = math.tanh %260 : vector<8x128xf32>
    %262 = vector.extract_strided_slice %243 {offsets = [0, 384], sizes = [8, 128], strides = [1, 1]} : vector<8x512xf32> to vector<8x128xf32>
    %cst_99 = arith.constant 5.000000e-01 : f32
    %263 = vector.broadcast %cst_99 : f32 to vector<8x128xf32>
    %264 = arith.mulf %263, %262 : vector<8x128xf32>
    %265 = math.tanh %264 : vector<8x128xf32>
    %cst_100 = arith.constant 1.000000e+00 : f32
    %266 = vector.broadcast %cst_100 : f32 to vector<8x128xf32>
    %267 = arith.addf %265, %266 : vector<8x128xf32>
    %cst_101 = arith.constant 5.000000e-01 : f32
    %268 = vector.broadcast %cst_101 : f32 to vector<8x128xf32>
    %269 = arith.mulf %268, %267 : vector<8x128xf32>
    %270 = arith.mulf %259, %234 : vector<8x128xf32>
    %271 = arith.mulf %251, %261 : vector<8x128xf32>
    %272 = arith.addf %270, %271 : vector<8x128xf32>
    %273 = math.tanh %272 : vector<8x128xf32>
    %274 = arith.mulf %269, %273 : vector<8x128xf32>
    %c7 = arith.constant 7 : index
    %c0_102 = arith.constant 0 : index
    %c0_103 = arith.constant 0 : index
    %275 = vector.load %arg2[%c7, %c0_102, %c0_103] : memref<16x8x16xf32, #tpu.memory_space<vmem>>, vector<1x8x16xf32>
    %276 = vector.shape_cast %275 : vector<1x8x16xf32> to vector<8x16xf32>
    %cst_104 = arith.constant dense<0.000000e+00> : vector<8x512xf32>
    %277 = tpu.matmul %276, %3, %cst_104 {dimension_numbers = #tpu.dot_dimension_numbers<[1], [0], [0], [1], [0, 0, 1, 1], [], []>} : vector<8x16xf32>, vector<16x512xf32>, vector<8x512xf32> -> vector<8x512xf32>
    %cst_105 = arith.constant dense<0.000000e+00> : vector<8x512xf32>
    %278 = tpu.matmul %274, %4, %cst_105 {dimension_numbers = #tpu.dot_dimension_numbers<[1], [0], [0], [1], [0, 0, 1, 1], [], []>} : vector<8x128xf32>, vector<128x512xf32>, vector<8x512xf32> -> vector<8x512xf32>
    %279 = arith.addf %277, %278 : vector<8x512xf32>
    %280 = vector.broadcast %5 : vector<1x512xf32> to vector<8x512xf32>
    %281 = arith.addf %279, %280 : vector<8x512xf32>
    %282 = vector.extract_strided_slice %281 {offsets = [0, 0], sizes = [8, 128], strides = [1, 1]} : vector<8x512xf32> to vector<8x128xf32>
    %cst_106 = arith.constant 5.000000e-01 : f32
    %283 = vector.broadcast %cst_106 : f32 to vector<8x128xf32>
    %284 = arith.mulf %283, %282 : vector<8x128xf32>
    %285 = math.tanh %284 : vector<8x128xf32>
    %cst_107 = arith.constant 1.000000e+00 : f32
    %286 = vector.broadcast %cst_107 : f32 to vector<8x128xf32>
    %287 = arith.addf %285, %286 : vector<8x128xf32>
    %cst_108 = arith.constant 5.000000e-01 : f32
    %288 = vector.broadcast %cst_108 : f32 to vector<8x128xf32>
    %289 = arith.mulf %288, %287 : vector<8x128xf32>
    %290 = vector.extract_strided_slice %281 {offsets = [0, 128], sizes = [8, 128], strides = [1, 1]} : vector<8x512xf32> to vector<8x128xf32>
    %cst_109 = arith.constant 5.000000e-01 : f32
    %291 = vector.broadcast %cst_109 : f32 to vector<8x128xf32>
    %292 = arith.mulf %291, %290 : vector<8x128xf32>
    %293 = math.tanh %292 : vector<8x128xf32>
    %cst_110 = arith.constant 1.000000e+00 : f32
    %294 = vector.broadcast %cst_110 : f32 to vector<8x128xf32>
    %295 = arith.addf %293, %294 : vector<8x128xf32>
    %cst_111 = arith.constant 5.000000e-01 : f32
    %296 = vector.broadcast %cst_111 : f32 to vector<8x128xf32>
    %297 = arith.mulf %296, %295 : vector<8x128xf32>
    %298 = vector.extract_strided_slice %281 {offsets = [0, 256], sizes = [8, 128], strides = [1, 1]} : vector<8x512xf32> to vector<8x128xf32>
    %299 = math.tanh %298 : vector<8x128xf32>
    %300 = vector.extract_strided_slice %281 {offsets = [0, 384], sizes = [8, 128], strides = [1, 1]} : vector<8x512xf32> to vector<8x128xf32>
    %cst_112 = arith.constant 5.000000e-01 : f32
    %301 = vector.broadcast %cst_112 : f32 to vector<8x128xf32>
    %302 = arith.mulf %301, %300 : vector<8x128xf32>
    %303 = math.tanh %302 : vector<8x128xf32>
    %cst_113 = arith.constant 1.000000e+00 : f32
    %304 = vector.broadcast %cst_113 : f32 to vector<8x128xf32>
    %305 = arith.addf %303, %304 : vector<8x128xf32>
    %cst_114 = arith.constant 5.000000e-01 : f32
    %306 = vector.broadcast %cst_114 : f32 to vector<8x128xf32>
    %307 = arith.mulf %306, %305 : vector<8x128xf32>
    %308 = arith.mulf %297, %272 : vector<8x128xf32>
    %309 = arith.mulf %289, %299 : vector<8x128xf32>
    %310 = arith.addf %308, %309 : vector<8x128xf32>
    %311 = math.tanh %310 : vector<8x128xf32>
    %312 = arith.mulf %307, %311 : vector<8x128xf32>
    %c8 = arith.constant 8 : index
    %c0_115 = arith.constant 0 : index
    %c0_116 = arith.constant 0 : index
    %313 = vector.load %arg2[%c8, %c0_115, %c0_116] : memref<16x8x16xf32, #tpu.memory_space<vmem>>, vector<1x8x16xf32>
    %314 = vector.shape_cast %313 : vector<1x8x16xf32> to vector<8x16xf32>
    %cst_117 = arith.constant dense<0.000000e+00> : vector<8x512xf32>
    %315 = tpu.matmul %314, %3, %cst_117 {dimension_numbers = #tpu.dot_dimension_numbers<[1], [0], [0], [1], [0, 0, 1, 1], [], []>} : vector<8x16xf32>, vector<16x512xf32>, vector<8x512xf32> -> vector<8x512xf32>
    %cst_118 = arith.constant dense<0.000000e+00> : vector<8x512xf32>
    %316 = tpu.matmul %312, %4, %cst_118 {dimension_numbers = #tpu.dot_dimension_numbers<[1], [0], [0], [1], [0, 0, 1, 1], [], []>} : vector<8x128xf32>, vector<128x512xf32>, vector<8x512xf32> -> vector<8x512xf32>
    %317 = arith.addf %315, %316 : vector<8x512xf32>
    %318 = vector.broadcast %5 : vector<1x512xf32> to vector<8x512xf32>
    %319 = arith.addf %317, %318 : vector<8x512xf32>
    %320 = vector.extract_strided_slice %319 {offsets = [0, 0], sizes = [8, 128], strides = [1, 1]} : vector<8x512xf32> to vector<8x128xf32>
    %cst_119 = arith.constant 5.000000e-01 : f32
    %321 = vector.broadcast %cst_119 : f32 to vector<8x128xf32>
    %322 = arith.mulf %321, %320 : vector<8x128xf32>
    %323 = math.tanh %322 : vector<8x128xf32>
    %cst_120 = arith.constant 1.000000e+00 : f32
    %324 = vector.broadcast %cst_120 : f32 to vector<8x128xf32>
    %325 = arith.addf %323, %324 : vector<8x128xf32>
    %cst_121 = arith.constant 5.000000e-01 : f32
    %326 = vector.broadcast %cst_121 : f32 to vector<8x128xf32>
    %327 = arith.mulf %326, %325 : vector<8x128xf32>
    %328 = vector.extract_strided_slice %319 {offsets = [0, 128], sizes = [8, 128], strides = [1, 1]} : vector<8x512xf32> to vector<8x128xf32>
    %cst_122 = arith.constant 5.000000e-01 : f32
    %329 = vector.broadcast %cst_122 : f32 to vector<8x128xf32>
    %330 = arith.mulf %329, %328 : vector<8x128xf32>
    %331 = math.tanh %330 : vector<8x128xf32>
    %cst_123 = arith.constant 1.000000e+00 : f32
    %332 = vector.broadcast %cst_123 : f32 to vector<8x128xf32>
    %333 = arith.addf %331, %332 : vector<8x128xf32>
    %cst_124 = arith.constant 5.000000e-01 : f32
    %334 = vector.broadcast %cst_124 : f32 to vector<8x128xf32>
    %335 = arith.mulf %334, %333 : vector<8x128xf32>
    %336 = vector.extract_strided_slice %319 {offsets = [0, 256], sizes = [8, 128], strides = [1, 1]} : vector<8x512xf32> to vector<8x128xf32>
    %337 = math.tanh %336 : vector<8x128xf32>
    %338 = vector.extract_strided_slice %319 {offsets = [0, 384], sizes = [8, 128], strides = [1, 1]} : vector<8x512xf32> to vector<8x128xf32>
    %cst_125 = arith.constant 5.000000e-01 : f32
    %339 = vector.broadcast %cst_125 : f32 to vector<8x128xf32>
    %340 = arith.mulf %339, %338 : vector<8x128xf32>
    %341 = math.tanh %340 : vector<8x128xf32>
    %cst_126 = arith.constant 1.000000e+00 : f32
    %342 = vector.broadcast %cst_126 : f32 to vector<8x128xf32>
    %343 = arith.addf %341, %342 : vector<8x128xf32>
    %cst_127 = arith.constant 5.000000e-01 : f32
    %344 = vector.broadcast %cst_127 : f32 to vector<8x128xf32>
    %345 = arith.mulf %344, %343 : vector<8x128xf32>
    %346 = arith.mulf %335, %310 : vector<8x128xf32>
    %347 = arith.mulf %327, %337 : vector<8x128xf32>
    %348 = arith.addf %346, %347 : vector<8x128xf32>
    %349 = math.tanh %348 : vector<8x128xf32>
    %350 = arith.mulf %345, %349 : vector<8x128xf32>
    %351 = arith.select %8, %348, %310 : vector<8x128xf32>
    %352 = arith.select %8, %350, %312 : vector<8x128xf32>
    %c9 = arith.constant 9 : index
    %c0_128 = arith.constant 0 : index
    %c0_129 = arith.constant 0 : index
    %353 = vector.load %arg2[%c9, %c0_128, %c0_129] : memref<16x8x16xf32, #tpu.memory_space<vmem>>, vector<1x8x16xf32>
    %354 = vector.shape_cast %353 : vector<1x8x16xf32> to vector<8x16xf32>
    %cst_130 = arith.constant dense<0.000000e+00> : vector<8x512xf32>
    %355 = tpu.matmul %354, %3, %cst_130 {dimension_numbers = #tpu.dot_dimension_numbers<[1], [0], [0], [1], [0, 0, 1, 1], [], []>} : vector<8x16xf32>, vector<16x512xf32>, vector<8x512xf32> -> vector<8x512xf32>
    %cst_131 = arith.constant dense<0.000000e+00> : vector<8x512xf32>
    %356 = tpu.matmul %352, %4, %cst_131 {dimension_numbers = #tpu.dot_dimension_numbers<[1], [0], [0], [1], [0, 0, 1, 1], [], []>} : vector<8x128xf32>, vector<128x512xf32>, vector<8x512xf32> -> vector<8x512xf32>
    %357 = arith.addf %355, %356 : vector<8x512xf32>
    %358 = vector.broadcast %5 : vector<1x512xf32> to vector<8x512xf32>
    %359 = arith.addf %357, %358 : vector<8x512xf32>
    %360 = vector.extract_strided_slice %359 {offsets = [0, 0], sizes = [8, 128], strides = [1, 1]} : vector<8x512xf32> to vector<8x128xf32>
    %cst_132 = arith.constant 5.000000e-01 : f32
    %361 = vector.broadcast %cst_132 : f32 to vector<8x128xf32>
    %362 = arith.mulf %361, %360 : vector<8x128xf32>
    %363 = math.tanh %362 : vector<8x128xf32>
    %cst_133 = arith.constant 1.000000e+00 : f32
    %364 = vector.broadcast %cst_133 : f32 to vector<8x128xf32>
    %365 = arith.addf %363, %364 : vector<8x128xf32>
    %cst_134 = arith.constant 5.000000e-01 : f32
    %366 = vector.broadcast %cst_134 : f32 to vector<8x128xf32>
    %367 = arith.mulf %366, %365 : vector<8x128xf32>
    %368 = vector.extract_strided_slice %359 {offsets = [0, 128], sizes = [8, 128], strides = [1, 1]} : vector<8x512xf32> to vector<8x128xf32>
    %cst_135 = arith.constant 5.000000e-01 : f32
    %369 = vector.broadcast %cst_135 : f32 to vector<8x128xf32>
    %370 = arith.mulf %369, %368 : vector<8x128xf32>
    %371 = math.tanh %370 : vector<8x128xf32>
    %cst_136 = arith.constant 1.000000e+00 : f32
    %372 = vector.broadcast %cst_136 : f32 to vector<8x128xf32>
    %373 = arith.addf %371, %372 : vector<8x128xf32>
    %cst_137 = arith.constant 5.000000e-01 : f32
    %374 = vector.broadcast %cst_137 : f32 to vector<8x128xf32>
    %375 = arith.mulf %374, %373 : vector<8x128xf32>
    %376 = vector.extract_strided_slice %359 {offsets = [0, 256], sizes = [8, 128], strides = [1, 1]} : vector<8x512xf32> to vector<8x128xf32>
    %377 = math.tanh %376 : vector<8x128xf32>
    %378 = vector.extract_strided_slice %359 {offsets = [0, 384], sizes = [8, 128], strides = [1, 1]} : vector<8x512xf32> to vector<8x128xf32>
    %cst_138 = arith.constant 5.000000e-01 : f32
    %379 = vector.broadcast %cst_138 : f32 to vector<8x128xf32>
    %380 = arith.mulf %379, %378 : vector<8x128xf32>
    %381 = math.tanh %380 : vector<8x128xf32>
    %cst_139 = arith.constant 1.000000e+00 : f32
    %382 = vector.broadcast %cst_139 : f32 to vector<8x128xf32>
    %383 = arith.addf %381, %382 : vector<8x128xf32>
    %cst_140 = arith.constant 5.000000e-01 : f32
    %384 = vector.broadcast %cst_140 : f32 to vector<8x128xf32>
    %385 = arith.mulf %384, %383 : vector<8x128xf32>
    %386 = arith.mulf %375, %351 : vector<8x128xf32>
    %387 = arith.mulf %367, %377 : vector<8x128xf32>
    %388 = arith.addf %386, %387 : vector<8x128xf32>
    %389 = math.tanh %388 : vector<8x128xf32>
    %390 = arith.mulf %385, %389 : vector<8x128xf32>
    %391 = arith.select %8, %388, %351 : vector<8x128xf32>
    %392 = arith.select %8, %390, %352 : vector<8x128xf32>
    %c10 = arith.constant 10 : index
    %c0_141 = arith.constant 0 : index
    %c0_142 = arith.constant 0 : index
    %393 = vector.load %arg2[%c10, %c0_141, %c0_142] : memref<16x8x16xf32, #tpu.memory_space<vmem>>, vector<1x8x16xf32>
    %394 = vector.shape_cast %393 : vector<1x8x16xf32> to vector<8x16xf32>
    %cst_143 = arith.constant dense<0.000000e+00> : vector<8x512xf32>
    %395 = tpu.matmul %394, %3, %cst_143 {dimension_numbers = #tpu.dot_dimension_numbers<[1], [0], [0], [1], [0, 0, 1, 1], [], []>} : vector<8x16xf32>, vector<16x512xf32>, vector<8x512xf32> -> vector<8x512xf32>
    %cst_144 = arith.constant dense<0.000000e+00> : vector<8x512xf32>
    %396 = tpu.matmul %392, %4, %cst_144 {dimension_numbers = #tpu.dot_dimension_numbers<[1], [0], [0], [1], [0, 0, 1, 1], [], []>} : vector<8x128xf32>, vector<128x512xf32>, vector<8x512xf32> -> vector<8x512xf32>
    %397 = arith.addf %395, %396 : vector<8x512xf32>
    %398 = vector.broadcast %5 : vector<1x512xf32> to vector<8x512xf32>
    %399 = arith.addf %397, %398 : vector<8x512xf32>
    %400 = vector.extract_strided_slice %399 {offsets = [0, 0], sizes = [8, 128], strides = [1, 1]} : vector<8x512xf32> to vector<8x128xf32>
    %cst_145 = arith.constant 5.000000e-01 : f32
    %401 = vector.broadcast %cst_145 : f32 to vector<8x128xf32>
    %402 = arith.mulf %401, %400 : vector<8x128xf32>
    %403 = math.tanh %402 : vector<8x128xf32>
    %cst_146 = arith.constant 1.000000e+00 : f32
    %404 = vector.broadcast %cst_146 : f32 to vector<8x128xf32>
    %405 = arith.addf %403, %404 : vector<8x128xf32>
    %cst_147 = arith.constant 5.000000e-01 : f32
    %406 = vector.broadcast %cst_147 : f32 to vector<8x128xf32>
    %407 = arith.mulf %406, %405 : vector<8x128xf32>
    %408 = vector.extract_strided_slice %399 {offsets = [0, 128], sizes = [8, 128], strides = [1, 1]} : vector<8x512xf32> to vector<8x128xf32>
    %cst_148 = arith.constant 5.000000e-01 : f32
    %409 = vector.broadcast %cst_148 : f32 to vector<8x128xf32>
    %410 = arith.mulf %409, %408 : vector<8x128xf32>
    %411 = math.tanh %410 : vector<8x128xf32>
    %cst_149 = arith.constant 1.000000e+00 : f32
    %412 = vector.broadcast %cst_149 : f32 to vector<8x128xf32>
    %413 = arith.addf %411, %412 : vector<8x128xf32>
    %cst_150 = arith.constant 5.000000e-01 : f32
    %414 = vector.broadcast %cst_150 : f32 to vector<8x128xf32>
    %415 = arith.mulf %414, %413 : vector<8x128xf32>
    %416 = vector.extract_strided_slice %399 {offsets = [0, 256], sizes = [8, 128], strides = [1, 1]} : vector<8x512xf32> to vector<8x128xf32>
    %417 = math.tanh %416 : vector<8x128xf32>
    %418 = vector.extract_strided_slice %399 {offsets = [0, 384], sizes = [8, 128], strides = [1, 1]} : vector<8x512xf32> to vector<8x128xf32>
    %cst_151 = arith.constant 5.000000e-01 : f32
    %419 = vector.broadcast %cst_151 : f32 to vector<8x128xf32>
    %420 = arith.mulf %419, %418 : vector<8x128xf32>
    %421 = math.tanh %420 : vector<8x128xf32>
    %cst_152 = arith.constant 1.000000e+00 : f32
    %422 = vector.broadcast %cst_152 : f32 to vector<8x128xf32>
    %423 = arith.addf %421, %422 : vector<8x128xf32>
    %cst_153 = arith.constant 5.000000e-01 : f32
    %424 = vector.broadcast %cst_153 : f32 to vector<8x128xf32>
    %425 = arith.mulf %424, %423 : vector<8x128xf32>
    %426 = arith.mulf %415, %391 : vector<8x128xf32>
    %427 = arith.mulf %407, %417 : vector<8x128xf32>
    %428 = arith.addf %426, %427 : vector<8x128xf32>
    %429 = math.tanh %428 : vector<8x128xf32>
    %430 = arith.mulf %425, %429 : vector<8x128xf32>
    %431 = arith.select %8, %428, %391 : vector<8x128xf32>
    %432 = arith.select %8, %430, %392 : vector<8x128xf32>
    %c11 = arith.constant 11 : index
    %c0_154 = arith.constant 0 : index
    %c0_155 = arith.constant 0 : index
    %433 = vector.load %arg2[%c11, %c0_154, %c0_155] : memref<16x8x16xf32, #tpu.memory_space<vmem>>, vector<1x8x16xf32>
    %434 = vector.shape_cast %433 : vector<1x8x16xf32> to vector<8x16xf32>
    %cst_156 = arith.constant dense<0.000000e+00> : vector<8x512xf32>
    %435 = tpu.matmul %434, %3, %cst_156 {dimension_numbers = #tpu.dot_dimension_numbers<[1], [0], [0], [1], [0, 0, 1, 1], [], []>} : vector<8x16xf32>, vector<16x512xf32>, vector<8x512xf32> -> vector<8x512xf32>
    %cst_157 = arith.constant dense<0.000000e+00> : vector<8x512xf32>
    %436 = tpu.matmul %432, %4, %cst_157 {dimension_numbers = #tpu.dot_dimension_numbers<[1], [0], [0], [1], [0, 0, 1, 1], [], []>} : vector<8x128xf32>, vector<128x512xf32>, vector<8x512xf32> -> vector<8x512xf32>
    %437 = arith.addf %435, %436 : vector<8x512xf32>
    %438 = vector.broadcast %5 : vector<1x512xf32> to vector<8x512xf32>
    %439 = arith.addf %437, %438 : vector<8x512xf32>
    %440 = vector.extract_strided_slice %439 {offsets = [0, 0], sizes = [8, 128], strides = [1, 1]} : vector<8x512xf32> to vector<8x128xf32>
    %cst_158 = arith.constant 5.000000e-01 : f32
    %441 = vector.broadcast %cst_158 : f32 to vector<8x128xf32>
    %442 = arith.mulf %441, %440 : vector<8x128xf32>
    %443 = math.tanh %442 : vector<8x128xf32>
    %cst_159 = arith.constant 1.000000e+00 : f32
    %444 = vector.broadcast %cst_159 : f32 to vector<8x128xf32>
    %445 = arith.addf %443, %444 : vector<8x128xf32>
    %cst_160 = arith.constant 5.000000e-01 : f32
    %446 = vector.broadcast %cst_160 : f32 to vector<8x128xf32>
    %447 = arith.mulf %446, %445 : vector<8x128xf32>
    %448 = vector.extract_strided_slice %439 {offsets = [0, 128], sizes = [8, 128], strides = [1, 1]} : vector<8x512xf32> to vector<8x128xf32>
    %cst_161 = arith.constant 5.000000e-01 : f32
    %449 = vector.broadcast %cst_161 : f32 to vector<8x128xf32>
    %450 = arith.mulf %449, %448 : vector<8x128xf32>
    %451 = math.tanh %450 : vector<8x128xf32>
    %cst_162 = arith.constant 1.000000e+00 : f32
    %452 = vector.broadcast %cst_162 : f32 to vector<8x128xf32>
    %453 = arith.addf %451, %452 : vector<8x128xf32>
    %cst_163 = arith.constant 5.000000e-01 : f32
    %454 = vector.broadcast %cst_163 : f32 to vector<8x128xf32>
    %455 = arith.mulf %454, %453 : vector<8x128xf32>
    %456 = vector.extract_strided_slice %439 {offsets = [0, 256], sizes = [8, 128], strides = [1, 1]} : vector<8x512xf32> to vector<8x128xf32>
    %457 = math.tanh %456 : vector<8x128xf32>
    %458 = vector.extract_strided_slice %439 {offsets = [0, 384], sizes = [8, 128], strides = [1, 1]} : vector<8x512xf32> to vector<8x128xf32>
    %cst_164 = arith.constant 5.000000e-01 : f32
    %459 = vector.broadcast %cst_164 : f32 to vector<8x128xf32>
    %460 = arith.mulf %459, %458 : vector<8x128xf32>
    %461 = math.tanh %460 : vector<8x128xf32>
    %cst_165 = arith.constant 1.000000e+00 : f32
    %462 = vector.broadcast %cst_165 : f32 to vector<8x128xf32>
    %463 = arith.addf %461, %462 : vector<8x128xf32>
    %cst_166 = arith.constant 5.000000e-01 : f32
    %464 = vector.broadcast %cst_166 : f32 to vector<8x128xf32>
    %465 = arith.mulf %464, %463 : vector<8x128xf32>
    %466 = arith.mulf %455, %431 : vector<8x128xf32>
    %467 = arith.mulf %447, %457 : vector<8x128xf32>
    %468 = arith.addf %466, %467 : vector<8x128xf32>
    %469 = math.tanh %468 : vector<8x128xf32>
    %470 = arith.mulf %465, %469 : vector<8x128xf32>
    %471 = arith.select %8, %468, %431 : vector<8x128xf32>
    %472 = arith.select %8, %470, %432 : vector<8x128xf32>
    %c12 = arith.constant 12 : index
    %c0_167 = arith.constant 0 : index
    %c0_168 = arith.constant 0 : index
    %473 = vector.load %arg2[%c12, %c0_167, %c0_168] : memref<16x8x16xf32, #tpu.memory_space<vmem>>, vector<1x8x16xf32>
    %474 = vector.shape_cast %473 : vector<1x8x16xf32> to vector<8x16xf32>
    %cst_169 = arith.constant dense<0.000000e+00> : vector<8x512xf32>
    %475 = tpu.matmul %474, %3, %cst_169 {dimension_numbers = #tpu.dot_dimension_numbers<[1], [0], [0], [1], [0, 0, 1, 1], [], []>} : vector<8x16xf32>, vector<16x512xf32>, vector<8x512xf32> -> vector<8x512xf32>
    %cst_170 = arith.constant dense<0.000000e+00> : vector<8x512xf32>
    %476 = tpu.matmul %472, %4, %cst_170 {dimension_numbers = #tpu.dot_dimension_numbers<[1], [0], [0], [1], [0, 0, 1, 1], [], []>} : vector<8x128xf32>, vector<128x512xf32>, vector<8x512xf32> -> vector<8x512xf32>
    %477 = arith.addf %475, %476 : vector<8x512xf32>
    %478 = vector.broadcast %5 : vector<1x512xf32> to vector<8x512xf32>
    %479 = arith.addf %477, %478 : vector<8x512xf32>
    %480 = vector.extract_strided_slice %479 {offsets = [0, 0], sizes = [8, 128], strides = [1, 1]} : vector<8x512xf32> to vector<8x128xf32>
    %cst_171 = arith.constant 5.000000e-01 : f32
    %481 = vector.broadcast %cst_171 : f32 to vector<8x128xf32>
    %482 = arith.mulf %481, %480 : vector<8x128xf32>
    %483 = math.tanh %482 : vector<8x128xf32>
    %cst_172 = arith.constant 1.000000e+00 : f32
    %484 = vector.broadcast %cst_172 : f32 to vector<8x128xf32>
    %485 = arith.addf %483, %484 : vector<8x128xf32>
    %cst_173 = arith.constant 5.000000e-01 : f32
    %486 = vector.broadcast %cst_173 : f32 to vector<8x128xf32>
    %487 = arith.mulf %486, %485 : vector<8x128xf32>
    %488 = vector.extract_strided_slice %479 {offsets = [0, 128], sizes = [8, 128], strides = [1, 1]} : vector<8x512xf32> to vector<8x128xf32>
    %cst_174 = arith.constant 5.000000e-01 : f32
    %489 = vector.broadcast %cst_174 : f32 to vector<8x128xf32>
    %490 = arith.mulf %489, %488 : vector<8x128xf32>
    %491 = math.tanh %490 : vector<8x128xf32>
    %cst_175 = arith.constant 1.000000e+00 : f32
    %492 = vector.broadcast %cst_175 : f32 to vector<8x128xf32>
    %493 = arith.addf %491, %492 : vector<8x128xf32>
    %cst_176 = arith.constant 5.000000e-01 : f32
    %494 = vector.broadcast %cst_176 : f32 to vector<8x128xf32>
    %495 = arith.mulf %494, %493 : vector<8x128xf32>
    %496 = vector.extract_strided_slice %479 {offsets = [0, 256], sizes = [8, 128], strides = [1, 1]} : vector<8x512xf32> to vector<8x128xf32>
    %497 = math.tanh %496 : vector<8x128xf32>
    %498 = vector.extract_strided_slice %479 {offsets = [0, 384], sizes = [8, 128], strides = [1, 1]} : vector<8x512xf32> to vector<8x128xf32>
    %cst_177 = arith.constant 5.000000e-01 : f32
    %499 = vector.broadcast %cst_177 : f32 to vector<8x128xf32>
    %500 = arith.mulf %499, %498 : vector<8x128xf32>
    %501 = math.tanh %500 : vector<8x128xf32>
    %cst_178 = arith.constant 1.000000e+00 : f32
    %502 = vector.broadcast %cst_178 : f32 to vector<8x128xf32>
    %503 = arith.addf %501, %502 : vector<8x128xf32>
    %cst_179 = arith.constant 5.000000e-01 : f32
    %504 = vector.broadcast %cst_179 : f32 to vector<8x128xf32>
    %505 = arith.mulf %504, %503 : vector<8x128xf32>
    %506 = arith.mulf %495, %471 : vector<8x128xf32>
    %507 = arith.mulf %487, %497 : vector<8x128xf32>
    %508 = arith.addf %506, %507 : vector<8x128xf32>
    %509 = math.tanh %508 : vector<8x128xf32>
    %510 = arith.mulf %505, %509 : vector<8x128xf32>
    %511 = arith.select %8, %508, %471 : vector<8x128xf32>
    %512 = arith.select %8, %510, %472 : vector<8x128xf32>
    %c13 = arith.constant 13 : index
    %c0_180 = arith.constant 0 : index
    %c0_181 = arith.constant 0 : index
    %513 = vector.load %arg2[%c13, %c0_180, %c0_181] : memref<16x8x16xf32, #tpu.memory_space<vmem>>, vector<1x8x16xf32>
    %514 = vector.shape_cast %513 : vector<1x8x16xf32> to vector<8x16xf32>
    %cst_182 = arith.constant dense<0.000000e+00> : vector<8x512xf32>
    %515 = tpu.matmul %514, %3, %cst_182 {dimension_numbers = #tpu.dot_dimension_numbers<[1], [0], [0], [1], [0, 0, 1, 1], [], []>} : vector<8x16xf32>, vector<16x512xf32>, vector<8x512xf32> -> vector<8x512xf32>
    %cst_183 = arith.constant dense<0.000000e+00> : vector<8x512xf32>
    %516 = tpu.matmul %512, %4, %cst_183 {dimension_numbers = #tpu.dot_dimension_numbers<[1], [0], [0], [1], [0, 0, 1, 1], [], []>} : vector<8x128xf32>, vector<128x512xf32>, vector<8x512xf32> -> vector<8x512xf32>
    %517 = arith.addf %515, %516 : vector<8x512xf32>
    %518 = vector.broadcast %5 : vector<1x512xf32> to vector<8x512xf32>
    %519 = arith.addf %517, %518 : vector<8x512xf32>
    %520 = vector.extract_strided_slice %519 {offsets = [0, 0], sizes = [8, 128], strides = [1, 1]} : vector<8x512xf32> to vector<8x128xf32>
    %cst_184 = arith.constant 5.000000e-01 : f32
    %521 = vector.broadcast %cst_184 : f32 to vector<8x128xf32>
    %522 = arith.mulf %521, %520 : vector<8x128xf32>
    %523 = math.tanh %522 : vector<8x128xf32>
    %cst_185 = arith.constant 1.000000e+00 : f32
    %524 = vector.broadcast %cst_185 : f32 to vector<8x128xf32>
    %525 = arith.addf %523, %524 : vector<8x128xf32>
    %cst_186 = arith.constant 5.000000e-01 : f32
    %526 = vector.broadcast %cst_186 : f32 to vector<8x128xf32>
    %527 = arith.mulf %526, %525 : vector<8x128xf32>
    %528 = vector.extract_strided_slice %519 {offsets = [0, 128], sizes = [8, 128], strides = [1, 1]} : vector<8x512xf32> to vector<8x128xf32>
    %cst_187 = arith.constant 5.000000e-01 : f32
    %529 = vector.broadcast %cst_187 : f32 to vector<8x128xf32>
    %530 = arith.mulf %529, %528 : vector<8x128xf32>
    %531 = math.tanh %530 : vector<8x128xf32>
    %cst_188 = arith.constant 1.000000e+00 : f32
    %532 = vector.broadcast %cst_188 : f32 to vector<8x128xf32>
    %533 = arith.addf %531, %532 : vector<8x128xf32>
    %cst_189 = arith.constant 5.000000e-01 : f32
    %534 = vector.broadcast %cst_189 : f32 to vector<8x128xf32>
    %535 = arith.mulf %534, %533 : vector<8x128xf32>
    %536 = vector.extract_strided_slice %519 {offsets = [0, 256], sizes = [8, 128], strides = [1, 1]} : vector<8x512xf32> to vector<8x128xf32>
    %537 = math.tanh %536 : vector<8x128xf32>
    %538 = vector.extract_strided_slice %519 {offsets = [0, 384], sizes = [8, 128], strides = [1, 1]} : vector<8x512xf32> to vector<8x128xf32>
    %cst_190 = arith.constant 5.000000e-01 : f32
    %539 = vector.broadcast %cst_190 : f32 to vector<8x128xf32>
    %540 = arith.mulf %539, %538 : vector<8x128xf32>
    %541 = math.tanh %540 : vector<8x128xf32>
    %cst_191 = arith.constant 1.000000e+00 : f32
    %542 = vector.broadcast %cst_191 : f32 to vector<8x128xf32>
    %543 = arith.addf %541, %542 : vector<8x128xf32>
    %cst_192 = arith.constant 5.000000e-01 : f32
    %544 = vector.broadcast %cst_192 : f32 to vector<8x128xf32>
    %545 = arith.mulf %544, %543 : vector<8x128xf32>
    %546 = arith.mulf %535, %511 : vector<8x128xf32>
    %547 = arith.mulf %527, %537 : vector<8x128xf32>
    %548 = arith.addf %546, %547 : vector<8x128xf32>
    %549 = math.tanh %548 : vector<8x128xf32>
    %550 = arith.mulf %545, %549 : vector<8x128xf32>
    %551 = arith.select %8, %548, %511 : vector<8x128xf32>
    %552 = arith.select %8, %550, %512 : vector<8x128xf32>
    %c14 = arith.constant 14 : index
    %c0_193 = arith.constant 0 : index
    %c0_194 = arith.constant 0 : index
    %553 = vector.load %arg2[%c14, %c0_193, %c0_194] : memref<16x8x16xf32, #tpu.memory_space<vmem>>, vector<1x8x16xf32>
    %554 = vector.shape_cast %553 : vector<1x8x16xf32> to vector<8x16xf32>
    %cst_195 = arith.constant dense<0.000000e+00> : vector<8x512xf32>
    %555 = tpu.matmul %554, %3, %cst_195 {dimension_numbers = #tpu.dot_dimension_numbers<[1], [0], [0], [1], [0, 0, 1, 1], [], []>} : vector<8x16xf32>, vector<16x512xf32>, vector<8x512xf32> -> vector<8x512xf32>
    %cst_196 = arith.constant dense<0.000000e+00> : vector<8x512xf32>
    %556 = tpu.matmul %552, %4, %cst_196 {dimension_numbers = #tpu.dot_dimension_numbers<[1], [0], [0], [1], [0, 0, 1, 1], [], []>} : vector<8x128xf32>, vector<128x512xf32>, vector<8x512xf32> -> vector<8x512xf32>
    %557 = arith.addf %555, %556 : vector<8x512xf32>
    %558 = vector.broadcast %5 : vector<1x512xf32> to vector<8x512xf32>
    %559 = arith.addf %557, %558 : vector<8x512xf32>
    %560 = vector.extract_strided_slice %559 {offsets = [0, 0], sizes = [8, 128], strides = [1, 1]} : vector<8x512xf32> to vector<8x128xf32>
    %cst_197 = arith.constant 5.000000e-01 : f32
    %561 = vector.broadcast %cst_197 : f32 to vector<8x128xf32>
    %562 = arith.mulf %561, %560 : vector<8x128xf32>
    %563 = math.tanh %562 : vector<8x128xf32>
    %cst_198 = arith.constant 1.000000e+00 : f32
    %564 = vector.broadcast %cst_198 : f32 to vector<8x128xf32>
    %565 = arith.addf %563, %564 : vector<8x128xf32>
    %cst_199 = arith.constant 5.000000e-01 : f32
    %566 = vector.broadcast %cst_199 : f32 to vector<8x128xf32>
    %567 = arith.mulf %566, %565 : vector<8x128xf32>
    %568 = vector.extract_strided_slice %559 {offsets = [0, 128], sizes = [8, 128], strides = [1, 1]} : vector<8x512xf32> to vector<8x128xf32>
    %cst_200 = arith.constant 5.000000e-01 : f32
    %569 = vector.broadcast %cst_200 : f32 to vector<8x128xf32>
    %570 = arith.mulf %569, %568 : vector<8x128xf32>
    %571 = math.tanh %570 : vector<8x128xf32>
    %cst_201 = arith.constant 1.000000e+00 : f32
    %572 = vector.broadcast %cst_201 : f32 to vector<8x128xf32>
    %573 = arith.addf %571, %572 : vector<8x128xf32>
    %cst_202 = arith.constant 5.000000e-01 : f32
    %574 = vector.broadcast %cst_202 : f32 to vector<8x128xf32>
    %575 = arith.mulf %574, %573 : vector<8x128xf32>
    %576 = vector.extract_strided_slice %559 {offsets = [0, 256], sizes = [8, 128], strides = [1, 1]} : vector<8x512xf32> to vector<8x128xf32>
    %577 = math.tanh %576 : vector<8x128xf32>
    %578 = vector.extract_strided_slice %559 {offsets = [0, 384], sizes = [8, 128], strides = [1, 1]} : vector<8x512xf32> to vector<8x128xf32>
    %cst_203 = arith.constant 5.000000e-01 : f32
    %579 = vector.broadcast %cst_203 : f32 to vector<8x128xf32>
    %580 = arith.mulf %579, %578 : vector<8x128xf32>
    %581 = math.tanh %580 : vector<8x128xf32>
    %cst_204 = arith.constant 1.000000e+00 : f32
    %582 = vector.broadcast %cst_204 : f32 to vector<8x128xf32>
    %583 = arith.addf %581, %582 : vector<8x128xf32>
    %cst_205 = arith.constant 5.000000e-01 : f32
    %584 = vector.broadcast %cst_205 : f32 to vector<8x128xf32>
    %585 = arith.mulf %584, %583 : vector<8x128xf32>
    %586 = arith.mulf %575, %551 : vector<8x128xf32>
    %587 = arith.mulf %567, %577 : vector<8x128xf32>
    %588 = arith.addf %586, %587 : vector<8x128xf32>
    %589 = math.tanh %588 : vector<8x128xf32>
    %590 = arith.mulf %585, %589 : vector<8x128xf32>
    %591 = arith.select %8, %588, %551 : vector<8x128xf32>
    %592 = arith.select %8, %590, %552 : vector<8x128xf32>
    %c15 = arith.constant 15 : index
    %c0_206 = arith.constant 0 : index
    %c0_207 = arith.constant 0 : index
    %593 = vector.load %arg2[%c15, %c0_206, %c0_207] : memref<16x8x16xf32, #tpu.memory_space<vmem>>, vector<1x8x16xf32>
    %594 = vector.shape_cast %593 : vector<1x8x16xf32> to vector<8x16xf32>
    %cst_208 = arith.constant dense<0.000000e+00> : vector<8x512xf32>
    %595 = tpu.matmul %594, %3, %cst_208 {dimension_numbers = #tpu.dot_dimension_numbers<[1], [0], [0], [1], [0, 0, 1, 1], [], []>} : vector<8x16xf32>, vector<16x512xf32>, vector<8x512xf32> -> vector<8x512xf32>
    %cst_209 = arith.constant dense<0.000000e+00> : vector<8x512xf32>
    %596 = tpu.matmul %592, %4, %cst_209 {dimension_numbers = #tpu.dot_dimension_numbers<[1], [0], [0], [1], [0, 0, 1, 1], [], []>} : vector<8x128xf32>, vector<128x512xf32>, vector<8x512xf32> -> vector<8x512xf32>
    %597 = arith.addf %595, %596 : vector<8x512xf32>
    %598 = vector.broadcast %5 : vector<1x512xf32> to vector<8x512xf32>
    %599 = arith.addf %597, %598 : vector<8x512xf32>
    %600 = vector.extract_strided_slice %599 {offsets = [0, 0], sizes = [8, 128], strides = [1, 1]} : vector<8x512xf32> to vector<8x128xf32>
    %cst_210 = arith.constant 5.000000e-01 : f32
    %601 = vector.broadcast %cst_210 : f32 to vector<8x128xf32>
    %602 = arith.mulf %601, %600 : vector<8x128xf32>
    %603 = math.tanh %602 : vector<8x128xf32>
    %cst_211 = arith.constant 1.000000e+00 : f32
    %604 = vector.broadcast %cst_211 : f32 to vector<8x128xf32>
    %605 = arith.addf %603, %604 : vector<8x128xf32>
    %cst_212 = arith.constant 5.000000e-01 : f32
    %606 = vector.broadcast %cst_212 : f32 to vector<8x128xf32>
    %607 = arith.mulf %606, %605 : vector<8x128xf32>
    %608 = vector.extract_strided_slice %599 {offsets = [0, 128], sizes = [8, 128], strides = [1, 1]} : vector<8x512xf32> to vector<8x128xf32>
    %cst_213 = arith.constant 5.000000e-01 : f32
    %609 = vector.broadcast %cst_213 : f32 to vector<8x128xf32>
    %610 = arith.mulf %609, %608 : vector<8x128xf32>
    %611 = math.tanh %610 : vector<8x128xf32>
    %cst_214 = arith.constant 1.000000e+00 : f32
    %612 = vector.broadcast %cst_214 : f32 to vector<8x128xf32>
    %613 = arith.addf %611, %612 : vector<8x128xf32>
    %cst_215 = arith.constant 5.000000e-01 : f32
    %614 = vector.broadcast %cst_215 : f32 to vector<8x128xf32>
    %615 = arith.mulf %614, %613 : vector<8x128xf32>
    %616 = vector.extract_strided_slice %599 {offsets = [0, 256], sizes = [8, 128], strides = [1, 1]} : vector<8x512xf32> to vector<8x128xf32>
    %617 = math.tanh %616 : vector<8x128xf32>
    %618 = vector.extract_strided_slice %599 {offsets = [0, 384], sizes = [8, 128], strides = [1, 1]} : vector<8x512xf32> to vector<8x128xf32>
    %cst_216 = arith.constant 5.000000e-01 : f32
    %619 = vector.broadcast %cst_216 : f32 to vector<8x128xf32>
    %620 = arith.mulf %619, %618 : vector<8x128xf32>
    %621 = math.tanh %620 : vector<8x128xf32>
    %cst_217 = arith.constant 1.000000e+00 : f32
    %622 = vector.broadcast %cst_217 : f32 to vector<8x128xf32>
    %623 = arith.addf %621, %622 : vector<8x128xf32>
    %cst_218 = arith.constant 5.000000e-01 : f32
    %624 = vector.broadcast %cst_218 : f32 to vector<8x128xf32>
    %625 = arith.mulf %624, %623 : vector<8x128xf32>
    %626 = arith.mulf %615, %591 : vector<8x128xf32>
    %627 = arith.mulf %607, %617 : vector<8x128xf32>
    %628 = arith.addf %626, %627 : vector<8x128xf32>
    %629 = math.tanh %628 : vector<8x128xf32>
    %630 = arith.mulf %625, %629 : vector<8x128xf32>
    %631 = arith.select %8, %628, %591 : vector<8x128xf32>
    %632 = arith.select %8, %630, %592 : vector<8x128xf32>
    %c0_219 = arith.constant 0 : index
    %c0_220 = arith.constant 0 : index
    %633 = vector.load %arg6[%c0_219, %c0_220] : memref<8x128xf32, #tpu.memory_space<vmem>>, vector<8x128xf32>
    tpu.vector_store %arg6[%c0_219, %c0_220], %632 {strides = array<i32>} : memref<8x128xf32, #tpu.memory_space<vmem>>, vector<8x128xf32>,
    %c0_221 = arith.constant 0 : index
    %c0_222 = arith.constant 0 : index
    %634 = vector.load %arg7[%c0_221, %c0_222] : memref<8x128xf32, #tpu.memory_space<vmem>>, vector<8x128xf32>
    tpu.vector_store %arg7[%c0_221, %c0_222], %631 {strides = array<i32>} : memref<8x128xf32, #tpu.memory_space<vmem>>, vector<8x128xf32>,
    return
  }
  func.func @transform_0(%arg0: i32, %arg1: i32) -> (i32, i32, i32) {
    %c0_i32 = arith.constant 0 : i32
    %c0_i32_0 = arith.constant 0 : i32
    return %arg1, %arg0, %c0_i32 : i32, i32, i32
  }
  func.func @transform_1(%arg0: i32, %arg1: i32) -> (i32, i32) {
    %c0_i32 = arith.constant 0 : i32
    %c0_i32_0 = arith.constant 0 : i32
    %c0_i32_1 = arith.constant 0 : i32
    return %c0_i32, %c0_i32_0 : i32, i32
  }
  func.func @transform_2(%arg0: i32, %arg1: i32) -> (i32, i32) {
    %c0_i32 = arith.constant 0 : i32
    %c0_i32_0 = arith.constant 0 : i32
    %c0_i32_1 = arith.constant 0 : i32
    return %c0_i32, %c0_i32_0 : i32, i32
  }
  func.func @transform_3(%arg0: i32, %arg1: i32) -> (i32, i32) {
    %c0_i32 = arith.constant 0 : i32
    %c0_i32_0 = arith.constant 0 : i32
    %c0_i32_1 = arith.constant 0 : i32
    return %c0_i32, %c0_i32_0 : i32, i32
  }
  func.func @transform_4(%arg0: i32, %arg1: i32) -> (i32, i32) {
    %c0_i32 = arith.constant 0 : i32
    %c0_i32_0 = arith.constant 0 : i32
    return %arg0, %c0_i32 : i32, i32
  }
}

</mosaic_0001>

<llo_original>
// kernel: tpu_custom_call.1
$region0: #{tpu_custom_call.1}
  #allocation0 [shape = 'u32[]', space=smem, size = 0x4, offset = 0x4, fixed_abs, tag = 'smem constant byte address 0x4 - core index']
  #allocation1 [shape = 'u32[144,128]{1,0:T(1,128)}', space=vmem, size = 0x12000, scoped, tag = 'internal scratch']
  #allocation2 [shape = 'f32[8,128]{1,0:T(8,128)}', space=vmem, size = 0x1000, scoped, tag = 'scratch operand']
  %s0 = inlined_call_operand.hbm [shape: f32[16,8,16], index: 0, kind: input, shape index: {}]
  %s1 = inlined_call_operand.hbm [shape: f32[16,512], index: 1, kind: input, shape index: {}]
  %s2 = inlined_call_operand.hbm [shape: f32[128,512], index: 2, kind: input, shape index: {}]
  %s3 = inlined_call_operand.vmem [shape: f32[1,512], index: 3, kind: input, shape index: {}]
  %s4 = inlined_call_operand.hbm [shape: f32[8,128], index: 4, kind: output, shape index: {}]
  %s5 = sld [smem:[#allocation0]]
  $region42: #{tpu_custom_call.1} parent=0
    _
  %s7 = ssub.s32 1, %s5
  %s8 = scalar_select 0, %s7, %s5
  $region1: #{tpu_custom_call.1} parent=0
    #allocation3 [shape = 'u8[65536]{0}', space=vmem, size = 0x10000, scoped, tag = 'input window, operand 0, single buffered']
    #allocation4 [shape = 's32[1]{0}', space=sflag, size = 0x4, scoped, tag = 'scoped memory for tpu_custom_call.1']
    #allocation5 [shape = 's32[1]{0}', space=sflag, size = 0x4, scoped, tag = 'scoped memory for tpu_custom_call.1']
    #allocation6 [shape = 'u8[32768]{0}', space=vmem, size = 0x8000, scoped, tag = 'input window, operand 1, single buffered']
    #allocation7 [shape = 's32[1]{0}', space=sflag, size = 0x4, scoped, tag = 'scoped memory for tpu_custom_call.1']
    #allocation8 [shape = 'u8[262144]{0}', space=vmem, size = 0x40000, scoped, tag = 'input window, operand 2, single buffered']
    #allocation9 [shape = 'u8[4096]{0}', space=vmem, size = 0x1000, scoped, tag = 'output window, operand 0, single buffered']
    %9 = vsyncpa [#allocation4], 0
    %10 = vsyncpa [#allocation7], 0
    %11 = vsyncpa [#allocation5], 0
    // Predicated region
    $region2: #{tpu_custom_call.1} parent=1 // pred_check
      _
    $region3: #{tpu_custom_call.1} parent=1 // pred_check_branch
      %13 = sbr.rel (0) target = $region5
    $region4: #{tpu_custom_call.1} parent=1 // pred_region
      %s15 = ssub.s32 2048, 2048
      %16 = vsyncadd [#allocation4], %s15
      %s17 = sshll.u32 [#allocation3], 4
      %s18 = int_to_ptr.vmem [resolvable:$true] %s17
      %23 = dma.hbm_to_vmem [thread:$0]  %s0, 2048, %s18, [#allocation4], 128, 128, 8
    $region5: #{tpu_custom_call.1} parent=1 // pred_fallthru
      _
    // Predicated region
    $region6: #{tpu_custom_call.1} parent=1 // pred_check
      _
    $region7: #{tpu_custom_call.1} parent=1 // pred_check_branch
      %25 = sbr.rel (0) target = $region9
    $region8: #{tpu_custom_call.1} parent=1 // pred_region
      %s27 = ssub.s32 1024, 1024
      %28 = vsyncadd [#allocation7], %s27
      %s29 = sshll.u32 [#allocation6], 4
      %s30 = int_to_ptr.vmem [resolvable:$true] %s29
      %35 = dma.hbm_to_vmem [thread:$0]  %s1, 1024, %s30, [#allocation7], 512, 512, 32
    $region9: #{tpu_custom_call.1} parent=1 // pred_fallthru
      _
    // Predicated region
    $region10: #{tpu_custom_call.1} parent=1 // pred_check
      _
    $region11: #{tpu_custom_call.1} parent=1 // pred_check_branch
      %37 = sbr.rel (0) target = $region13
    $region12: #{tpu_custom_call.1} parent=1 // pred_region
      %s39 = ssub.s32 8192, 8192
      %40 = vsyncadd [#allocation7], %s39
      %s41 = sshll.u32 [#allocation8], 4
      %s42 = int_to_ptr.vmem [resolvable:$true] %s41
      %47 = dma.hbm_to_vmem [thread:$0]  %s2, 8192, %s42, [#allocation7], 512, 512, 32
    $region13: #{tpu_custom_call.1} parent=1 // pred_fallthru
      _
    // Predicated region
    $region14: #{tpu_custom_call.1} parent=1 // pred_check
      _
    $region15: #{tpu_custom_call.1} parent=1 // pred_check_branch
      %49 = sbr.rel (0) target = $region17
    $region16: #{tpu_custom_call.1} parent=1 // pred_region
      _
    $region17: #{tpu_custom_call.1} parent=1 // pred_fallthru
      _
    // Predicated region
    $region18: #{tpu_custom_call.1} parent=1 // pred_check
      _
    $region19: #{tpu_custom_call.1} parent=1 // pred_check_branch
      %51 = sbr.rel (0) target = $region21
    $region20: #{tpu_custom_call.1} parent=1 // pred_region
      %52 = dma.done [#allocation4], 2048
    $region21: #{tpu_custom_call.1} parent=1 // pred_fallthru
      _
    // Predicated region
    $region22: #{tpu_custom_call.1} parent=1 // pred_check
      _
    $region23: #{tpu_custom_call.1} parent=1 // pred_check_branch
      %54 = sbr.rel (0) target = $region25
    $region24: #{tpu_custom_call.1} parent=1 // pred_region
      %55 = dma.done [#allocation7], 1024
    $region25: #{tpu_custom_call.1} parent=1 // pred_fallthru
      _
    // Predicated region
    $region26: #{tpu_custom_call.1} parent=1 // pred_check
      _
    $region27: #{tpu_custom_call.1} parent=1 // pred_check_branch
      %57 = sbr.rel (0) target = $region29
    $region28: #{tpu_custom_call.1} parent=1 // pred_region
      %58 = dma.done [#allocation7], 8192
    $region29: #{tpu_custom_call.1} parent=1 // pred_fallthru
      _
    %p59 = scmp.eq.s32.totalorder 0, 0
    // Predicated region
    $region30: #{tpu_custom_call.1} parent=1 // pred_check
      %p60 = pneg %p59
    $region31: #{tpu_custom_call.1} parent=1 // pred_check_branch
      %62 = sbr.rel (%p60) target = $region33
    $region32: #{tpu_custom_call.1} parent=1 // pred_region
      %63 = vst [vmem:[#allocation9] sm:$0xff] 0.0
      %64 = vst [vmem:[#allocation2] sm:$0xff] 0.0
    $region33: #{tpu_custom_call.1} parent=1 // pred_fallthru
      _
    %v65 = vld [vmem:[#allocation6] sm:$0xff]
    %v66 = vld [vmem:[#allocation6 + $0x8] sm:$0xff]
    %v67 = vld [vmem:[#allocation6 + $0x10] sm:$0xff]
    %v68 = vld [vmem:[#allocation6 + $0x18] sm:$0xff]
    %v69 = vld [vmem:[#allocation6 + $0x20] sm:$0xff]
    %v70 = vld [vmem:[#allocation6 + $0x28] sm:$0xff]
    %v71 = vld [vmem:[#allocation6 + $0x30] sm:$0xff]
    %v72 = vld [vmem:[#allocation6 + $0x38] sm:$0xff]
    %v73 = vld [vmem:[#allocation8] sm:$0xff]
    %v74 = vld [vmem:[#allocation8 + $0x8] sm:$0xff]
    %v75 = vld [vmem:[#allocation8 + $0x10] sm:$0xff]
    %v76 = vld [vmem:[#allocation8 + $0x18] sm:$0xff]
    %v77 = vld [vmem:[#allocation8 + $0x20] sm:$0xff]
    %v78 = vld [vmem:[#allocation8 + $0x28] sm:$0xff]
    %v79 = vld [vmem:[#allocation8 + $0x30] sm:$0xff]
    %v80 = vld [vmem:[#allocation8 + $0x38] sm:$0xff]
    %v81 = vld [vmem:[#allocation8 + $0x40] sm:$0xff]
    %v82 = vld [vmem:[#allocation8 + $0x48] sm:$0xff]
    %v83 = vld [vmem:[#allocation8 + $0x50] sm:$0xff]
    %v84 = vld [vmem:[#allocation8 + $0x58] sm:$0xff]
    %v85 = vld [vmem:[#allocation8 + $0x60] sm:$0xff]
    %v86 = vld [vmem:[#allocation8 + $0x68] sm:$0xff]
    %v87 = vld [vmem:[#allocation8 + $0x70] sm:$0xff]
    %v88 = vld [vmem:[#allocation8 + $0x78] sm:$0xff]
    %v89 = vld [vmem:[#allocation8 + $0x80] sm:$0xff]
    %v90 = vld [vmem:[#allocation8 + $0x88] sm:$0xff]
    %v91 = vld [vmem:[#allocation8 + $0x90] sm:$0xff]
    %v92 = vld [vmem:[#allocation8 + $0x98] sm:$0xff]
    %v93 = vld [vmem:[#allocation8 + $0xa0] sm:$0xff]
    %v94 = vld [vmem:[#allocation8 + $0xa8] sm:$0xff]
    %v95 = vld [vmem:[#allocation8 + $0xb0] sm:$0xff]
    %v96 = vld [vmem:[#allocation8 + $0xb8] sm:$0xff]
    %v97 = vld [vmem:[#allocation8 + $0xc0] sm:$0xff]
    %v98 = vld [vmem:[#allocation8 + $0xc8] sm:$0xff]
    %v99 = vld [vmem:[#allocation8 + $0xd0] sm:$0xff]
    %v100 = vld [vmem:[#allocation8 + $0xd8] sm:$0xff]
    %v101 = vld [vmem:[#allocation8 + $0xe0] sm:$0xff]
    %v102 = vld [vmem:[#allocation8 + $0xe8] sm:$0xff]
    %v103 = vld [vmem:[#allocation8 + $0xf0] sm:$0xff]
    %v104 = vld [vmem:[#allocation8 + $0xf8] sm:$0xff]
    %v105 = vld [vmem:[#allocation8 + $0x100] sm:$0xff]
    %v106 = vld [vmem:[#allocation8 + $0x108] sm:$0xff]
    %v107 = vld [vmem:[#allocation8 + $0x110] sm:$0xff]
    %v108 = vld [vmem:[#allocation8 + $0x118] sm:$0xff]
    %v109 = vld [vmem:[#allocation8 + $0x120] sm:$0xff]
    %v110 = vld [vmem:[#allocation8 + $0x128] sm:$0xff]
    %v111 = vld [vmem:[#allocation8 + $0x130] sm:$0xff]
    %v112 = vld [vmem:[#allocation8 + $0x138] sm:$0xff]
    %v113 = vld [vmem:[#allocation8 + $0x140] sm:$0xff]
    %v114 = vld [vmem:[#allocation8 + $0x148] sm:$0xff]
    %v115 = vld [vmem:[#allocation8 + $0x150] sm:$0xff]
    %v116 = vld [vmem:[#allocation8 + $0x158] sm:$0xff]
    %v117 = vld [vmem:[#allocation8 + $0x160] sm:$0xff]
    %v118 = vld [vmem:[#allocation8 + $0x168] sm:$0xff]
    %v119 = vld [vmem:[#allocation8 + $0x170] sm:$0xff]
    %v120 = vld [vmem:[#allocation8 + $0x178] sm:$0xff]
    %v121 = vld [vmem:[#allocation8 + $0x180] sm:$0xff]
    %v122 = vld [vmem:[#allocation8 + $0x188] sm:$0xff]
    %v123 = vld [vmem:[#allocation8 + $0x190] sm:$0xff]
    %v124 = vld [vmem:[#allocation8 + $0x198] sm:$0xff]
    %v125 = vld [vmem:[#allocation8 + $0x1a0] sm:$0xff]
    %v126 = vld [vmem:[#allocation8 + $0x1a8] sm:$0xff]
    %v127 = vld [vmem:[#allocation8 + $0x1b0] sm:$0xff]
    %v128 = vld [vmem:[#allocation8 + $0x1b8] sm:$0xff]
    %v129 = vld [vmem:[#allocation8 + $0x1c0] sm:$0xff]
    %v130 = vld [vmem:[#allocation8 + $0x1c8] sm:$0xff]
    %v131 = vld [vmem:[#allocation8 + $0x1d0] sm:$0xff]
    %v132 = vld [vmem:[#allocation8 + $0x1d8] sm:$0xff]
    %v133 = vld [vmem:[#allocation8 + $0x1e0] sm:$0xff]
    %v134 = vld [vmem:[#allocation8 + $0x1e8] sm:$0xff]
    %v135 = vld [vmem:[#allocation8 + $0x1f0] sm:$0xff]
    %v136 = vld [vmem:[#allocation8 + $0x1f8] sm:$0xff]
    %v137 = vld [vmem:[%s3] sm:$0xf]
    %v138 = vld [vmem:[#allocation9] sm:$0xff]
    %v139 = vld [vmem:[#allocation2] sm:$0xff]
    %p140 = scmp.ne.s32.totalorder 0, 0
    %v141 = vld [vmem:[#allocation3] sm:$0xff]
    %142 = vmatprep.subr.mxu0 %v134
    %143 = vmatpush1.msra.mxu0 %v133
    %144 = vmatprep.subr.mxu0 %v130
    %145 = vmatpush1.msra.mxu0 %v129
    %146 = vmatprep.subr.mxu0 %v126
    %147 = vmatpush1.msra.mxu0 %v125
    %148 = vmatprep.subr.mxu0 %v122
    %149 = vmatpush1.msra.mxu0 %v121
    %150 = vmatprep.subr.mxu0 %v118
    %151 = vmatpush1.msra.mxu0 %v117
    %152 = vmatprep.subr.mxu0 %v114
    %153 = vmatpush1.msra.mxu0 %v113
    %154 = vmatprep.subr.mxu0 %v110
    %155 = vmatpush1.msra.mxu0 %v109
    %156 = vmatprep.subr.mxu0 %v106
    %157 = vmatpush1.msra.mxu0 %v105
    %158 = vmatprep.subr.mxu0 %v102
    %159 = vmatpush1.msra.mxu0 %v101
    %160 = vmatprep.subr.mxu0 %v98
    %161 = vmatpush1.msra.mxu0 %v97
    %162 = vmatprep.subr.mxu0 %v94
    %163 = vmatpush1.msra.mxu0 %v93
    %164 = vmatprep.subr.mxu0 %v90
    %165 = vmatpush1.msra.mxu0 %v89
    %166 = vmatprep.subr.mxu0 %v86
    %167 = vmatpush1.msra.mxu0 %v85
    %168 = vmatprep.subr.mxu0 %v82
    %169 = vmatpush1.msra.mxu0 %v81
    %170 = vmatprep.subr.mxu0 %v78
    %171 = vmatpush1.msra.mxu0 %v77
    %172 = vmatprep.subr.mxu0 %v74
    %173 = vmatpush1.msra.mxu0 %v73
    %174 = vmatprep.subr.mxu0 0.0
    %175 = vmatpush2.msra.mxu0 0.0
    %176 = vmatprep.subr.mxu0 0.0
    %177 = vmatpush2.msra.mxu0 0.0
    %178 = vmatprep.subr.mxu0 0.0
    %179 = vmatpush2.msra.mxu0 0.0
    %180 = vmatprep.subr.mxu0 0.0
    %181 = vmatpush2.msra.mxu0 0.0
    %182 = vmatprep.subr.mxu0 0.0
    %183 = vmatpush2.msra.mxu0 0.0
    %184 = vmatprep.subr.mxu0 0.0
    %185 = vmatpush2.msra.mxu0 0.0
    %186 = vmatprep.subr.mxu0 0.0
    %187 = vmatpush2.msra.mxu0 0.0
    %188 = vmatprep.subr.mxu0 0.0
    %189 = vmatpush2.msra.mxu0 0.0
    %190 = vmatprep.subr.mxu0 0.0
    %191 = vmatpush2.msra.mxu0 0.0
    %192 = vmatprep.subr.mxu0 0.0
    %193 = vmatpush2.msra.mxu0 0.0
    %194 = vmatprep.subr.mxu0 0.0
    %195 = vmatpush2.msra.mxu0 0.0
    %196 = vmatprep.subr.mxu0 0.0
    %197 = vmatpush2.msra.mxu0 0.0
    %198 = vmatprep.subr.mxu0 0.0
    %199 = vmatpush2.msra.mxu0 0.0
    %200 = vmatprep.subr.mxu0 0.0
    %201 = vmatpush2.msra.mxu0 0.0
    %202 = vmatprep.subr.mxu0 0.0
    %203 = vmatpush2.msra.mxu0 0.0
    %204 = vmatprep.subr.mxu0 0.0
    %205 = vmatpush2.msra.mxu0 0.0
    %206 = vmatprep.mubr.f32.mxu0 0.0
    %207 = vmatmul.mubr.f32.gmra.mxu0 %v138
    %v208 = vpop.f32.mrf.mxu0
    %v209 = vadd.f32 0.0, %v208
    %v210 = vpop.f32.mrf.mxu0
    %v211 = vadd.f32 0.0, %v210
    %212 = vdwg.mxu0
    %213 = vmatprep.subr.mxu0 %v136
    %214 = vmatpush1.msra.mxu0 %v135
    %215 = vmatprep.subr.mxu0 %v132
    %216 = vmatpush1.msra.mxu0 %v131
    %217 = vmatprep.subr.mxu0 %v128
    %218 = vmatpush1.msra.mxu0 %v127
    %219 = vmatprep.subr.mxu0 %v124
    %220 = vmatpush1.msra.mxu0 %v123
    %221 = vmatprep.subr.mxu0 %v120
    %222 = vmatpush1.msra.mxu0 %v119
    %223 = vmatprep.subr.mxu0 %v116
    %224 = vmatpush1.msra.mxu0 %v115
    %225 = vmatprep.subr.mxu0 %v112
    %226 = vmatpush1.msra.mxu0 %v111
    %227 = vmatprep.subr.mxu0 %v108
    %228 = vmatpush1.msra.mxu0 %v107
    %229 = vmatprep.subr.mxu0 %v104
    %230 = vmatpush1.msra.mxu0 %v103
    %231 = vmatprep.subr.mxu0 %v100
    %232 = vmatpush1.msra.mxu0 %v99
    %233 = vmatprep.subr.mxu0 %v96
    %234 = vmatpush1.msra.mxu0 %v95
    %235 = vmatprep.subr.mxu0 %v92
    %236 = vmatpush1.msra.mxu0 %v91
    %237 = vmatprep.subr.mxu0 %v88
    %238 = vmatpush1.msra.mxu0 %v87
    %239 = vmatprep.subr.mxu0 %v84
    %240 = vmatpush1.msra.mxu0 %v83
    %241 = vmatprep.subr.mxu0 %v80
    %242 = vmatpush1.msra.mxu0 %v79
    %243 = vmatprep.subr.mxu0 %v76
    %244 = vmatpush1.msra.mxu0 %v75
    %245 = vmatprep.subr.mxu0 0.0
    %246 = vmatpush2.msra.mxu0 0.0
    %247 = vmatprep.subr.mxu0 0.0
    %248 = vmatpush2.msra.mxu0 0.0
    %249 = vmatprep.subr.mxu0 0.0
    %250 = vmatpush2.msra.mxu0 0.0
    %251 = vmatprep.subr.mxu0 0.0
    %252 = vmatpush2.msra.mxu0 0.0
    %253 = vmatprep.subr.mxu0 0.0
    %254 = vmatpush2.msra.mxu0 0.0
    %255 = vmatprep.subr.mxu0 0.0
    %256 = vmatpush2.msra.mxu0 0.0
    %257 = vmatprep.subr.mxu0 0.0
    %258 = vmatpush2.msra.mxu0 0.0
    %259 = vmatprep.subr.mxu0 0.0
    %260 = vmatpush2.msra.mxu0 0.0
    %261 = vmatprep.subr.mxu0 0.0
    %262 = vmatpush2.msra.mxu0 0.0
    %263 = vmatprep.subr.mxu0 0.0
    %264 = vmatpush2.msra.mxu0 0.0
    %265 = vmatprep.subr.mxu0 0.0
    %266 = vmatpush2.msra.mxu0 0.0
    %267 = vmatprep.subr.mxu0 0.0
    %268 = vmatpush2.msra.mxu0 0.0
    %269 = vmatprep.subr.mxu0 0.0
    %270 = vmatpush2.msra.mxu0 0.0
    %271 = vmatprep.subr.mxu0 0.0
    %272 = vmatpush2.msra.mxu0 0.0
    %273 = vmatprep.subr.mxu0 0.0
    %274 = vmatpush2.msra.mxu0 0.0
    %275 = vmatprep.subr.mxu0 0.0
    %276 = vmatpush2.msra.mxu0 0.0
    %277 = vmatprep.mubr.f32.mxu0 0.0
    %278 = vmatmul.mubr.f32.gmra.mxu0 %v138
    %v279 = vpop.f32.mrf.mxu0
    %v280 = vadd.f32 0.0, %v279
    %v281 = vpop.f32.mrf.mxu0
    %v282 = vadd.f32 0.0, %v281
    %283 = vdwg.mxu0
    %vm284 = vcmask 130048
    %v286 = vsel %vm284, %v141, 0
    %288 = vmatprep.subr.mxu0 0.0
    %289 = vmatpush1.msra.mxu0 0.0
    %290 = vmatprep.subr.mxu0 0.0
    %291 = vmatpush1.msra.mxu0 0.0
    %292 = vmatprep.subr.mxu0 0.0
    %293 = vmatpush1.msra.mxu0 0.0
    %294 = vmatprep.subr.mxu0 0.0
    %295 = vmatpush1.msra.mxu0 0.0
    %296 = vmatprep.subr.mxu0 0.0
    %297 = vmatpush1.msra.mxu0 0.0
    %298 = vmatprep.subr.mxu0 0.0
    %299 = vmatpush1.msra.mxu0 0.0
    %300 = vmatprep.subr.mxu0 0.0
    %301 = vmatpush1.msra.mxu0 0.0
    %302 = vmatprep.subr.mxu0 0.0
    %303 = vmatpush1.msra.mxu0 0.0
    %304 = vmatprep.subr.mxu0 0.0
    %305 = vmatpush1.msra.mxu0 0.0
    %306 = vmatprep.subr.mxu0 0.0
    %307 = vmatpush1.msra.mxu0 0.0
    %308 = vmatprep.subr.mxu0 0.0
    %309 = vmatpush1.msra.mxu0 0.0
    %310 = vmatprep.subr.mxu0 0.0
    %311 = vmatpush1.msra.mxu0 0.0
    %312 = vmatprep.subr.mxu0 0.0
    %313 = vmatpush1.msra.mxu0 0.0
    %314 = vmatprep.subr.mxu0 0.0
    %315 = vmatpush1.msra.mxu0 0.0
    %316 = vmatprep.subr.mxu0 %v70
    %317 = vmatpush1.msra.mxu0 %v69
    %318 = vmatprep.subr.mxu0 %v66
    %319 = vmatpush1.msra.mxu0 %v65
    %320 = vmatprep.subr.mxu0 0.0
    %321 = vmatpush2.msra.mxu0 0.0
    %322 = vmatprep.subr.mxu0 0.0
    %323 = vmatpush2.msra.mxu0 0.0
    %324 = vmatprep.subr.mxu0 0.0
    %325 = vmatpush2.msra.mxu0 0.0
    %326 = vmatprep.subr.mxu0 0.0
    %327 = vmatpush2.msra.mxu0 0.0
    %328 = vmatprep.subr.mxu0 0.0
    %329 = vmatpush2.msra.mxu0 0.0
    %330 = vmatprep.subr.mxu0 0.0
    %331 = vmatpush2.msra.mxu0 0.0
    %332 = vmatprep.subr.mxu0 0.0
    %333 = vmatpush2.msra.mxu0 0.0
    %334 = vmatprep.subr.mxu0 0.0
    %335 = vmatpush2.msra.mxu0 0.0
    %336 = vmatprep.subr.mxu0 0.0
    %337 = vmatpush2.msra.mxu0 0.0
    %338 = vmatprep.subr.mxu0 0.0
    %339 = vmatpush2.msra.mxu0 0.0
    %340 = vmatprep.subr.mxu0 0.0
    %341 = vmatpush2.msra.mxu0 0.0
    %342 = vmatprep.subr.mxu0 0.0
    %343 = vmatpush2.msra.mxu0 0.0
    %344 = vmatprep.subr.mxu0 0.0
    %345 = vmatpush2.msra.mxu0 0.0
    %346 = vmatprep.subr.mxu0 0.0
    %347 = vmatpush2.msra.mxu0 0.0
    %348 = vmatprep.subr.mxu0 0.0
    %349 = vmatpush2.msra.mxu0 0.0
    %350 = vmatprep.subr.mxu0 0.0
    %351 = vmatpush2.msra.mxu0 0.0
    %352 = vmatprep.mubr.f32.mxu0 0.0
    %353 = vmatmul.mubr.f32.gmra.mxu0 %v286
    %v354 = vpop.f32.mrf.mxu0
    %v355 = vadd.f32 %v209, %v354
    %v356 = vpop.f32.mrf.mxu0
    %v357 = vadd.f32 %v211, %v356
    %358 = vdwg.mxu0
    %359 = vmatprep.subr.mxu0 0.0
    %360 = vmatpush1.msra.mxu0 0.0
    %361 = vmatprep.subr.mxu0 0.0
    %362 = vmatpush1.msra.mxu0 0.0
    %363 = vmatprep.subr.mxu0 0.0
    %364 = vmatpush1.msra.mxu0 0.0
    %365 = vmatprep.subr.mxu0 0.0
    %366 = vmatpush1.msra.mxu0 0.0
    %367 = vmatprep.subr.mxu0 0.0
    %368 = vmatpush1.msra.mxu0 0.0
    %369 = vmatprep.subr.mxu0 0.0
    %370 = vmatpush1.msra.mxu0 0.0
    %371 = vmatprep.subr.mxu0 0.0
    %372 = vmatpush1.msra.mxu0 0.0
    %373 = vmatprep.subr.mxu0 0.0
    %374 = vmatpush1.msra.mxu0 0.0
    %375 = vmatprep.subr.mxu0 0.0
    %376 = vmatpush1.msra.mxu0 0.0
    %377 = vmatprep.subr.mxu0 0.0
    %378 = vmatpush1.msra.mxu0 0.0
    %379 = vmatprep.subr.mxu0 0.0
    %380 = vmatpush1.msra.mxu0 0.0
    %381 = vmatprep.subr.mxu0 0.0
    %382 = vmatpush1.msra.mxu0 0.0
    %383 = vmatprep.subr.mxu0 0.0
    %384 = vmatpush1.msra.mxu0 0.0
    %385 = vmatprep.subr.mxu0 0.0
    %386 = vmatpush1.msra.mxu0 0.0
    %387 = vmatprep.subr.mxu0 %v72
    %388 = vmatpush1.msra.mxu0 %v71
    %389 = vmatprep.subr.mxu0 %v68
    %390 = vmatpush1.msra.mxu0 %v67
    %391 = vmatprep.subr.mxu0 0.0
    %392 = vmatpush2.msra.mxu0 0.0
    %393 = vmatprep.subr.mxu0 0.0
    %394 = vmatpush2.msra.mxu0 0.0
    %395 = vmatprep.subr.mxu0 0.0
    %396 = vmatpush2.msra.mxu0 0.0
    %397 = vmatprep.subr.mxu0 0.0
    %398 = vmatpush2.msra.mxu0 0.0
    %399 = vmatprep.subr.mxu0 0.0
    %400 = vmatpush2.msra.mxu0 0.0
    %401 = vmatprep.subr.mxu0 0.0
    %402 = vmatpush2.msra.mxu0 0.0
    %403 = vmatprep.subr.mxu0 0.0
    %404 = vmatpush2.msra.mxu0 0.0
    %405 = vmatprep.subr.mxu0 0.0
    %406 = vmatpush2.msra.mxu0 0.0
    %407 = vmatprep.subr.mxu0 0.0
    %408 = vmatpush2.msra.mxu0 0.0
    %409 = vmatprep.subr.mxu0 0.0
    %410 = vmatpush2.msra.mxu0 0.0
    %411 = vmatprep.subr.mxu0 0.0
    %412 = vmatpush2.msra.mxu0 0.0
    %413 = vmatprep.subr.mxu0 0.0
    %414 = vmatpush2.msra.mxu0 0.0
    %415 = vmatprep.subr.mxu0 0.0
    %416 = vmatpush2.msra.mxu0 0.0
    %417 = vmatprep.subr.mxu0 0.0
    %418 = vmatpush2.msra.mxu0 0.0
    %419 = vmatprep.subr.mxu0 0.0
    %420 = vmatpush2.msra.mxu0 0.0
    %421 = vmatprep.subr.mxu0 0.0
    %422 = vmatpush2.msra.mxu0 0.0
    %423 = vmatprep.mubr.f32.mxu0 0.0
    %424 = vmatmul.mubr.f32.gmra.mxu0 %v286
    %v425 = vpop.f32.mrf.mxu0
    %v426 = vadd.f32 %v280, %v425
    %v427 = vpop.f32.mrf.mxu0
    %v428 = vadd.f32 %v282, %v427
    %429 = vdwg.mxu0
    %v431 = vlaneseq
    %v432 = vshrl.u32 %v431, 7
    %v433 = vsub.s32 0, %v432
    %v434 = vrot.slane %v137, %v433
    %v435 = vlaneseq
    %v436 = vshrl.u32 %v435, 7
    %v437 = vsub.s32 1, %v436
    %v438 = vrot.slane %v137, %v437
    %v439 = vlaneseq
    %v440 = vshrl.u32 %v439, 7
    %v441 = vsub.s32 2, %v440
    %v442 = vrot.slane %v137, %v441
    %v443 = vlaneseq
    %v444 = vshrl.u32 %v443, 7
    %v445 = vsub.s32 3, %v444
    %v446 = vrot.slane %v137, %v445
    %v451 = vadd.f32 %v355, %v434
    %v452 = vadd.f32 %v357, %v438
    %v453 = vadd.f32 %v426, %v442
    %v454 = vadd.f32 %v428, %v446
    %v455 = vmul.f32 %v451, 0.5
    %v456 = vtanh.pop %v455
    %v457 = vadd.f32 %v456, 1.0
    %v458 = vmul.f32 %v457, 0.5
    %v459 = vmul.f32 %v452, 0.5
    %v460 = vtanh.pop %v459
    %v461 = vadd.f32 %v460, 1.0
    %v462 = vmul.f32 %v461, 0.5
    %v463 = vtanh.pop %v453
    %v464 = vmul.f32 %v454, 0.5
    %v465 = vtanh.pop %v464
    %v466 = vadd.f32 %v465, 1.0
    %v467 = vmul.f32 %v466, 0.5
    %v468 = vmul.f32 %v462, %v139
    %v469 = vmul.f32 %v458, %v463
    %v470 = vadd.f32 %v468, %v469
    %v471 = vtanh.pop %v470
    %v472 = vmul.f32 %v467, %v471
    %s473 = scalar_lea.vmem [#allocation3], 8
    %v474 = vld [vmem:[%s473] sm:$0xff]
    %475 = vmatprep.subr.mxu0 %v134
    %476 = vmatpush1.msra.mxu0 %v133
    %477 = vmatprep.subr.mxu0 %v130
    %478 = vmatpush1.msra.mxu0 %v129
    %479 = vmatprep.subr.mxu0 %v126
    %480 = vmatpush1.msra.mxu0 %v125
    %481 = vmatprep.subr.mxu0 %v122
    %482 = vmatpush1.msra.mxu0 %v121
    %483 = vmatprep.subr.mxu0 %v118
    %484 = vmatpush1.msra.mxu0 %v117
    %485 = vmatprep.subr.mxu0 %v114
    %486 = vmatpush1.msra.mxu0 %v113
    %487 = vmatprep.subr.mxu0 %v110
    %488 = vmatpush1.msra.mxu0 %v109
    %489 = vmatprep.subr.mxu0 %v106
    %490 = vmatpush1.msra.mxu0 %v105
    %491 = vmatprep.subr.mxu0 %v102
    %492 = vmatpush1.msra.mxu0 %v101
    %493 = vmatprep.subr.mxu0 %v98
    %494 = vmatpush1.msra.mxu0 %v97
    %495 = vmatprep.subr.mxu0 %v94
    %496 = vmatpush1.msra.mxu0 %v93
    %497 = vmatprep.subr.mxu0 %v90
    %498 = vmatpush1.msra.mxu0 %v89
    %499 = vmatprep.subr.mxu0 %v86
    %500 = vmatpush1.msra.mxu0 %v85
    %501 = vmatprep.subr.mxu0 %v82
    %502 = vmatpush1.msra.mxu0 %v81
    %503 = vmatprep.subr.mxu0 %v78
    %504 = vmatpush1.msra.mxu0 %v77
    %505 = vmatprep.subr.mxu0 %v74
    %506 = vmatpush1.msra.mxu0 %v73
    %507 = vmatprep.subr.mxu0 0.0
    %508 = vmatpush2.msra.mxu0 0.0
    %509 = vmatprep.subr.mxu0 0.0
    %510 = vmatpush2.msra.mxu0 0.0
    %511 = vmatprep.subr.mxu0 0.0
    %512 = vmatpush2.msra.mxu0 0.0
    %513 = vmatprep.subr.mxu0 0.0
    %514 = vmatpush2.msra.mxu0 0.0
    %515 = vmatprep.subr.mxu0 0.0
    %516 = vmatpush2.msra.mxu0 0.0
    %517 = vmatprep.subr.mxu0 0.0
    %518 = vmatpush2.msra.mxu0 0.0
    %519 = vmatprep.subr.mxu0 0.0
    %520 = vmatpush2.msra.mxu0 0.0
    %521 = vmatprep.subr.mxu0 0.0
    %522 = vmatpush2.msra.mxu0 0.0
    %523 = vmatprep.subr.mxu0 0.0
    %524 = vmatpush2.msra.mxu0 0.0
    %525 = vmatprep.subr.mxu0 0.0
    %526 = vmatpush2.msra.mxu0 0.0
    %527 = vmatprep.subr.mxu0 0.0
    %528 = vmatpush2.msra.mxu0 0.0
    %529 = vmatprep.subr.mxu0 0.0
    %530 = vmatpush2.msra.mxu0 0.0
    %531 = vmatprep.subr.mxu0 0.0
    %532 = vmatpush2.msra.mxu0 0.0
    %533 = vmatprep.subr.mxu0 0.0
    %534 = vmatpush2.msra.mxu0 0.0
    %535 = vmatprep.subr.mxu0 0.0
    %536 = vmatpush2.msra.mxu0 0.0
    %537 = vmatprep.subr.mxu0 0.0
    %538 = vmatpush2.msra.mxu0 0.0
    %539 = vmatprep.mubr.f32.mxu0 0.0
    %540 = vmatmul.mubr.f32.gmra.mxu0 %v472
    %v541 = vpop.f32.mrf.mxu0
    %v542 = vadd.f32 0.0, %v541
    %v543 = vpop.f32.mrf.mxu0
    %v544 = vadd.f32 0.0, %v543
    %545 = vdwg.mxu0
    %546 = vmatprep.subr.mxu0 %v136
    %547 = vmatpush1.msra.mxu0 %v135
    %548 = vmatprep.subr.mxu0 %v132
    %549 = vmatpush1.msra.mxu0 %v131
    %550 = vmatprep.subr.mxu0 %v128
    %551 = vmatpush1.msra.mxu0 %v127
    %552 = vmatprep.subr.mxu0 %v124
    %553 = vmatpush1.msra.mxu0 %v123
    %554 = vmatprep.subr.mxu0 %v120
    %555 = vmatpush1.msra.mxu0 %v119
    %556 = vmatprep.subr.mxu0 %v116
    %557 = vmatpush1.msra.mxu0 %v115
    %558 = vmatprep.subr.mxu0 %v112
    %559 = vmatpush1.msra.mxu0 %v111
    %560 = vmatprep.subr.mxu0 %v108
    %561 = vmatpush1.msra.mxu0 %v107
    %562 = vmatprep.subr.mxu0 %v104
    %563 = vmatpush1.msra.mxu0 %v103
    %564 = vmatprep.subr.mxu0 %v100
    %565 = vmatpush1.msra.mxu0 %v99
    %566 = vmatprep.subr.mxu0 %v96
    %567 = vmatpush1.msra.mxu0 %v95
    %568 = vmatprep.subr.mxu0 %v92
    %569 = vmatpush1.msra.mxu0 %v91
    %570 = vmatprep.subr.mxu0 %v88
    %571 = vmatpush1.msra.mxu0 %v87
    %572 = vmatprep.subr.mxu0 %v84
    %573 = vmatpush1.msra.mxu0 %v83
    %574 = vmatprep.subr.mxu0 %v80
    %575 = vmatpush1.msra.mxu0 %v79
    %576 = vmatprep.subr.mxu0 %v76
    %577 = vmatpush1.msra.mxu0 %v75
    %578 = vmatprep.subr.mxu0 0.0
    %579 = vmatpush2.msra.mxu0 0.0
    %580 = vmatprep.subr.mxu0 0.0
    %581 = vmatpush2.msra.mxu0 0.0
    %582 = vmatprep.subr.mxu0 0.0
    %583 = vmatpush2.msra.mxu0 0.0
    %584 = vmatprep.subr.mxu0 0.0
    %585 = vmatpush2.msra.mxu0 0.0
    %586 = vmatprep.subr.mxu0 0.0
    %587 = vmatpush2.msra.mxu0 0.0
    %588 = vmatprep.subr.mxu0 0.0
    %589 = vmatpush2.msra.mxu0 0.0
    %590 = vmatprep.subr.mxu0 0.0
    %591 = vmatpush2.msra.mxu0 0.0
    %592 = vmatprep.subr.mxu0 0.0
    %593 = vmatpush2.msra.mxu0 0.0
    %594 = vmatprep.subr.mxu0 0.0
    %595 = vmatpush2.msra.mxu0 0.0
    %596 = vmatprep.subr.mxu0 0.0
    %597 = vmatpush2.msra.mxu0 0.0
    %598 = vmatprep.subr.mxu0 0.0
    %599 = vmatpush2.msra.mxu0 0.0
    %600 = vmatprep.subr.mxu0 0.0
    %601 = vmatpush2.msra.mxu0 0.0
    %602 = vmatprep.subr.mxu0 0.0
    %603 = vmatpush2.msra.mxu0 0.0
    %604 = vmatprep.subr.mxu0 0.0
    %605 = vmatpush2.msra.mxu0 0.0
    %606 = vmatprep.subr.mxu0 0.0
    %607 = vmatpush2.msra.mxu0 0.0
    %608 = vmatprep.subr.mxu0 0.0
    %609 = vmatpush2.msra.mxu0 0.0
    %610 = vmatprep.mubr.f32.mxu0 0.0
    %611 = vmatmul.mubr.f32.gmra.mxu0 %v472
    %v612 = vpop.f32.mrf.mxu0
    %v613 = vadd.f32 0.0, %v612
    %v614 = vpop.f32.mrf.mxu0
    %v615 = vadd.f32 0.0, %v614
    %616 = vdwg.mxu0
    %v618 = vsel %vm284, %v474, 0
    %620 = vmatprep.subr.mxu0 0.0
    %621 = vmatpush1.msra.mxu0 0.0
    %622 = vmatprep.subr.mxu0 0.0
    %623 = vmatpush1.msra.mxu0 0.0
    %624 = vmatprep.subr.mxu0 0.0
    %625 = vmatpush1.msra.mxu0 0.0
    %626 = vmatprep.subr.mxu0 0.0
    %627 = vmatpush1.msra.mxu0 0.0
    %628 = vmatprep.subr.mxu0 0.0
    %629 = vmatpush1.msra.mxu0 0.0
    %630 = vmatprep.subr.mxu0 0.0
    %631 = vmatpush1.msra.mxu0 0.0
    %632 = vmatprep.subr.mxu0 0.0
    %633 = vmatpush1.msra.mxu0 0.0
    %634 = vmatprep.subr.mxu0 0.0
    %635 = vmatpush1.msra.mxu0 0.0
    %636 = vmatprep.subr.mxu0 0.0
    %637 = vmatpush1.msra.mxu0 0.0
    %638 = vmatprep.subr.mxu0 0.0
    %639 = vmatpush1.msra.mxu0 0.0
    %640 = vmatprep.subr.mxu0 0.0
    %641 = vmatpush1.msra.mxu0 0.0
    %642 = vmatprep.subr.mxu0 0.0
    %643 = vmatpush1.msra.mxu0 0.0
    %644 = vmatprep.subr.mxu0 0.0
    %645 = vmatpush1.msra.mxu0 0.0
    %646 = vmatprep.subr.mxu0 0.0
    %647 = vmatpush1.msra.mxu0 0.0
    %648 = vmatprep.subr.mxu0 %v70
    %649 = vmatpush1.msra.mxu0 %v69
    %650 = vmatprep.subr.mxu0 %v66
    %651 = vmatpush1.msra.mxu0 %v65
    %652 = vmatprep.subr.mxu0 0.0
    %653 = vmatpush2.msra.mxu0 0.0
    %654 = vmatprep.subr.mxu0 0.0
    %655 = vmatpush2.msra.mxu0 0.0
    %656 = vmatprep.subr.mxu0 0.0
    %657 = vmatpush2.msra.mxu0 0.0
    %658 = vmatprep.subr.mxu0 0.0
    %659 = vmatpush2.msra.mxu0 0.0
    %660 = vmatprep.subr.mxu0 0.0
    %661 = vmatpush2.msra.mxu0 0.0
    %662 = vmatprep.subr.mxu0 0.0
    %663 = vmatpush2.msra.mxu0 0.0
    %664 = vmatprep.subr.mxu0 0.0
    %665 = vmatpush2.msra.mxu0 0.0
    %666 = vmatprep.subr.mxu0 0.0
    %667 = vmatpush2.msra.mxu0 0.0
    %668 = vmatprep.subr.mxu0 0.0
    %669 = vmatpush2.msra.mxu0 0.0
    %670 = vmatprep.subr.mxu0 0.0
    %671 = vmatpush2.msra.mxu0 0.0
    %672 = vmatprep.subr.mxu0 0.0
    %673 = vmatpush2.msra.mxu0 0.0
    %674 = vmatprep.subr.mxu0 0.0
    %675 = vmatpush2.msra.mxu0 0.0
    %676 = vmatprep.subr.mxu0 0.0
    %677 = vmatpush2.msra.mxu0 0.0
    %678 = vmatprep.subr.mxu0 0.0
    %679 = vmatpush2.msra.mxu0 0.0
    %680 = vmatprep.subr.mxu0 0.0
    %681 = vmatpush2.msra.mxu0 0.0
    %682 = vmatprep.subr.mxu0 0.0
    %683 = vmatpush2.msra.mxu0 0.0
    %684 = vmatprep.mubr.f32.mxu0 0.0
    %685 = vmatmul.mubr.f32.gmra.mxu0 %v618
    %v686 = vpop.f32.mrf.mxu0
    %v687 = vadd.f32 %v542, %v686
    %v688 = vpop.f32.mrf.mxu0
    %v689 = vadd.f32 %v544, %v688
    %690 = vdwg.mxu0
    %691 = vmatprep.subr.mxu0 0.0
    %692 = vmatpush1.msra.mxu0 0.0
    %693 = vmatprep.subr.mxu0 0.0
    %694 = vmatpush1.msra.mxu0 0.0
    %695 = vmatprep.subr.mxu0 0.0
    %696 = vmatpush1.msra.mxu0 0.0
    %697 = vmatprep.subr.mxu0 0.0
    %698 = vmatpush1.msra.mxu0 0.0
    %699 = vmatprep.subr.mxu0 0.0
    %700 = vmatpush1.msra.mxu0 0.0
    %701 = vmatprep.subr.mxu0 0.0
    %702 = vmatpush1.msra.mxu0 0.0
    %703 = vmatprep.subr.mxu0 0.0
    %704 = vmatpush1.msra.mxu0 0.0
    %705 = vmatprep.subr.mxu0 0.0
    %706 = vmatpush1.msra.mxu0 0.0
    %707 = vmatprep.subr.mxu0 0.0
    %708 = vmatpush1.msra.mxu0 0.0
    %709 = vmatprep.subr.mxu0 0.0
    %710 = vmatpush1.msra.mxu0 0.0
    %711 = vmatprep.subr.mxu0 0.0
    %712 = vmatpush1.msra.mxu0 0.0
    %713 = vmatprep.subr.mxu0 0.0
    %714 = vmatpush1.msra.mxu0 0.0
    %715 = vmatprep.subr.mxu0 0.0
    %716 = vmatpush1.msra.mxu0 0.0
    %717 = vmatprep.subr.mxu0 0.0
    %718 = vmatpush1.msra.mxu0 0.0
    %719 = vmatprep.subr.mxu0 %v72
    %720 = vmatpush1.msra.mxu0 %v71
    %721 = vmatprep.subr.mxu0 %v68
    %722 = vmatpush1.msra.mxu0 %v67
    %723 = vmatprep.subr.mxu0 0.0
    %724 = vmatpush2.msra.mxu0 0.0
    %725 = vmatprep.subr.mxu0 0.0
    %726 = vmatpush2.msra.mxu0 0.0
    %727 = vmatprep.subr.mxu0 0.0
    %728 = vmatpush2.msra.mxu0 0.0
    %729 = vmatprep.subr.mxu0 0.0
    %730 = vmatpush2.msra.mxu0 0.0
    %731 = vmatprep.subr.mxu0 0.0
    %732 = vmatpush2.msra.mxu0 0.0
    %733 = vmatprep.subr.mxu0 0.0
    %734 = vmatpush2.msra.mxu0 0.0
    %735 = vmatprep.subr.mxu0 0.0
    %736 = vmatpush2.msra.mxu0 0.0
    %737 = vmatprep.subr.mxu0 0.0
    %738 = vmatpush2.msra.mxu0 0.0
    %739 = vmatprep.subr.mxu0 0.0
    %740 = vmatpush2.msra.mxu0 0.0
    %741 = vmatprep.subr.mxu0 0.0
    %742 = vmatpush2.msra.mxu0 0.0
    %743 = vmatprep.subr.mxu0 0.0
    %744 = vmatpush2.msra.mxu0 0.0
    %745 = vmatprep.subr.mxu0 0.0
    %746 = vmatpush2.msra.mxu0 0.0
    %747 = vmatprep.subr.mxu0 0.0
    %748 = vmatpush2.msra.mxu0 0.0
    %749 = vmatprep.subr.mxu0 0.0
    %750 = vmatpush2.msra.mxu0 0.0
    %751 = vmatprep.subr.mxu0 0.0
    %752 = vmatpush2.msra.mxu0 0.0
    %753 = vmatprep.subr.mxu0 0.0
    %754 = vmatpush2.msra.mxu0 0.0
    %755 = vmatprep.mubr.f32.mxu0 0.0
    %756 = vmatmul.mubr.f32.gmra.mxu0 %v618
    %v757 = vpop.f32.mrf.mxu0
    %v758 = vadd.f32 %v613, %v757
    %v759 = vpop.f32.mrf.mxu0
    %v760 = vadd.f32 %v615, %v759
    %761 = vdwg.mxu0
    %v762 = vadd.f32 %v687, %v434
    %v763 = vadd.f32 %v689, %v438
    %v764 = vadd.f32 %v758, %v442
    %v765 = vadd.f32 %v760, %v446
    %v766 = vmul.f32 %v762, 0.5
    %v767 = vtanh.pop %v766
    %v768 = vadd.f32 %v767, 1.0
    %v769 = vmul.f32 %v768, 0.5
    %v770 = vmul.f32 %v763, 0.5
    %v771 = vtanh.pop %v770
    %v772 = vadd.f32 %v771, 1.0
    %v773 = vmul.f32 %v772, 0.5
    %v774 = vtanh.pop %v764
    %v775 = vmul.f32 %v765, 0.5
    %v776 = vtanh.pop %v775
    %v777 = vadd.f32 %v776, 1.0
    %v778 = vmul.f32 %v777, 0.5
    %v779 = vmul.f32 %v773, %v470
    %v780 = vmul.f32 %v769, %v774
    %v781 = vadd.f32 %v779, %v780
    %v782 = vtanh.pop %v781
    %v783 = vmul.f32 %v778, %v782
    %s784 = scalar_lea.vmem [#allocation3], 16
    %v785 = vld [vmem:[%s784] sm:$0xff]
    %786 = vmatprep.subr.mxu0 %v134
    %787 = vmatpush1.msra.mxu0 %v133
    %788 = vmatprep.subr.mxu0 %v130
    %789 = vmatpush1.msra.mxu0 %v129
    %790 = vmatprep.subr.mxu0 %v126
    %791 = vmatpush1.msra.mxu0 %v125
    %792 = vmatprep.subr.mxu0 %v122
    %793 = vmatpush1.msra.mxu0 %v121
    %794 = vmatprep.subr.mxu0 %v118
    %795 = vmatpush1.msra.mxu0 %v117
    %796 = vmatprep.subr.mxu0 %v114
    %797 = vmatpush1.msra.mxu0 %v113
    %798 = vmatprep.subr.mxu0 %v110
    %799 = vmatpush1.msra.mxu0 %v109
    %800 = vmatprep.subr.mxu0 %v106
    %801 = vmatpush1.msra.mxu0 %v105
    %802 = vmatprep.subr.mxu0 %v102
    %803 = vmatpush1.msra.mxu0 %v101
    %804 = vmatprep.subr.mxu0 %v98
    %805 = vmatpush1.msra.mxu0 %v97
    %806 = vmatprep.subr.mxu0 %v94
    %807 = vmatpush1.msra.mxu0 %v93
    %808 = vmatprep.subr.mxu0 %v90
    %809 = vmatpush1.msra.mxu0 %v89
    %810 = vmatprep.subr.mxu0 %v86
    %811 = vmatpush1.msra.mxu0 %v85
    %812 = vmatprep.subr.mxu0 %v82
    %813 = vmatpush1.msra.mxu0 %v81
    %814 = vmatprep.subr.mxu0 %v78
    %815 = vmatpush1.msra.mxu0 %v77
    %816 = vmatprep.subr.mxu0 %v74
    %817 = vmatpush1.msra.mxu0 %v73
    %818 = vmatprep.subr.mxu0 0.0
    %819 = vmatpush2.msra.mxu0 0.0
    %820 = vmatprep.subr.mxu0 0.0
    %821 = vmatpush2.msra.mxu0 0.0
    %822 = vmatprep.subr.mxu0 0.0
    %823 = vmatpush2.msra.mxu0 0.0
    %824 = vmatprep.subr.mxu0 0.0
    %825 = vmatpush2.msra.mxu0 0.0
    %826 = vmatprep.subr.mxu0 0.0
    %827 = vmatpush2.msra.mxu0 0.0
    %828 = vmatprep.subr.mxu0 0.0
    %829 = vmatpush2.msra.mxu0 0.0
    %830 = vmatprep.subr.mxu0 0.0
    %831 = vmatpush2.msra.mxu0 0.0
    %832 = vmatprep.subr.mxu0 0.0
    %833 = vmatpush2.msra.mxu0 0.0
    %834 = vmatprep.subr.mxu0 0.0
    %835 = vmatpush2.msra.mxu0 0.0
    %836 = vmatprep.subr.mxu0 0.0
    %837 = vmatpush2.msra.mxu0 0.0
    %838 = vmatprep.subr.mxu0 0.0
    %839 = vmatpush2.msra.mxu0 0.0
    %840 = vmatprep.subr.mxu0 0.0
    %841 = vmatpush2.msra.mxu0 0.0
    %842 = vmatprep.subr.mxu0 0.0
    %843 = vmatpush2.msra.mxu0 0.0
    %844 = vmatprep.subr.mxu0 0.0
    %845 = vmatpush2.msra.mxu0 0.0
    %846 = vmatprep.subr.mxu0 0.0
    %847 = vmatpush2.msra.mxu0 0.0
    %848 = vmatprep.subr.mxu0 0.0
    %849 = vmatpush2.msra.mxu0 0.0
    %850 = vmatprep.mubr.f32.mxu0 0.0
    %851 = vmatmul.mubr.f32.gmra.mxu0 %v783
    %v852 = vpop.f32.mrf.mxu0
    %v853 = vadd.f32 0.0, %v852
    %v854 = vpop.f32.mrf.mxu0
    %v855 = vadd.f32 0.0, %v854
    %856 = vdwg.mxu0
    %857 = vmatprep.subr.mxu0 %v136
    %858 = vmatpush1.msra.mxu0 %v135
    %859 = vmatprep.subr.mxu0 %v132
    %860 = vmatpush1.msra.mxu0 %v131
    %861 = vmatprep.subr.mxu0 %v128
    %862 = vmatpush1.msra.mxu0 %v127
    %863 = vmatprep.subr.mxu0 %v124
    %864 = vmatpush1.msra.mxu0 %v123
    %865 = vmatprep.subr.mxu0 %v120
    %866 = vmatpush1.msra.mxu0 %v119
    %867 = vmatprep.subr.mxu0 %v116
    %868 = vmatpush1.msra.mxu0 %v115
    %869 = vmatprep.subr.mxu0 %v112
    %870 = vmatpush1.msra.mxu0 %v111
    %871 = vmatprep.subr.mxu0 %v108
    %872 = vmatpush1.msra.mxu0 %v107
    %873 = vmatprep.subr.mxu0 %v104
    %874 = vmatpush1.msra.mxu0 %v103
    %875 = vmatprep.subr.mxu0 %v100
    %876 = vmatpush1.msra.mxu0 %v99
    %877 = vmatprep.subr.mxu0 %v96
    %878 = vmatpush1.msra.mxu0 %v95
    %879 = vmatprep.subr.mxu0 %v92
    %880 = vmatpush1.msra.mxu0 %v91
    %881 = vmatprep.subr.mxu0 %v88
    %882 = vmatpush1.msra.mxu0 %v87
    %883 = vmatprep.subr.mxu0 %v84
    %884 = vmatpush1.msra.mxu0 %v83
    %885 = vmatprep.subr.mxu0 %v80
    %886 = vmatpush1.msra.mxu0 %v79
    %887 = vmatprep.subr.mxu0 %v76
    %888 = vmatpush1.msra.mxu0 %v75
    %889 = vmatprep.subr.mxu0 0.0
    %890 = vmatpush2.msra.mxu0 0.0
    %891 = vmatprep.subr.mxu0 0.0
    %892 = vmatpush2.msra.mxu0 0.0
    %893 = vmatprep.subr.mxu0 0.0
    %894 = vmatpush2.msra.mxu0 0.0
    %895 = vmatprep.subr.mxu0 0.0
    %896 = vmatpush2.msra.mxu0 0.0
    %897 = vmatprep.subr.mxu0 0.0
    %898 = vmatpush2.msra.mxu0 0.0
    %899 = vmatprep.subr.mxu0 0.0
    %900 = vmatpush2.msra.mxu0 0.0
    %901 = vmatprep.subr.mxu0 0.0
    %902 = vmatpush2.msra.mxu0 0.0
    %903 = vmatprep.subr.mxu0 0.0
    %904 = vmatpush2.msra.mxu0 0.0
    %905 = vmatprep.subr.mxu0 0.0
    %906 = vmatpush2.msra.mxu0 0.0
    %907 = vmatprep.subr.mxu0 0.0
    %908 = vmatpush2.msra.mxu0 0.0
    %909 = vmatprep.subr.mxu0 0.0
    %910 = vmatpush2.msra.mxu0 0.0
    %911 = vmatprep.subr.mxu0 0.0
    %912 = vmatpush2.msra.mxu0 0.0
    %913 = vmatprep.subr.mxu0 0.0
    %914 = vmatpush2.msra.mxu0 0.0
    %915 = vmatprep.subr.mxu0 0.0
    %916 = vmatpush2.msra.mxu0 0.0
    %917 = vmatprep.subr.mxu0 0.0
    %918 = vmatpush2.msra.mxu0 0.0
    %919 = vmatprep.subr.mxu0 0.0
    %920 = vmatpush2.msra.mxu0 0.0
    %921 = vmatprep.mubr.f32.mxu0 0.0
    %922 = vmatmul.mubr.f32.gmra.mxu0 %v783
    %v923 = vpop.f32.mrf.mxu0
    %v924 = vadd.f32 0.0, %v923
    %v925 = vpop.f32.mrf.mxu0
    %v926 = vadd.f32 0.0, %v925
    %927 = vdwg.mxu0
    %v929 = vsel %vm284, %v785, 0
    %931 = vmatprep.subr.mxu0 0.0
    %932 = vmatpush1.msra.mxu0 0.0
    %933 = vmatprep.subr.mxu0 0.0
    %934 = vmatpush1.msra.mxu0 0.0
    %935 = vmatprep.subr.mxu0 0.0
    %936 = vmatpush1.msra.mxu0 0.0
    %937 = vmatprep.subr.mxu0 0.0
    %938 = vmatpush1.msra.mxu0 0.0
    %939 = vmatprep.subr.mxu0 0.0
    %940 = vmatpush1.msra.mxu0 0.0
    %941 = vmatprep.subr.mxu0 0.0
    %942 = vmatpush1.msra.mxu0 0.0
    %943 = vmatprep.subr.mxu0 0.0
    %944 = vmatpush1.msra.mxu0 0.0
    %945 = vmatprep.subr.mxu0 0.0
    %946 = vmatpush1.msra.mxu0 0.0
    %947 = vmatprep.subr.mxu0 0.0
    %948 = vmatpush1.msra.mxu0 0.0
    %949 = vmatprep.subr.mxu0 0.0
    %950 = vmatpush1.msra.mxu0 0.0
    %951 = vmatprep.subr.mxu0 0.0
    %952 = vmatpush1.msra.mxu0 0.0
    %953 = vmatprep.subr.mxu0 0.0
    %954 = vmatpush1.msra.mxu0 0.0
    %955 = vmatprep.subr.mxu0 0.0
    %956 = vmatpush1.msra.mxu0 0.0
    %957 = vmatprep.subr.mxu0 0.0
    %958 = vmatpush1.msra.mxu0 0.0
    %959 = vmatprep.subr.mxu0 %v70
    %960 = vmatpush1.msra.mxu0 %v69
    %961 = vmatprep.subr.mxu0 %v66
    %962 = vmatpush1.msra.mxu0 %v65
    %963 = vmatprep.subr.mxu0 0.0
    %964 = vmatpush2.msra.mxu0 0.0
    %965 = vmatprep.subr.mxu0 0.0
    %966 = vmatpush2.msra.mxu0 0.0
    %967 = vmatprep.subr.mxu0 0.0
    %968 = vmatpush2.msra.mxu0 0.0
    %969 = vmatprep.subr.mxu0 0.0
    %970 = vmatpush2.msra.mxu0 0.0
    %971 = vmatprep.subr.mxu0 0.0
    %972 = vmatpush2.msra.mxu0 0.0
    %973 = vmatprep.subr.mxu0 0.0
    %974 = vmatpush2.msra.mxu0 0.0
    %975 = vmatprep.subr.mxu0 0.0
    %976 = vmatpush2.msra.mxu0 0.0
    %977 = vmatprep.subr.mxu0 0.0
    %978 = vmatpush2.msra.mxu0 0.0
    %979 = vmatprep.subr.mxu0 0.0
    %980 = vmatpush2.msra.mxu0 0.0
    %981 = vmatprep.subr.mxu0 0.0
    %982 = vmatpush2.msra.mxu0 0.0
    %983 = vmatprep.subr.mxu0 0.0
    %984 = vmatpush2.msra.mxu0 0.0
    %985 = vmatprep.subr.mxu0 0.0
    %986 = vmatpush2.msra.mxu0 0.0
    %987 = vmatprep.subr.mxu0 0.0
    %988 = vmatpush2.msra.mxu0 0.0
    %989 = vmatprep.subr.mxu0 0.0
    %990 = vmatpush2.msra.mxu0 0.0
    %991 = vmatprep.subr.mxu0 0.0
    %992 = vmatpush2.msra.mxu0 0.0
    %993 = vmatprep.subr.mxu0 0.0
    %994 = vmatpush2.msra.mxu0 0.0
    %995 = vmatprep.mubr.f32.mxu0 0.0
    %996 = vmatmul.mubr.f32.gmra.mxu0 %v929
    %v997 = vpop.f32.mrf.mxu0
    %v998 = vadd.f32 %v853, %v997
    %v999 = vpop.f32.mrf.mxu0
    %v1000 = vadd.f32 %v855, %v999
    %1001 = vdwg.mxu0
    %1002 = vmatprep.subr.mxu0 0.0
    %1003 = vmatpush1.msra.mxu0 0.0
    %1004 = vmatprep.subr.mxu0 0.0
    %1005 = vmatpush1.msra.mxu0 0.0
    %1006 = vmatprep.subr.mxu0 0.0
    %1007 = vmatpush1.msra.mxu0 0.0
    %1008 = vmatprep.subr.mxu0 0.0
    %1009 = vmatpush1.msra.mxu0 0.0
    %1010 = vmatprep.subr.mxu0 0.0
    %1011 = vmatpush1.msra.mxu0 0.0
    %1012 = vmatprep.subr.mxu0 0.0
    %1013 = vmatpush1.msra.mxu0 0.0
    %1014 = vmatprep.subr.mxu0 0.0
    %1015 = vmatpush1.msra.mxu0 0.0
    %1016 = vmatprep.subr.mxu0 0.0
    %1017 = vmatpush1.msra.mxu0 0.0
    %1018 = vmatprep.subr.mxu0 0.0
    %1019 = vmatpush1.msra.mxu0 0.0
    %1020 = vmatprep.subr.mxu0 0.0
    %1021 = vmatpush1.msra.mxu0 0.0
    %1022 = vmatprep.subr.mxu0 0.0
    %1023 = vmatpush1.msra.mxu0 0.0
    %1024 = vmatprep.subr.mxu0 0.0
    %1025 = vmatpush1.msra.mxu0 0.0
    %1026 = vmatprep.subr.mxu0 0.0
    %1027 = vmatpush1.msra.mxu0 0.0
    %1028 = vmatprep.subr.mxu0 0.0
    %1029 = vmatpush1.msra.mxu0 0.0
    %1030 = vmatprep.subr.mxu0 %v72
    %1031 = vmatpush1.msra.mxu0 %v71
    %1032 = vmatprep.subr.mxu0 %v68
    %1033 = vmatpush1.msra.mxu0 %v67
    %1034 = vmatprep.subr.mxu0 0.0
    %1035 = vmatpush2.msra.mxu0 0.0
    %1036 = vmatprep.subr.mxu0 0.0
    %1037 = vmatpush2.msra.mxu0 0.0
    %1038 = vmatprep.subr.mxu0 0.0
    %1039 = vmatpush2.msra.mxu0 0.0
    %1040 = vmatprep.subr.mxu0 0.0
    %1041 = vmatpush2.msra.mxu0 0.0
    %1042 = vmatprep.subr.mxu0 0.0
    %1043 = vmatpush2.msra.mxu0 0.0
    %1044 = vmatprep.subr.mxu0 0.0
    %1045 = vmatpush2.msra.mxu0 0.0
    %1046 = vmatprep.subr.mxu0 0.0
    %1047 = vmatpush2.msra.mxu0 0.0
    %1048 = vmatprep.subr.mxu0 0.0
    %1049 = vmatpush2.msra.mxu0 0.0
    %1050 = vmatprep.subr.mxu0 0.0
    %1051 = vmatpush2.msra.mxu0 0.0
    %1052 = vmatprep.subr.mxu0 0.0
    %1053 = vmatpush2.msra.mxu0 0.0
    %1054 = vmatprep.subr.mxu0 0.0
    %1055 = vmatpush2.msra.mxu0 0.0
    %1056 = vmatprep.subr.mxu0 0.0
    %1057 = vmatpush2.msra.mxu0 0.0
    %1058 = vmatprep.subr.mxu0 0.0
    %1059 = vmatpush2.msra.mxu0 0.0
    %1060 = vmatprep.subr.mxu0 0.0
    %1061 = vmatpush2.msra.mxu0 0.0
    %1062 = vmatprep.subr.mxu0 0.0
    %1063 = vmatpush2.msra.mxu0 0.0
    %1064 = vmatprep.subr.mxu0 0.0
    %1065 = vmatpush2.msra.mxu0 0.0
    %1066 = vmatprep.mubr.f32.mxu0 0.0
    %1067 = vmatmul.mubr.f32.gmra.mxu0 %v929
    %v1068 = vpop.f32.mrf.mxu0
    %v1069 = vadd.f32 %v924, %v1068
    %v1070 = vpop.f32.mrf.mxu0
    %v1071 = vadd.f32 %v926, %v1070
    %1072 = vdwg.mxu0
    %v1073 = vadd.f32 %v998, %v434
    %v1074 = vadd.f32 %v1000, %v438
    %v1075 = vadd.f32 %v1069, %v442
    %v1076 = vadd.f32 %v1071, %v446
    %v1077 = vmul.f32 %v1073, 0.5
    %v1078 = vtanh.pop %v1077
    %v1079 = vadd.f32 %v1078, 1.0
    %v1080 = vmul.f32 %v1079, 0.5
    %v1081 = vmul.f32 %v1074, 0.5
    %v1082 = vtanh.pop %v1081
    %v1083 = vadd.f32 %v1082, 1.0
    %v1084 = vmul.f32 %v1083, 0.5
    %v1085 = vtanh.pop %v1075
    %v1086 = vmul.f32 %v1076, 0.5
    %v1087 = vtanh.pop %v1086
    %v1088 = vadd.f32 %v1087, 1.0
    %v1089 = vmul.f32 %v1088, 0.5
    %v1090 = vmul.f32 %v1084, %v781
    %v1091 = vmul.f32 %v1080, %v1085
    %v1092 = vadd.f32 %v1090, %v1091
    %v1093 = vtanh.pop %v1092
    %v1094 = vmul.f32 %v1089, %v1093
    %s1095 = scalar_lea.vmem [#allocation3], 24
    %v1096 = vld [vmem:[%s1095] sm:$0xff]
    %1097 = vmatprep.subr.mxu0 %v134
    %1098 = vmatpush1.msra.mxu0 %v133
    %1099 = vmatprep.subr.mxu0 %v130
    %1100 = vmatpush1.msra.mxu0 %v129
    %1101 = vmatprep.subr.mxu0 %v126
    %1102 = vmatpush1.msra.mxu0 %v125
    %1103 = vmatprep.subr.mxu0 %v122
    %1104 = vmatpush1.msra.mxu0 %v121
    %1105 = vmatprep.subr.mxu0 %v118
    %1106 = vmatpush1.msra.mxu0 %v117
    %1107 = vmatprep.subr.mxu0 %v114
    %1108 = vmatpush1.msra.mxu0 %v113
    %1109 = vmatprep.subr.mxu0 %v110
    %1110 = vmatpush1.msra.mxu0 %v109
    %1111 = vmatprep.subr.mxu0 %v106
    %1112 = vmatpush1.msra.mxu0 %v105
    %1113 = vmatprep.subr.mxu0 %v102
    %1114 = vmatpush1.msra.mxu0 %v101
    %1115 = vmatprep.subr.mxu0 %v98
    %1116 = vmatpush1.msra.mxu0 %v97
    %1117 = vmatprep.subr.mxu0 %v94
    %1118 = vmatpush1.msra.mxu0 %v93
    %1119 = vmatprep.subr.mxu0 %v90
    %1120 = vmatpush1.msra.mxu0 %v89
    %1121 = vmatprep.subr.mxu0 %v86
    %1122 = vmatpush1.msra.mxu0 %v85
    %1123 = vmatprep.subr.mxu0 %v82
    %1124 = vmatpush1.msra.mxu0 %v81
    %1125 = vmatprep.subr.mxu0 %v78
    %1126 = vmatpush1.msra.mxu0 %v77
    %1127 = vmatprep.subr.mxu0 %v74
    %1128 = vmatpush1.msra.mxu0 %v73
    %1129 = vmatprep.subr.mxu0 0.0
    %1130 = vmatpush2.msra.mxu0 0.0
    %1131 = vmatprep.subr.mxu0 0.0
    %1132 = vmatpush2.msra.mxu0 0.0
    %1133 = vmatprep.subr.mxu0 0.0
    %1134 = vmatpush2.msra.mxu0 0.0
    %1135 = vmatprep.subr.mxu0 0.0
    %1136 = vmatpush2.msra.mxu0 0.0
    %1137 = vmatprep.subr.mxu0 0.0
    %1138 = vmatpush2.msra.mxu0 0.0
    %1139 = vmatprep.subr.mxu0 0.0
    %1140 = vmatpush2.msra.mxu0 0.0
    %1141 = vmatprep.subr.mxu0 0.0
    %1142 = vmatpush2.msra.mxu0 0.0
    %1143 = vmatprep.subr.mxu0 0.0
    %1144 = vmatpush2.msra.mxu0 0.0
    %1145 = vmatprep.subr.mxu0 0.0
    %1146 = vmatpush2.msra.mxu0 0.0
    %1147 = vmatprep.subr.mxu0 0.0
    %1148 = vmatpush2.msra.mxu0 0.0
    %1149 = vmatprep.subr.mxu0 0.0
    %1150 = vmatpush2.msra.mxu0 0.0
    %1151 = vmatprep.subr.mxu0 0.0
    %1152 = vmatpush2.msra.mxu0 0.0
    %1153 = vmatprep.subr.mxu0 0.0
    %1154 = vmatpush2.msra.mxu0 0.0
    %1155 = vmatprep.subr.mxu0 0.0
    %1156 = vmatpush2.msra.mxu0 0.0
    %1157 = vmatprep.subr.mxu0 0.0
    %1158 = vmatpush2.msra.mxu0 0.0
    %1159 = vmatprep.subr.mxu0 0.0
    %1160 = vmatpush2.msra.mxu0 0.0
    %1161 = vmatprep.mubr.f32.mxu0 0.0
    %1162 = vmatmul.mubr.f32.gmra.mxu0 %v1094
    %v1163 = vpop.f32.mrf.mxu0
    %v1164 = vadd.f32 0.0, %v1163
    %v1165 = vpop.f32.mrf.mxu0
    %v1166 = vadd.f32 0.0, %v1165
    %1167 = vdwg.mxu0
    %1168 = vmatprep.subr.mxu0 %v136
    %1169 = vmatpush1.msra.mxu0 %v135
    %1170 = vmatprep.subr.mxu0 %v132
    %1171 = vmatpush1.msra.mxu0 %v131
    %1172 = vmatprep.subr.mxu0 %v128
    %1173 = vmatpush1.msra.mxu0 %v127
    %1174 = vmatprep.subr.mxu0 %v124
    %1175 = vmatpush1.msra.mxu0 %v123
    %1176 = vmatprep.subr.mxu0 %v120
    %1177 = vmatpush1.msra.mxu0 %v119
    %1178 = vmatprep.subr.mxu0 %v116
    %1179 = vmatpush1.msra.mxu0 %v115
    %1180 = vmatprep.subr.mxu0 %v112
    %1181 = vmatpush1.msra.mxu0 %v111
    %1182 = vmatprep.subr.mxu0 %v108
    %1183 = vmatpush1.msra.mxu0 %v107
    %1184 = vmatprep.subr.mxu0 %v104
    %1185 = vmatpush1.msra.mxu0 %v103
    %1186 = vmatprep.subr.mxu0 %v100
    %1187 = vmatpush1.msra.mxu0 %v99
    %1188 = vmatprep.subr.mxu0 %v96
    %1189 = vmatpush1.msra.mxu0 %v95
    %1190 = vmatprep.subr.mxu0 %v92
    %1191 = vmatpush1.msra.mxu0 %v91
    %1192 = vmatprep.subr.mxu0 %v88
    %1193 = vmatpush1.msra.mxu0 %v87
    %1194 = vmatprep.subr.mxu0 %v84
    %1195 = vmatpush1.msra.mxu0 %v83
    %1196 = vmatprep.subr.mxu0 %v80
    %1197 = vmatpush1.msra.mxu0 %v79
    %1198 = vmatprep.subr.mxu0 %v76
    %1199 = vmatpush1.msra.mxu0 %v75
    %1200 = vmatprep.subr.mxu0 0.0
    %1201 = vmatpush2.msra.mxu0 0.0
    %1202 = vmatprep.subr.mxu0 0.0
    %1203 = vmatpush2.msra.mxu0 0.0
    %1204 = vmatprep.subr.mxu0 0.0
    %1205 = vmatpush2.msra.mxu0 0.0
    %1206 = vmatprep.subr.mxu0 0.0
    %1207 = vmatpush2.msra.mxu0 0.0
    %1208 = vmatprep.subr.mxu0 0.0
    %1209 = vmatpush2.msra.mxu0 0.0
    %1210 = vmatprep.subr.mxu0 0.0
    %1211 = vmatpush2.msra.mxu0 0.0
    %1212 = vmatprep.subr.mxu0 0.0
    %1213 = vmatpush2.msra.mxu0 0.0
    %1214 = vmatprep.subr.mxu0 0.0
    %1215 = vmatpush2.msra.mxu0 0.0
    %1216 = vmatprep.subr.mxu0 0.0
    %1217 = vmatpush2.msra.mxu0 0.0
    %1218 = vmatprep.subr.mxu0 0.0
    %1219 = vmatpush2.msra.mxu0 0.0
    %1220 = vmatprep.subr.mxu0 0.0
    %1221 = vmatpush2.msra.mxu0 0.0
    %1222 = vmatprep.subr.mxu0 0.0
    %1223 = vmatpush2.msra.mxu0 0.0
    %1224 = vmatprep.subr.mxu0 0.0
    %1225 = vmatpush2.msra.mxu0 0.0
    %1226 = vmatprep.subr.mxu0 0.0
    %1227 = vmatpush2.msra.mxu0 0.0
    %1228 = vmatprep.subr.mxu0 0.0
    %1229 = vmatpush2.msra.mxu0 0.0
    %1230 = vmatprep.subr.mxu0 0.0
    %1231 = vmatpush2.msra.mxu0 0.0
    %1232 = vmatprep.mubr.f32.mxu0 0.0
    %1233 = vmatmul.mubr.f32.gmra.mxu0 %v1094
    %v1234 = vpop.f32.mrf.mxu0
    %v1235 = vadd.f32 0.0, %v1234
    %v1236 = vpop.f32.mrf.mxu0
    %v1237 = vadd.f32 0.0, %v1236
    %1238 = vdwg.mxu0
    %v1240 = vsel %vm284, %v1096, 0
    %1242 = vmatprep.subr.mxu0 0.0
    %1243 = vmatpush1.msra.mxu0 0.0
    %1244 = vmatprep.subr.mxu0 0.0
    %1245 = vmatpush1.msra.mxu0 0.0
    %1246 = vmatprep.subr.mxu0 0.0
    %1247 = vmatpush1.msra.mxu0 0.0
    %1248 = vmatprep.subr.mxu0 0.0
    %1249 = vmatpush1.msra.mxu0 0.0
    %1250 = vmatprep.subr.mxu0 0.0
    %1251 = vmatpush1.msra.mxu0 0.0
    %1252 = vmatprep.subr.mxu0 0.0
    %1253 = vmatpush1.msra.mxu0 0.0
    %1254 = vmatprep.subr.mxu0 0.0
    %1255 = vmatpush1.msra.mxu0 0.0
    %1256 = vmatprep.subr.mxu0 0.0
    %1257 = vmatpush1.msra.mxu0 0.0
    %1258 = vmatprep.subr.mxu0 0.0
    %1259 = vmatpush1.msra.mxu0 0.0
    %1260 = vmatprep.subr.mxu0 0.0
    %1261 = vmatpush1.msra.mxu0 0.0
    %1262 = vmatprep.subr.mxu0 0.0
    %1263 = vmatpush1.msra.mxu0 0.0
    %1264 = vmatprep.subr.mxu0 0.0
    %1265 = vmatpush1.msra.mxu0 0.0
    %1266 = vmatprep.subr.mxu0 0.0
    %1267 = vmatpush1.msra.mxu0 0.0
    %1268 = vmatprep.subr.mxu0 0.0
    %1269 = vmatpush1.msra.mxu0 0.0
    %1270 = vmatprep.subr.mxu0 %v70
    %1271 = vmatpush1.msra.mxu0 %v69
    %1272 = vmatprep.subr.mxu0 %v66
    %1273 = vmatpush1.msra.mxu0 %v65
    %1274 = vmatprep.subr.mxu0 0.0
    %1275 = vmatpush2.msra.mxu0 0.0
    %1276 = vmatprep.subr.mxu0 0.0
    %1277 = vmatpush2.msra.mxu0 0.0
    %1278 = vmatprep.subr.mxu0 0.0
    %1279 = vmatpush2.msra.mxu0 0.0
    %1280 = vmatprep.subr.mxu0 0.0
    %1281 = vmatpush2.msra.mxu0 0.0
    %1282 = vmatprep.subr.mxu0 0.0
    %1283 = vmatpush2.msra.mxu0 0.0
    %1284 = vmatprep.subr.mxu0 0.0
    %1285 = vmatpush2.msra.mxu0 0.0
    %1286 = vmatprep.subr.mxu0 0.0
    %1287 = vmatpush2.msra.mxu0 0.0
    %1288 = vmatprep.subr.mxu0 0.0
    %1289 = vmatpush2.msra.mxu0 0.0
    %1290 = vmatprep.subr.mxu0 0.0
    %1291 = vmatpush2.msra.mxu0 0.0
    %1292 = vmatprep.subr.mxu0 0.0
    %1293 = vmatpush2.msra.mxu0 0.0
    %1294 = vmatprep.subr.mxu0 0.0
    %1295 = vmatpush2.msra.mxu0 0.0
    %1296 = vmatprep.subr.mxu0 0.0
    %1297 = vmatpush2.msra.mxu0 0.0
    %1298 = vmatprep.subr.mxu0 0.0
    %1299 = vmatpush2.msra.mxu0 0.0
    %1300 = vmatprep.subr.mxu0 0.0
    %1301 = vmatpush2.msra.mxu0 0.0
    %1302 = vmatprep.subr.mxu0 0.0
    %1303 = vmatpush2.msra.mxu0 0.0
    %1304 = vmatprep.subr.mxu0 0.0
    %1305 = vmatpush2.msra.mxu0 0.0
    %1306 = vmatprep.mubr.f32.mxu0 0.0
    %1307 = vmatmul.mubr.f32.gmra.mxu0 %v1240
    %v1308 = vpop.f32.mrf.mxu0
    %v1309 = vadd.f32 %v1164, %v1308
    %v1310 = vpop.f32.mrf.mxu0
    %v1311 = vadd.f32 %v1166, %v1310
    %1312 = vdwg.mxu0
    %1313 = vmatprep.subr.mxu0 0.0
    %1314 = vmatpush1.msra.mxu0 0.0
    %1315 = vmatprep.subr.mxu0 0.0
    %1316 = vmatpush1.msra.mxu0 0.0
    %1317 = vmatprep.subr.mxu0 0.0
    %1318 = vmatpush1.msra.mxu0 0.0
    %1319 = vmatprep.subr.mxu0 0.0
    %1320 = vmatpush1.msra.mxu0 0.0
    %1321 = vmatprep.subr.mxu0 0.0
    %1322 = vmatpush1.msra.mxu0 0.0
    %1323 = vmatprep.subr.mxu0 0.0
    %1324 = vmatpush1.msra.mxu0 0.0
    %1325 = vmatprep.subr.mxu0 0.0
    %1326 = vmatpush1.msra.mxu0 0.0
    %1327 = vmatprep.subr.mxu0 0.0
    %1328 = vmatpush1.msra.mxu0 0.0
    %1329 = vmatprep.subr.mxu0 0.0
    %1330 = vmatpush1.msra.mxu0 0.0
    %1331 = vmatprep.subr.mxu0 0.0
    %1332 = vmatpush1.msra.mxu0 0.0
    %1333 = vmatprep.subr.mxu0 0.0
    %1334 = vmatpush1.msra.mxu0 0.0
    %1335 = vmatprep.subr.mxu0 0.0
    %1336 = vmatpush1.msra.mxu0 0.0
    %1337 = vmatprep.subr.mxu0 0.0
    %1338 = vmatpush1.msra.mxu0 0.0
    %1339 = vmatprep.subr.mxu0 0.0
    %1340 = vmatpush1.msra.mxu0 0.0
    %1341 = vmatprep.subr.mxu0 %v72
    %1342 = vmatpush1.msra.mxu0 %v71
    %1343 = vmatprep.subr.mxu0 %v68
    %1344 = vmatpush1.msra.mxu0 %v67
    %1345 = vmatprep.subr.mxu0 0.0
    %1346 = vmatpush2.msra.mxu0 0.0
    %1347 = vmatprep.subr.mxu0 0.0
    %1348 = vmatpush2.msra.mxu0 0.0
    %1349 = vmatprep.subr.mxu0 0.0
    %1350 = vmatpush2.msra.mxu0 0.0
    %1351 = vmatprep.subr.mxu0 0.0
    %1352 = vmatpush2.msra.mxu0 0.0
    %1353 = vmatprep.subr.mxu0 0.0
    %1354 = vmatpush2.msra.mxu0 0.0
    %1355 = vmatprep.subr.mxu0 0.0
    %1356 = vmatpush2.msra.mxu0 0.0
    %1357 = vmatprep.subr.mxu0 0.0
    %1358 = vmatpush2.msra.mxu0 0.0
    %1359 = vmatprep.subr.mxu0 0.0
    %1360 = vmatpush2.msra.mxu0 0.0
    %1361 = vmatprep.subr.mxu0 0.0
    %1362 = vmatpush2.msra.mxu0 0.0
    %1363 = vmatprep.subr.mxu0 0.0
    %1364 = vmatpush2.msra.mxu0 0.0
    %1365 = vmatprep.subr.mxu0 0.0
    %1366 = vmatpush2.msra.mxu0 0.0
    %1367 = vmatprep.subr.mxu0 0.0
    %1368 = vmatpush2.msra.mxu0 0.0
    %1369 = vmatprep.subr.mxu0 0.0
    %1370 = vmatpush2.msra.mxu0 0.0
    %1371 = vmatprep.subr.mxu0 0.0
    %1372 = vmatpush2.msra.mxu0 0.0
    %1373 = vmatprep.subr.mxu0 0.0
    %1374 = vmatpush2.msra.mxu0 0.0
    %1375 = vmatprep.subr.mxu0 0.0
    %1376 = vmatpush2.msra.mxu0 0.0
    %1377 = vmatprep.mubr.f32.mxu0 0.0
    %1378 = vmatmul.mubr.f32.gmra.mxu0 %v1240
    %v1379 = vpop.f32.mrf.mxu0
    %v1380 = vadd.f32 %v1235, %v1379
    %v1381 = vpop.f32.mrf.mxu0
    %v1382 = vadd.f32 %v1237, %v1381
    %1383 = vdwg.mxu0
    %v1384 = vadd.f32 %v1309, %v434
    %v1385 = vadd.f32 %v1311, %v438
    %v1386 = vadd.f32 %v1380, %v442
    %v1387 = vadd.f32 %v1382, %v446
    %v1388 = vmul.f32 %v1384, 0.5
    %v1389 = vtanh.pop %v1388
    %v1390 = vadd.f32 %v1389, 1.0
    %v1391 = vmul.f32 %v1390, 0.5
    %v1392 = vmul.f32 %v1385, 0.5
    %v1393 = vtanh.pop %v1392
    %v1394 = vadd.f32 %v1393, 1.0
    %v1395 = vmul.f32 %v1394, 0.5
    %v1396 = vtanh.pop %v1386
    %v1397 = vmul.f32 %v1387, 0.5
    %v1398 = vtanh.pop %v1397
    %v1399 = vadd.f32 %v1398, 1.0
    %v1400 = vmul.f32 %v1399, 0.5
    %v1401 = vmul.f32 %v1395, %v1092
    %v1402 = vmul.f32 %v1391, %v1396
    %v1403 = vadd.f32 %v1401, %v1402
    %v1404 = vtanh.pop %v1403
    %v1405 = vmul.f32 %v1400, %v1404
    %s1406 = scalar_lea.vmem [#allocation3], 32
    %v1407 = vld [vmem:[%s1406] sm:$0xff]
    %1408 = vmatprep.subr.mxu0 %v134
    %1409 = vmatpush1.msra.mxu0 %v133
    %1410 = vmatprep.subr.mxu0 %v130
    %1411 = vmatpush1.msra.mxu0 %v129
    %1412 = vmatprep.subr.mxu0 %v126
    %1413 = vmatpush1.msra.mxu0 %v125
    %1414 = vmatprep.subr.mxu0 %v122
    %1415 = vmatpush1.msra.mxu0 %v121
    %1416 = vmatprep.subr.mxu0 %v118
    %1417 = vmatpush1.msra.mxu0 %v117
    %1418 = vmatprep.subr.mxu0 %v114
    %1419 = vmatpush1.msra.mxu0 %v113
    %1420 = vmatprep.subr.mxu0 %v110
    %1421 = vmatpush1.msra.mxu0 %v109
    %1422 = vmatprep.subr.mxu0 %v106
    %1423 = vmatpush1.msra.mxu0 %v105
    %1424 = vmatprep.subr.mxu0 %v102
    %1425 = vmatpush1.msra.mxu0 %v101
    %1426 = vmatprep.subr.mxu0 %v98
    %1427 = vmatpush1.msra.mxu0 %v97
    %1428 = vmatprep.subr.mxu0 %v94
    %1429 = vmatpush1.msra.mxu0 %v93
    %1430 = vmatprep.subr.mxu0 %v90
    %1431 = vmatpush1.msra.mxu0 %v89
    %1432 = vmatprep.subr.mxu0 %v86
    %1433 = vmatpush1.msra.mxu0 %v85
    %1434 = vmatprep.subr.mxu0 %v82
    %1435 = vmatpush1.msra.mxu0 %v81
    %1436 = vmatprep.subr.mxu0 %v78
    %1437 = vmatpush1.msra.mxu0 %v77
    %1438 = vmatprep.subr.mxu0 %v74
    %1439 = vmatpush1.msra.mxu0 %v73
    %1440 = vmatprep.subr.mxu0 0.0
    %1441 = vmatpush2.msra.mxu0 0.0
    %1442 = vmatprep.subr.mxu0 0.0
    %1443 = vmatpush2.msra.mxu0 0.0
    %1444 = vmatprep.subr.mxu0 0.0
    %1445 = vmatpush2.msra.mxu0 0.0
    %1446 = vmatprep.subr.mxu0 0.0
    %1447 = vmatpush2.msra.mxu0 0.0
    %1448 = vmatprep.subr.mxu0 0.0
    %1449 = vmatpush2.msra.mxu0 0.0
    %1450 = vmatprep.subr.mxu0 0.0
    %1451 = vmatpush2.msra.mxu0 0.0
    %1452 = vmatprep.subr.mxu0 0.0
    %1453 = vmatpush2.msra.mxu0 0.0
    %1454 = vmatprep.subr.mxu0 0.0
    %1455 = vmatpush2.msra.mxu0 0.0
    %1456 = vmatprep.subr.mxu0 0.0
    %1457 = vmatpush2.msra.mxu0 0.0
    %1458 = vmatprep.subr.mxu0 0.0
    %1459 = vmatpush2.msra.mxu0 0.0
    %1460 = vmatprep.subr.mxu0 0.0
    %1461 = vmatpush2.msra.mxu0 0.0
    %1462 = vmatprep.subr.mxu0 0.0
    %1463 = vmatpush2.msra.mxu0 0.0
    %1464 = vmatprep.subr.mxu0 0.0
    %1465 = vmatpush2.msra.mxu0 0.0
    %1466 = vmatprep.subr.mxu0 0.0
    %1467 = vmatpush2.msra.mxu0 0.0
    %1468 = vmatprep.subr.mxu0 0.0
    %1469 = vmatpush2.msra.mxu0 0.0
    %1470 = vmatprep.subr.mxu0 0.0
    %1471 = vmatpush2.msra.mxu0 0.0
    %1472 = vmatprep.mubr.f32.mxu0 0.0
    %1473 = vmatmul.mubr.f32.gmra.mxu0 %v1405
    %v1474 = vpop.f32.mrf.mxu0
    %v1475 = vadd.f32 0.0, %v1474
    %v1476 = vpop.f32.mrf.mxu0
    %v1477 = vadd.f32 0.0, %v1476
    %1478 = vdwg.mxu0
    %1479 = vmatprep.subr.mxu0 %v136
    %1480 = vmatpush1.msra.mxu0 %v135
    %1481 = vmatprep.subr.mxu0 %v132
    %1482 = vmatpush1.msra.mxu0 %v131
    %1483 = vmatprep.subr.mxu0 %v128
    %1484 = vmatpush1.msra.mxu0 %v127
    %1485 = vmatprep.subr.mxu0 %v124
    %1486 = vmatpush1.msra.mxu0 %v123
    %1487 = vmatprep.subr.mxu0 %v120
    %1488 = vmatpush1.msra.mxu0 %v119
    %1489 = vmatprep.subr.mxu0 %v116
    %1490 = vmatpush1.msra.mxu0 %v115
    %1491 = vmatprep.subr.mxu0 %v112
    %1492 = vmatpush1.msra.mxu0 %v111
    %1493 = vmatprep.subr.mxu0 %v108
    %1494 = vmatpush1.msra.mxu0 %v107
    %1495 = vmatprep.subr.mxu0 %v104
    %1496 = vmatpush1.msra.mxu0 %v103
    %1497 = vmatprep.subr.mxu0 %v100
    %1498 = vmatpush1.msra.mxu0 %v99
    %1499 = vmatprep.subr.mxu0 %v96
    %1500 = vmatpush1.msra.mxu0 %v95
    %1501 = vmatprep.subr.mxu0 %v92
    %1502 = vmatpush1.msra.mxu0 %v91
    %1503 = vmatprep.subr.mxu0 %v88
    %1504 = vmatpush1.msra.mxu0 %v87
    %1505 = vmatprep.subr.mxu0 %v84
    %1506 = vmatpush1.msra.mxu0 %v83
    %1507 = vmatprep.subr.mxu0 %v80
    %1508 = vmatpush1.msra.mxu0 %v79
    %1509 = vmatprep.subr.mxu0 %v76
    %1510 = vmatpush1.msra.mxu0 %v75
    %1511 = vmatprep.subr.mxu0 0.0
    %1512 = vmatpush2.msra.mxu0 0.0
    %1513 = vmatprep.subr.mxu0 0.0
    %1514 = vmatpush2.msra.mxu0 0.0
    %1515 = vmatprep.subr.mxu0 0.0
    %1516 = vmatpush2.msra.mxu0 0.0
    %1517 = vmatprep.subr.mxu0 0.0
    %1518 = vmatpush2.msra.mxu0 0.0
    %1519 = vmatprep.subr.mxu0 0.0
    %1520 = vmatpush2.msra.mxu0 0.0
    %1521 = vmatprep.subr.mxu0 0.0
    %1522 = vmatpush2.msra.mxu0 0.0
    %1523 = vmatprep.subr.mxu0 0.0
    %1524 = vmatpush2.msra.mxu0 0.0
    %1525 = vmatprep.subr.mxu0 0.0
    %1526 = vmatpush2.msra.mxu0 0.0
    %1527 = vmatprep.subr.mxu0 0.0
    %1528 = vmatpush2.msra.mxu0 0.0
    %1529 = vmatprep.subr.mxu0 0.0
    %1530 = vmatpush2.msra.mxu0 0.0
    %1531 = vmatprep.subr.mxu0 0.0
    %1532 = vmatpush2.msra.mxu0 0.0
    %1533 = vmatprep.subr.mxu0 0.0
    %1534 = vmatpush2.msra.mxu0 0.0
    %1535 = vmatprep.subr.mxu0 0.0
    %1536 = vmatpush2.msra.mxu0 0.0
    %1537 = vmatprep.subr.mxu0 0.0
    %1538 = vmatpush2.msra.mxu0 0.0
    %1539 = vmatprep.subr.mxu0 0.0
    %1540 = vmatpush2.msra.mxu0 0.0
    %1541 = vmatprep.subr.mxu0 0.0
    %1542 = vmatpush2.msra.mxu0 0.0
    %1543 = vmatprep.mubr.f32.mxu0 0.0
    %1544 = vmatmul.mubr.f32.gmra.mxu0 %v1405
    %v1545 = vpop.f32.mrf.mxu0
    %v1546 = vadd.f32 0.0, %v1545
    %v1547 = vpop.f32.mrf.mxu0
    %v1548 = vadd.f32 0.0, %v1547
    %1549 = vdwg.mxu0
    %v1551 = vsel %vm284, %v1407, 0
    %1553 = vmatprep.subr.mxu0 0.0
    %1554 = vmatpush1.msra.mxu0 0.0
    %1555 = vmatprep.subr.mxu0 0.0
    %1556 = vmatpush1.msra.mxu0 0.0
    %1557 = vmatprep.subr.mxu0 0.0
    %1558 = vmatpush1.msra.mxu0 0.0
    %1559 = vmatprep.subr.mxu0 0.0
    %1560 = vmatpush1.msra.mxu0 0.0
    %1561 = vmatprep.subr.mxu0 0.0
    %1562 = vmatpush1.msra.mxu0 0.0
    %1563 = vmatprep.subr.mxu0 0.0
    %1564 = vmatpush1.msra.mxu0 0.0
    %1565 = vmatprep.subr.mxu0 0.0
    %1566 = vmatpush1.msra.mxu0 0.0
    %1567 = vmatprep.subr.mxu0 0.0
    %1568 = vmatpush1.msra.mxu0 0.0
    %1569 = vmatprep.subr.mxu0 0.0
    %1570 = vmatpush1.msra.mxu0 0.0
    %1571 = vmatprep.subr.mxu0 0.0
    %1572 = vmatpush1.msra.mxu0 0.0
    %1573 = vmatprep.subr.mxu0 0.0
    %1574 = vmatpush1.msra.mxu0 0.0
    %1575 = vmatprep.subr.mxu0 0.0
    %1576 = vmatpush1.msra.mxu0 0.0
    %1577 = vmatprep.subr.mxu0 0.0
    %1578 = vmatpush1.msra.mxu0 0.0
    %1579 = vmatprep.subr.mxu0 0.0
    %1580 = vmatpush1.msra.mxu0 0.0
    %1581 = vmatprep.subr.mxu0 %v70
    %1582 = vmatpush1.msra.mxu0 %v69
    %1583 = vmatprep.subr.mxu0 %v66
    %1584 = vmatpush1.msra.mxu0 %v65
    %1585 = vmatprep.subr.mxu0 0.0
    %1586 = vmatpush2.msra.mxu0 0.0
    %1587 = vmatprep.subr.mxu0 0.0
    %1588 = vmatpush2.msra.mxu0 0.0
    %1589 = vmatprep.subr.mxu0 0.0
    %1590 = vmatpush2.msra.mxu0 0.0
    %1591 = vmatprep.subr.mxu0 0.0
    %1592 = vmatpush2.msra.mxu0 0.0
    %1593 = vmatprep.subr.mxu0 0.0
    %1594 = vmatpush2.msra.mxu0 0.0
    %1595 = vmatprep.subr.mxu0 0.0
    %1596 = vmatpush2.msra.mxu0 0.0
    %1597 = vmatprep.subr.mxu0 0.0
    %1598 = vmatpush2.msra.mxu0 0.0
    %1599 = vmatprep.subr.mxu0 0.0
    %1600 = vmatpush2.msra.mxu0 0.0
    %1601 = vmatprep.subr.mxu0 0.0
    %1602 = vmatpush2.msra.mxu0 0.0
    %1603 = vmatprep.subr.mxu0 0.0
    %1604 = vmatpush2.msra.mxu0 0.0
    %1605 = vmatprep.subr.mxu0 0.0
    %1606 = vmatpush2.msra.mxu0 0.0
    %1607 = vmatprep.subr.mxu0 0.0
    %1608 = vmatpush2.msra.mxu0 0.0
    %1609 = vmatprep.subr.mxu0 0.0
    %1610 = vmatpush2.msra.mxu0 0.0
    %1611 = vmatprep.subr.mxu0 0.0
    %1612 = vmatpush2.msra.mxu0 0.0
    %1613 = vmatprep.subr.mxu0 0.0
    %1614 = vmatpush2.msra.mxu0 0.0
    %1615 = vmatprep.subr.mxu0 0.0
    %1616 = vmatpush2.msra.mxu0 0.0
    %1617 = vmatprep.mubr.f32.mxu0 0.0
    %1618 = vmatmul.mubr.f32.gmra.mxu0 %v1551
    %v1619 = vpop.f32.mrf.mxu0
    %v1620 = vadd.f32 %v1475, %v1619
    %v1621 = vpop.f32.mrf.mxu0
    %v1622 = vadd.f32 %v1477, %v1621
    %1623 = vdwg.mxu0
    %1624 = vmatprep.subr.mxu0 0.0
    %1625 = vmatpush1.msra.mxu0 0.0
    %1626 = vmatprep.subr.mxu0 0.0
    %1627 = vmatpush1.msra.mxu0 0.0
    %1628 = vmatprep.subr.mxu0 0.0
    %1629 = vmatpush1.msra.mxu0 0.0
    %1630 = vmatprep.subr.mxu0 0.0
    %1631 = vmatpush1.msra.mxu0 0.0
    %1632 = vmatprep.subr.mxu0 0.0
    %1633 = vmatpush1.msra.mxu0 0.0
    %1634 = vmatprep.subr.mxu0 0.0
    %1635 = vmatpush1.msra.mxu0 0.0
    %1636 = vmatprep.subr.mxu0 0.0
    %1637 = vmatpush1.msra.mxu0 0.0
    %1638 = vmatprep.subr.mxu0 0.0
    %1639 = vmatpush1.msra.mxu0 0.0
    %1640 = vmatprep.subr.mxu0 0.0
    %1641 = vmatpush1.msra.mxu0 0.0
    %1642 = vmatprep.subr.mxu0 0.0
    %1643 = vmatpush1.msra.mxu0 0.0
    %1644 = vmatprep.subr.mxu0 0.0
    %1645 = vmatpush1.msra.mxu0 0.0
    %1646 = vmatprep.subr.mxu0 0.0
    %1647 = vmatpush1.msra.mxu0 0.0
    %1648 = vmatprep.subr.mxu0 0.0
    %1649 = vmatpush1.msra.mxu0 0.0
    %1650 = vmatprep.subr.mxu0 0.0
    %1651 = vmatpush1.msra.mxu0 0.0
    %1652 = vmatprep.subr.mxu0 %v72
    %1653 = vmatpush1.msra.mxu0 %v71
    %1654 = vmatprep.subr.mxu0 %v68
    %1655 = vmatpush1.msra.mxu0 %v67
    %1656 = vmatprep.subr.mxu0 0.0
    %1657 = vmatpush2.msra.mxu0 0.0
    %1658 = vmatprep.subr.mxu0 0.0
    %1659 = vmatpush2.msra.mxu0 0.0
    %1660 = vmatprep.subr.mxu0 0.0
    %1661 = vmatpush2.msra.mxu0 0.0
    %1662 = vmatprep.subr.mxu0 0.0
    %1663 = vmatpush2.msra.mxu0 0.0
    %1664 = vmatprep.subr.mxu0 0.0
    %1665 = vmatpush2.msra.mxu0 0.0
    %1666 = vmatprep.subr.mxu0 0.0
    %1667 = vmatpush2.msra.mxu0 0.0
    %1668 = vmatprep.subr.mxu0 0.0
    %1669 = vmatpush2.msra.mxu0 0.0
    %1670 = vmatprep.subr.mxu0 0.0
    %1671 = vmatpush2.msra.mxu0 0.0
    %1672 = vmatprep.subr.mxu0 0.0
    %1673 = vmatpush2.msra.mxu0 0.0
    %1674 = vmatprep.subr.mxu0 0.0
    %1675 = vmatpush2.msra.mxu0 0.0
    %1676 = vmatprep.subr.mxu0 0.0
    %1677 = vmatpush2.msra.mxu0 0.0
    %1678 = vmatprep.subr.mxu0 0.0
    %1679 = vmatpush2.msra.mxu0 0.0
    %1680 = vmatprep.subr.mxu0 0.0
    %1681 = vmatpush2.msra.mxu0 0.0
    %1682 = vmatprep.subr.mxu0 0.0
    %1683 = vmatpush2.msra.mxu0 0.0
    %1684 = vmatprep.subr.mxu0 0.0
    %1685 = vmatpush2.msra.mxu0 0.0
    %1686 = vmatprep.subr.mxu0 0.0
    %1687 = vmatpush2.msra.mxu0 0.0
    %1688 = vmatprep.mubr.f32.mxu0 0.0
    %1689 = vmatmul.mubr.f32.gmra.mxu0 %v1551
    %v1690 = vpop.f32.mrf.mxu0
    %v1691 = vadd.f32 %v1546, %v1690
    %v1692 = vpop.f32.mrf.mxu0
    %v1693 = vadd.f32 %v1548, %v1692
    %1694 = vdwg.mxu0
    %v1695 = vadd.f32 %v1620, %v434
    %v1696 = vadd.f32 %v1622, %v438
    %v1697 = vadd.f32 %v1691, %v442
    %v1698 = vadd.f32 %v1693, %v446
    %v1699 = vmul.f32 %v1695, 0.5
    %v1700 = vtanh.pop %v1699
    %v1701 = vadd.f32 %v1700, 1.0
    %v1702 = vmul.f32 %v1701, 0.5
    %v1703 = vmul.f32 %v1696, 0.5
    %v1704 = vtanh.pop %v1703
    %v1705 = vadd.f32 %v1704, 1.0
    %v1706 = vmul.f32 %v1705, 0.5
    %v1707 = vtanh.pop %v1697
    %v1708 = vmul.f32 %v1698, 0.5
    %v1709 = vtanh.pop %v1708
    %v1710 = vadd.f32 %v1709, 1.0
    %v1711 = vmul.f32 %v1710, 0.5
    %v1712 = vmul.f32 %v1706, %v1403
    %v1713 = vmul.f32 %v1702, %v1707
    %v1714 = vadd.f32 %v1712, %v1713
    %v1715 = vtanh.pop %v1714
    %v1716 = vmul.f32 %v1711, %v1715
    %s1717 = scalar_lea.vmem [#allocation3], 40
    %v1718 = vld [vmem:[%s1717] sm:$0xff]
    %1719 = vmatprep.subr.mxu0 %v134
    %1720 = vmatpush1.msra.mxu0 %v133
    %1721 = vmatprep.subr.mxu0 %v130
    %1722 = vmatpush1.msra.mxu0 %v129
    %1723 = vmatprep.subr.mxu0 %v126
    %1724 = vmatpush1.msra.mxu0 %v125
    %1725 = vmatprep.subr.mxu0 %v122
    %1726 = vmatpush1.msra.mxu0 %v121
    %1727 = vmatprep.subr.mxu0 %v118
    %1728 = vmatpush1.msra.mxu0 %v117
    %1729 = vmatprep.subr.mxu0 %v114
    %1730 = vmatpush1.msra.mxu0 %v113
    %1731 = vmatprep.subr.mxu0 %v110
    %1732 = vmatpush1.msra.mxu0 %v109
    %1733 = vmatprep.subr.mxu0 %v106
    %1734 = vmatpush1.msra.mxu0 %v105
    %1735 = vmatprep.subr.mxu0 %v102
    %1736 = vmatpush1.msra.mxu0 %v101
    %1737 = vmatprep.subr.mxu0 %v98
    %1738 = vmatpush1.msra.mxu0 %v97
    %1739 = vmatprep.subr.mxu0 %v94
    %1740 = vmatpush1.msra.mxu0 %v93
    %1741 = vmatprep.subr.mxu0 %v90
    %1742 = vmatpush1.msra.mxu0 %v89
    %1743 = vmatprep.subr.mxu0 %v86
    %1744 = vmatpush1.msra.mxu0 %v85
    %1745 = vmatprep.subr.mxu0 %v82
    %1746 = vmatpush1.msra.mxu0 %v81
    %1747 = vmatprep.subr.mxu0 %v78
    %1748 = vmatpush1.msra.mxu0 %v77
    %1749 = vmatprep.subr.mxu0 %v74
    %1750 = vmatpush1.msra.mxu0 %v73
    %1751 = vmatprep.subr.mxu0 0.0
    %1752 = vmatpush2.msra.mxu0 0.0
    %1753 = vmatprep.subr.mxu0 0.0
    %1754 = vmatpush2.msra.mxu0 0.0
    %1755 = vmatprep.subr.mxu0 0.0
    %1756 = vmatpush2.msra.mxu0 0.0
    %1757 = vmatprep.subr.mxu0 0.0
    %1758 = vmatpush2.msra.mxu0 0.0
    %1759 = vmatprep.subr.mxu0 0.0
    %1760 = vmatpush2.msra.mxu0 0.0
    %1761 = vmatprep.subr.mxu0 0.0
    %1762 = vmatpush2.msra.mxu0 0.0
    %1763 = vmatprep.subr.mxu0 0.0
    %1764 = vmatpush2.msra.mxu0 0.0
    %1765 = vmatprep.subr.mxu0 0.0
    %1766 = vmatpush2.msra.mxu0 0.0
    %1767 = vmatprep.subr.mxu0 0.0
    %1768 = vmatpush2.msra.mxu0 0.0
    %1769 = vmatprep.subr.mxu0 0.0
    %1770 = vmatpush2.msra.mxu0 0.0
    %1771 = vmatprep.subr.mxu0 0.0
    %1772 = vmatpush2.msra.mxu0 0.0
    %1773 = vmatprep.subr.mxu0 0.0
    %1774 = vmatpush2.msra.mxu0 0.0
    %1775 = vmatprep.subr.mxu0 0.0
    %1776 = vmatpush2.msra.mxu0 0.0
    %1777 = vmatprep.subr.mxu0 0.0
    %1778 = vmatpush2.msra.mxu0 0.0
    %1779 = vmatprep.subr.mxu0 0.0
    %1780 = vmatpush2.msra.mxu0 0.0
    %1781 = vmatprep.subr.mxu0 0.0
    %1782 = vmatpush2.msra.mxu0 0.0
    %1783 = vmatprep.mubr.f32.mxu0 0.0
    %1784 = vmatmul.mubr.f32.gmra.mxu0 %v1716
    %v1785 = vpop.f32.mrf.mxu0
    %v1786 = vadd.f32 0.0, %v1785
    %v1787 = vpop.f32.mrf.mxu0
    %v1788 = vadd.f32 0.0, %v1787
    %1789 = vdwg.mxu0
    %1790 = vmatprep.subr.mxu0 %v136
    %1791 = vmatpush1.msra.mxu0 %v135
    %1792 = vmatprep.subr.mxu0 %v132
    %1793 = vmatpush1.msra.mxu0 %v131
    %1794 = vmatprep.subr.mxu0 %v128
    %1795 = vmatpush1.msra.mxu0 %v127
    %1796 = vmatprep.subr.mxu0 %v124
    %1797 = vmatpush1.msra.mxu0 %v123
    %1798 = vmatprep.subr.mxu0 %v120
    %1799 = vmatpush1.msra.mxu0 %v119
    %1800 = vmatprep.subr.mxu0 %v116
    %1801 = vmatpush1.msra.mxu0 %v115
    %1802 = vmatprep.subr.mxu0 %v112
    %1803 = vmatpush1.msra.mxu0 %v111
    %1804 = vmatprep.subr.mxu0 %v108
    %1805 = vmatpush1.msra.mxu0 %v107
    %1806 = vmatprep.subr.mxu0 %v104
    %1807 = vmatpush1.msra.mxu0 %v103
    %1808 = vmatprep.subr.mxu0 %v100
    %1809 = vmatpush1.msra.mxu0 %v99
    %1810 = vmatprep.subr.mxu0 %v96
    %1811 = vmatpush1.msra.mxu0 %v95
    %1812 = vmatprep.subr.mxu0 %v92
    %1813 = vmatpush1.msra.mxu0 %v91
    %1814 = vmatprep.subr.mxu0 %v88
    %1815 = vmatpush1.msra.mxu0 %v87
    %1816 = vmatprep.subr.mxu0 %v84
    %1817 = vmatpush1.msra.mxu0 %v83
    %1818 = vmatprep.subr.mxu0 %v80
    %1819 = vmatpush1.msra.mxu0 %v79
    %1820 = vmatprep.subr.mxu0 %v76
    %1821 = vmatpush1.msra.mxu0 %v75
    %1822 = vmatprep.subr.mxu0 0.0
    %1823 = vmatpush2.msra.mxu0 0.0
    %1824 = vmatprep.subr.mxu0 0.0
    %1825 = vmatpush2.msra.mxu0 0.0
    %1826 = vmatprep.subr.mxu0 0.0
    %1827 = vmatpush2.msra.mxu0 0.0
    %1828 = vmatprep.subr.mxu0 0.0
    %1829 = vmatpush2.msra.mxu0 0.0
    %1830 = vmatprep.subr.mxu0 0.0
    %1831 = vmatpush2.msra.mxu0 0.0
    %1832 = vmatprep.subr.mxu0 0.0
    %1833 = vmatpush2.msra.mxu0 0.0
    %1834 = vmatprep.subr.mxu0 0.0
    %1835 = vmatpush2.msra.mxu0 0.0
    %1836 = vmatprep.subr.mxu0 0.0
    %1837 = vmatpush2.msra.mxu0 0.0
    %1838 = vmatprep.subr.mxu0 0.0
    %1839 = vmatpush2.msra.mxu0 0.0
    %1840 = vmatprep.subr.mxu0 0.0
    %1841 = vmatpush2.msra.mxu0 0.0
    %1842 = vmatprep.subr.mxu0 0.0
    %1843 = vmatpush2.msra.mxu0 0.0
    %1844 = vmatprep.subr.mxu0 0.0
    %1845 = vmatpush2.msra.mxu0 0.0
    %1846 = vmatprep.subr.mxu0 0.0
    %1847 = vmatpush2.msra.mxu0 0.0
    %1848 = vmatprep.subr.mxu0 0.0
    %1849 = vmatpush2.msra.mxu0 0.0
    %1850 = vmatprep.subr.mxu0 0.0
    %1851 = vmatpush2.msra.mxu0 0.0
    %1852 = vmatprep.subr.mxu0 0.0
    %1853 = vmatpush2.msra.mxu0 0.0
    %1854 = vmatprep.mubr.f32.mxu0 0.0
    %1855 = vmatmul.mubr.f32.gmra.mxu0 %v1716
    %v1856 = vpop.f32.mrf.mxu0
    %v1857 = vadd.f32 0.0, %v1856
    %v1858 = vpop.f32.mrf.mxu0
    %v1859 = vadd.f32 0.0, %v1858
    %1860 = vdwg.mxu0
    %v1862 = vsel %vm284, %v1718, 0
    %1864 = vmatprep.subr.mxu0 0.0
    %1865 = vmatpush1.msra.mxu0 0.0
    %1866 = vmatprep.subr.mxu0 0.0
    %1867 = vmatpush1.msra.mxu0 0.0
    %1868 = vmatprep.subr.mxu0 0.0
    %1869 = vmatpush1.msra.mxu0 0.0
    %1870 = vmatprep.subr.mxu0 0.0
    %1871 = vmatpush1.msra.mxu0 0.0
    %1872 = vmatprep.subr.mxu0 0.0
    %1873 = vmatpush1.msra.mxu0 0.0
    %1874 = vmatprep.subr.mxu0 0.0
    %1875 = vmatpush1.msra.mxu0 0.0
    %1876 = vmatprep.subr.mxu0 0.0
    %1877 = vmatpush1.msra.mxu0 0.0
    %1878 = vmatprep.subr.mxu0 0.0
    %1879 = vmatpush1.msra.mxu0 0.0
    %1880 = vmatprep.subr.mxu0 0.0
    %1881 = vmatpush1.msra.mxu0 0.0
    %1882 = vmatprep.subr.mxu0 0.0
    %1883 = vmatpush1.msra.mxu0 0.0
    %1884 = vmatprep.subr.mxu0 0.0
    %1885 = vmatpush1.msra.mxu0 0.0
    %1886 = vmatprep.subr.mxu0 0.0
    %1887 = vmatpush1.msra.mxu0 0.0
    %1888 = vmatprep.subr.mxu0 0.0
    %1889 = vmatpush1.msra.mxu0 0.0
    %1890 = vmatprep.subr.mxu0 0.0
    %1891 = vmatpush1.msra.mxu0 0.0
    %1892 = vmatprep.subr.mxu0 %v70
    %1893 = vmatpush1.msra.mxu0 %v69
    %1894 = vmatprep.subr.mxu0 %v66
    %1895 = vmatpush1.msra.mxu0 %v65
    %1896 = vmatprep.subr.mxu0 0.0
    %1897 = vmatpush2.msra.mxu0 0.0
    %1898 = vmatprep.subr.mxu0 0.0
    %1899 = vmatpush2.msra.mxu0 0.0
    %1900 = vmatprep.subr.mxu0 0.0
    %1901 = vmatpush2.msra.mxu0 0.0
    %1902 = vmatprep.subr.mxu0 0.0
    %1903 = vmatpush2.msra.mxu0 0.0
    %1904 = vmatprep.subr.mxu0 0.0
    %1905 = vmatpush2.msra.mxu0 0.0
    %1906 = vmatprep.subr.mxu0 0.0
    %1907 = vmatpush2.msra.mxu0 0.0
    %1908 = vmatprep.subr.mxu0 0.0
    %1909 = vmatpush2.msra.mxu0 0.0
    %1910 = vmatprep.subr.mxu0 0.0
    %1911 = vmatpush2.msra.mxu0 0.0
    %1912 = vmatprep.subr.mxu0 0.0
    %1913 = vmatpush2.msra.mxu0 0.0
    %1914 = vmatprep.subr.mxu0 0.0
    %1915 = vmatpush2.msra.mxu0 0.0
    %1916 = vmatprep.subr.mxu0 0.0
    %1917 = vmatpush2.msra.mxu0 0.0
    %1918 = vmatprep.subr.mxu0 0.0
    %1919 = vmatpush2.msra.mxu0 0.0
    %1920 = vmatprep.subr.mxu0 0.0
    %1921 = vmatpush2.msra.mxu0 0.0
    %1922 = vmatprep.subr.mxu0 0.0
    %1923 = vmatpush2.msra.mxu0 0.0
    %1924 = vmatprep.subr.mxu0 0.0
    %1925 = vmatpush2.msra.mxu0 0.0
    %1926 = vmatprep.subr.mxu0 0.0
    %1927 = vmatpush2.msra.mxu0 0.0
    %1928 = vmatprep.mubr.f32.mxu0 0.0
    %1929 = vmatmul.mubr.f32.gmra.mxu0 %v1862
    %v1930 = vpop.f32.mrf.mxu0
    %v1931 = vadd.f32 %v1786, %v1930
    %v1932 = vpop.f32.mrf.mxu0
    %v1933 = vadd.f32 %v1788, %v1932
    %1934 = vdwg.mxu0
    %1935 = vmatprep.subr.mxu0 0.0
    %1936 = vmatpush1.msra.mxu0 0.0
    %1937 = vmatprep.subr.mxu0 0.0
    %1938 = vmatpush1.msra.mxu0 0.0
    %1939 = vmatprep.subr.mxu0 0.0
    %1940 = vmatpush1.msra.mxu0 0.0
    %1941 = vmatprep.subr.mxu0 0.0
    %1942 = vmatpush1.msra.mxu0 0.0
    %1943 = vmatprep.subr.mxu0 0.0
    %1944 = vmatpush1.msra.mxu0 0.0
    %1945 = vmatprep.subr.mxu0 0.0
    %1946 = vmatpush1.msra.mxu0 0.0
    %1947 = vmatprep.subr.mxu0 0.0
    %1948 = vmatpush1.msra.mxu0 0.0
    %1949 = vmatprep.subr.mxu0 0.0
    %1950 = vmatpush1.msra.mxu0 0.0
    %1951 = vmatprep.subr.mxu0 0.0
    %1952 = vmatpush1.msra.mxu0 0.0
    %1953 = vmatprep.subr.mxu0 0.0
    %1954 = vmatpush1.msra.mxu0 0.0
    %1955 = vmatprep.subr.mxu0 0.0
    %1956 = vmatpush1.msra.mxu0 0.0
    %1957 = vmatprep.subr.mxu0 0.0
    %1958 = vmatpush1.msra.mxu0 0.0
    %1959 = vmatprep.subr.mxu0 0.0
    %1960 = vmatpush1.msra.mxu0 0.0
    %1961 = vmatprep.subr.mxu0 0.0
    %1962 = vmatpush1.msra.mxu0 0.0
    %1963 = vmatprep.subr.mxu0 %v72
    %1964 = vmatpush1.msra.mxu0 %v71
    %1965 = vmatprep.subr.mxu0 %v68
    %1966 = vmatpush1.msra.mxu0 %v67
    %1967 = vmatprep.subr.mxu0 0.0
    %1968 = vmatpush2.msra.mxu0 0.0
    %1969 = vmatprep.subr.mxu0 0.0
    %1970 = vmatpush2.msra.mxu0 0.0
    %1971 = vmatprep.subr.mxu0 0.0
    %1972 = vmatpush2.msra.mxu0 0.0
    %1973 = vmatprep.subr.mxu0 0.0
    %1974 = vmatpush2.msra.mxu0 0.0
    %1975 = vmatprep.subr.mxu0 0.0
    %1976 = vmatpush2.msra.mxu0 0.0
    %1977 = vmatprep.subr.mxu0 0.0
    %1978 = vmatpush2.msra.mxu0 0.0
    %1979 = vmatprep.subr.mxu0 0.0
    %1980 = vmatpush2.msra.mxu0 0.0
    %1981 = vmatprep.subr.mxu0 0.0
    %1982 = vmatpush2.msra.mxu0 0.0
    %1983 = vmatprep.subr.mxu0 0.0
    %1984 = vmatpush2.msra.mxu0 0.0
    %1985 = vmatprep.subr.mxu0 0.0
    %1986 = vmatpush2.msra.mxu0 0.0
    %1987 = vmatprep.subr.mxu0 0.0
    %1988 = vmatpush2.msra.mxu0 0.0
    %1989 = vmatprep.subr.mxu0 0.0
    %1990 = vmatpush2.msra.mxu0 0.0
    %1991 = vmatprep.subr.mxu0 0.0
    %1992 = vmatpush2.msra.mxu0 0.0
    %1993 = vmatprep.subr.mxu0 0.0
    %1994 = vmatpush2.msra.mxu0 0.0
    %1995 = vmatprep.subr.mxu0 0.0
    %1996 = vmatpush2.msra.mxu0 0.0
    %1997 = vmatprep.subr.mxu0 0.0
    %1998 = vmatpush2.msra.mxu0 0.0
    %1999 = vmatprep.mubr.f32.mxu0 0.0
    %2000 = vmatmul.mubr.f32.gmra.mxu0 %v1862
    %v2001 = vpop.f32.mrf.mxu0
    %v2002 = vadd.f32 %v1857, %v2001
    %v2003 = vpop.f32.mrf.mxu0
    %v2004 = vadd.f32 %v1859, %v2003
    %2005 = vdwg.mxu0
    %v2006 = vadd.f32 %v1931, %v434
    %v2007 = vadd.f32 %v1933, %v438
    %v2008 = vadd.f32 %v2002, %v442
    %v2009 = vadd.f32 %v2004, %v446
    %v2010 = vmul.f32 %v2006, 0.5
    %v2011 = vtanh.pop %v2010
    %v2012 = vadd.f32 %v2011, 1.0
    %v2013 = vmul.f32 %v2012, 0.5
    %v2014 = vmul.f32 %v2007, 0.5
    %v2015 = vtanh.pop %v2014
    %v2016 = vadd.f32 %v2015, 1.0
    %v2017 = vmul.f32 %v2016, 0.5
    %v2018 = vtanh.pop %v2008
    %v2019 = vmul.f32 %v2009, 0.5
    %v2020 = vtanh.pop %v2019
    %v2021 = vadd.f32 %v2020, 1.0
    %v2022 = vmul.f32 %v2021, 0.5
    %v2023 = vmul.f32 %v2017, %v1714
    %v2024 = vmul.f32 %v2013, %v2018
    %v2025 = vadd.f32 %v2023, %v2024
    %v2026 = vtanh.pop %v2025
    %v2027 = vmul.f32 %v2022, %v2026
    %s2028 = scalar_lea.vmem [#allocation3], 48
    %v2029 = vld [vmem:[%s2028] sm:$0xff]
    %2030 = vmatprep.subr.mxu0 %v134
    %2031 = vmatpush1.msra.mxu0 %v133
    %2032 = vmatprep.subr.mxu0 %v130
    %2033 = vmatpush1.msra.mxu0 %v129
    %2034 = vmatprep.subr.mxu0 %v126
    %2035 = vmatpush1.msra.mxu0 %v125
    %2036 = vmatprep.subr.mxu0 %v122
    %2037 = vmatpush1.msra.mxu0 %v121
    %2038 = vmatprep.subr.mxu0 %v118
    %2039 = vmatpush1.msra.mxu0 %v117
    %2040 = vmatprep.subr.mxu0 %v114
    %2041 = vmatpush1.msra.mxu0 %v113
    %2042 = vmatprep.subr.mxu0 %v110
    %2043 = vmatpush1.msra.mxu0 %v109
    %2044 = vmatprep.subr.mxu0 %v106
    %2045 = vmatpush1.msra.mxu0 %v105
    %2046 = vmatprep.subr.mxu0 %v102
    %2047 = vmatpush1.msra.mxu0 %v101
    %2048 = vmatprep.subr.mxu0 %v98
    %2049 = vmatpush1.msra.mxu0 %v97
    %2050 = vmatprep.subr.mxu0 %v94
    %2051 = vmatpush1.msra.mxu0 %v93
    %2052 = vmatprep.subr.mxu0 %v90
    %2053 = vmatpush1.msra.mxu0 %v89
    %2054 = vmatprep.subr.mxu0 %v86
    %2055 = vmatpush1.msra.mxu0 %v85
    %2056 = vmatprep.subr.mxu0 %v82
    %2057 = vmatpush1.msra.mxu0 %v81
    %2058 = vmatprep.subr.mxu0 %v78
    %2059 = vmatpush1.msra.mxu0 %v77
    %2060 = vmatprep.subr.mxu0 %v74
    %2061 = vmatpush1.msra.mxu0 %v73
    %2062 = vmatprep.subr.mxu0 0.0
    %2063 = vmatpush2.msra.mxu0 0.0
    %2064 = vmatprep.subr.mxu0 0.0
    %2065 = vmatpush2.msra.mxu0 0.0
    %2066 = vmatprep.subr.mxu0 0.0
    %2067 = vmatpush2.msra.mxu0 0.0
    %2068 = vmatprep.subr.mxu0 0.0
    %2069 = vmatpush2.msra.mxu0 0.0
    %2070 = vmatprep.subr.mxu0 0.0
    %2071 = vmatpush2.msra.mxu0 0.0
    %2072 = vmatprep.subr.mxu0 0.0
    %2073 = vmatpush2.msra.mxu0 0.0
    %2074 = vmatprep.subr.mxu0 0.0
    %2075 = vmatpush2.msra.mxu0 0.0
    %2076 = vmatprep.subr.mxu0 0.0
    %2077 = vmatpush2.msra.mxu0 0.0
    %2078 = vmatprep.subr.mxu0 0.0
    %2079 = vmatpush2.msra.mxu0 0.0
    %2080 = vmatprep.subr.mxu0 0.0
    %2081 = vmatpush2.msra.mxu0 0.0
    %2082 = vmatprep.subr.mxu0 0.0
    %2083 = vmatpush2.msra.mxu0 0.0
    %2084 = vmatprep.subr.mxu0 0.0
    %2085 = vmatpush2.msra.mxu0 0.0
    %2086 = vmatprep.subr.mxu0 0.0
    %2087 = vmatpush2.msra.mxu0 0.0
    %2088 = vmatprep.subr.mxu0 0.0
    %2089 = vmatpush2.msra.mxu0 0.0
    %2090 = vmatprep.subr.mxu0 0.0
    %2091 = vmatpush2.msra.mxu0 0.0
    %2092 = vmatprep.subr.mxu0 0.0
    %2093 = vmatpush2.msra.mxu0 0.0
    %2094 = vmatprep.mubr.f32.mxu0 0.0
    %2095 = vmatmul.mubr.f32.gmra.mxu0 %v2027
    %v2096 = vpop.f32.mrf.mxu0
    %v2097 = vadd.f32 0.0, %v2096
    %v2098 = vpop.f32.mrf.mxu0
    %v2099 = vadd.f32 0.0, %v2098
    %2100 = vdwg.mxu0
    %2101 = vmatprep.subr.mxu0 %v136
    %2102 = vmatpush1.msra.mxu0 %v135
    %2103 = vmatprep.subr.mxu0 %v132
    %2104 = vmatpush1.msra.mxu0 %v131
    %2105 = vmatprep.subr.mxu0 %v128
    %2106 = vmatpush1.msra.mxu0 %v127
    %2107 = vmatprep.subr.mxu0 %v124
    %2108 = vmatpush1.msra.mxu0 %v123
    %2109 = vmatprep.subr.mxu0 %v120
    %2110 = vmatpush1.msra.mxu0 %v119
    %2111 = vmatprep.subr.mxu0 %v116
    %2112 = vmatpush1.msra.mxu0 %v115
    %2113 = vmatprep.subr.mxu0 %v112
    %2114 = vmatpush1.msra.mxu0 %v111
    %2115 = vmatprep.subr.mxu0 %v108
    %2116 = vmatpush1.msra.mxu0 %v107
    %2117 = vmatprep.subr.mxu0 %v104
    %2118 = vmatpush1.msra.mxu0 %v103
    %2119 = vmatprep.subr.mxu0 %v100
    %2120 = vmatpush1.msra.mxu0 %v99
    %2121 = vmatprep.subr.mxu0 %v96
    %2122 = vmatpush1.msra.mxu0 %v95
    %2123 = vmatprep.subr.mxu0 %v92
    %2124 = vmatpush1.msra.mxu0 %v91
    %2125 = vmatprep.subr.mxu0 %v88
    %2126 = vmatpush1.msra.mxu0 %v87
    %2127 = vmatprep.subr.mxu0 %v84
    %2128 = vmatpush1.msra.mxu0 %v83
    %2129 = vmatprep.subr.mxu0 %v80
    %2130 = vmatpush1.msra.mxu0 %v79
    %2131 = vmatprep.subr.mxu0 %v76
    %2132 = vmatpush1.msra.mxu0 %v75
    %2133 = vmatprep.subr.mxu0 0.0
    %2134 = vmatpush2.msra.mxu0 0.0
    %2135 = vmatprep.subr.mxu0 0.0
    %2136 = vmatpush2.msra.mxu0 0.0
    %2137 = vmatprep.subr.mxu0 0.0
    %2138 = vmatpush2.msra.mxu0 0.0
    %2139 = vmatprep.subr.mxu0 0.0
    %2140 = vmatpush2.msra.mxu0 0.0
    %2141 = vmatprep.subr.mxu0 0.0
    %2142 = vmatpush2.msra.mxu0 0.0
    %2143 = vmatprep.subr.mxu0 0.0
    %2144 = vmatpush2.msra.mxu0 0.0
    %2145 = vmatprep.subr.mxu0 0.0
    %2146 = vmatpush2.msra.mxu0 0.0
    %2147 = vmatprep.subr.mxu0 0.0
    %2148 = vmatpush2.msra.mxu0 0.0
    %2149 = vmatprep.subr.mxu0 0.0
    %2150 = vmatpush2.msra.mxu0 0.0
    %2151 = vmatprep.subr.mxu0 0.0
    %2152 = vmatpush2.msra.mxu0 0.0
    %2153 = vmatprep.subr.mxu0 0.0
    %2154 = vmatpush2.msra.mxu0 0.0
    %2155 = vmatprep.subr.mxu0 0.0
    %2156 = vmatpush2.msra.mxu0 0.0
    %2157 = vmatprep.subr.mxu0 0.0
    %2158 = vmatpush2.msra.mxu0 0.0
    %2159 = vmatprep.subr.mxu0 0.0
    %2160 = vmatpush2.msra.mxu0 0.0
    %2161 = vmatprep.subr.mxu0 0.0
    %2162 = vmatpush2.msra.mxu0 0.0
    %2163 = vmatprep.subr.mxu0 0.0
    %2164 = vmatpush2.msra.mxu0 0.0
    %2165 = vmatprep.mubr.f32.mxu0 0.0
    %2166 = vmatmul.mubr.f32.gmra.mxu0 %v2027
    %v2167 = vpop.f32.mrf.mxu0
    %v2168 = vadd.f32 0.0, %v2167
    %v2169 = vpop.f32.mrf.mxu0
    %v2170 = vadd.f32 0.0, %v2169
    %2171 = vdwg.mxu0
    %v2173 = vsel %vm284, %v2029, 0
    %2175 = vmatprep.subr.mxu0 0.0
    %2176 = vmatpush1.msra.mxu0 0.0
    %2177 = vmatprep.subr.mxu0 0.0
    %2178 = vmatpush1.msra.mxu0 0.0
    %2179 = vmatprep.subr.mxu0 0.0
    %2180 = vmatpush1.msra.mxu0 0.0
    %2181 = vmatprep.subr.mxu0 0.0
    %2182 = vmatpush1.msra.mxu0 0.0
    %2183 = vmatprep.subr.mxu0 0.0
    %2184 = vmatpush1.msra.mxu0 0.0
    %2185 = vmatprep.subr.mxu0 0.0
    %2186 = vmatpush1.msra.mxu0 0.0
    %2187 = vmatprep.subr.mxu0 0.0
    %2188 = vmatpush1.msra.mxu0 0.0
    %2189 = vmatprep.subr.mxu0 0.0
    %2190 = vmatpush1.msra.mxu0 0.0
    %2191 = vmatprep.subr.mxu0 0.0
    %2192 = vmatpush1.msra.mxu0 0.0
    %2193 = vmatprep.subr.mxu0 0.0
    %2194 = vmatpush1.msra.mxu0 0.0
    %2195 = vmatprep.subr.mxu0 0.0
    %2196 = vmatpush1.msra.mxu0 0.0
    %2197 = vmatprep.subr.mxu0 0.0
    %2198 = vmatpush1.msra.mxu0 0.0
    %2199 = vmatprep.subr.mxu0 0.0
    %2200 = vmatpush1.msra.mxu0 0.0
    %2201 = vmatprep.subr.mxu0 0.0
    %2202 = vmatpush1.msra.mxu0 0.0
    %2203 = vmatprep.subr.mxu0 %v70
    %2204 = vmatpush1.msra.mxu0 %v69
    %2205 = vmatprep.subr.mxu0 %v66
    %2206 = vmatpush1.msra.mxu0 %v65
    %2207 = vmatprep.subr.mxu0 0.0
    %2208 = vmatpush2.msra.mxu0 0.0
    %2209 = vmatprep.subr.mxu0 0.0
    %2210 = vmatpush2.msra.mxu0 0.0
    %2211 = vmatprep.subr.mxu0 0.0
    %2212 = vmatpush2.msra.mxu0 0.0
    %2213 = vmatprep.subr.mxu0 0.0
    %2214 = vmatpush2.msra.mxu0 0.0
    %2215 = vmatprep.subr.mxu0 0.0
    %2216 = vmatpush2.msra.mxu0 0.0
    %2217 = vmatprep.subr.mxu0 0.0
    %2218 = vmatpush2.msra.mxu0 0.0
    %2219 = vmatprep.subr.mxu0 0.0
    %2220 = vmatpush2.msra.mxu0 0.0
    %2221 = vmatprep.subr.mxu0 0.0
    %2222 = vmatpush2.msra.mxu0 0.0
    %2223 = vmatprep.subr.mxu0 0.0
    %2224 = vmatpush2.msra.mxu0 0.0
    %2225 = vmatprep.subr.mxu0 0.0
    %2226 = vmatpush2.msra.mxu0 0.0
    %2227 = vmatprep.subr.mxu0 0.0
    %2228 = vmatpush2.msra.mxu0 0.0
    %2229 = vmatprep.subr.mxu0 0.0
    %2230 = vmatpush2.msra.mxu0 0.0
    %2231 = vmatprep.subr.mxu0 0.0
    %2232 = vmatpush2.msra.mxu0 0.0
    %2233 = vmatprep.subr.mxu0 0.0
    %2234 = vmatpush2.msra.mxu0 0.0
    %2235 = vmatprep.subr.mxu0 0.0
    %2236 = vmatpush2.msra.mxu0 0.0
    %2237 = vmatprep.subr.mxu0 0.0
    %2238 = vmatpush2.msra.mxu0 0.0
    %2239 = vmatprep.mubr.f32.mxu0 0.0
    %2240 = vmatmul.mubr.f32.gmra.mxu0 %v2173
    %v2241 = vpop.f32.mrf.mxu0
    %v2242 = vadd.f32 %v2097, %v2241
    %v2243 = vpop.f32.mrf.mxu0
    %v2244 = vadd.f32 %v2099, %v2243
    %2245 = vdwg.mxu0
    %2246 = vmatprep.subr.mxu0 0.0
    %2247 = vmatpush1.msra.mxu0 0.0
    %2248 = vmatprep.subr.mxu0 0.0
    %2249 = vmatpush1.msra.mxu0 0.0
    %2250 = vmatprep.subr.mxu0 0.0
    %2251 = vmatpush1.msra.mxu0 0.0
    %2252 = vmatprep.subr.mxu0 0.0
    %2253 = vmatpush1.msra.mxu0 0.0
    %2254 = vmatprep.subr.mxu0 0.0
    %2255 = vmatpush1.msra.mxu0 0.0
    %2256 = vmatprep.subr.mxu0 0.0
    %2257 = vmatpush1.msra.mxu0 0.0
    %2258 = vmatprep.subr.mxu0 0.0
    %2259 = vmatpush1.msra.mxu0 0.0
    %2260 = vmatprep.subr.mxu0 0.0
    %2261 = vmatpush1.msra.mxu0 0.0
    %2262 = vmatprep.subr.mxu0 0.0
    %2263 = vmatpush1.msra.mxu0 0.0
    %2264 = vmatprep.subr.mxu0 0.0
    %2265 = vmatpush1.msra.mxu0 0.0
    %2266 = vmatprep.subr.mxu0 0.0
    %2267 = vmatpush1.msra.mxu0 0.0
    %2268 = vmatprep.subr.mxu0 0.0
    %2269 = vmatpush1.msra.mxu0 0.0
    %2270 = vmatprep.subr.mxu0 0.0
    %2271 = vmatpush1.msra.mxu0 0.0
    %2272 = vmatprep.subr.mxu0 0.0
    %2273 = vmatpush1.msra.mxu0 0.0
    %2274 = vmatprep.subr.mxu0 %v72
    %2275 = vmatpush1.msra.mxu0 %v71
    %2276 = vmatprep.subr.mxu0 %v68
    %2277 = vmatpush1.msra.mxu0 %v67
    %2278 = vmatprep.subr.mxu0 0.0
    %2279 = vmatpush2.msra.mxu0 0.0
    %2280 = vmatprep.subr.mxu0 0.0
    %2281 = vmatpush2.msra.mxu0 0.0
    %2282 = vmatprep.subr.mxu0 0.0
    %2283 = vmatpush2.msra.mxu0 0.0
    %2284 = vmatprep.subr.mxu0 0.0
    %2285 = vmatpush2.msra.mxu0 0.0
    %2286 = vmatprep.subr.mxu0 0.0
    %2287 = vmatpush2.msra.mxu0 0.0
    %2288 = vmatprep.subr.mxu0 0.0
    %2289 = vmatpush2.msra.mxu0 0.0
    %2290 = vmatprep.subr.mxu0 0.0
    %2291 = vmatpush2.msra.mxu0 0.0
    %2292 = vmatprep.subr.mxu0 0.0
    %2293 = vmatpush2.msra.mxu0 0.0
    %2294 = vmatprep.subr.mxu0 0.0
    %2295 = vmatpush2.msra.mxu0 0.0
    %2296 = vmatprep.subr.mxu0 0.0
    %2297 = vmatpush2.msra.mxu0 0.0
    %2298 = vmatprep.subr.mxu0 0.0
    %2299 = vmatpush2.msra.mxu0 0.0
    %2300 = vmatprep.subr.mxu0 0.0
    %2301 = vmatpush2.msra.mxu0 0.0
    %2302 = vmatprep.subr.mxu0 0.0
    %2303 = vmatpush2.msra.mxu0 0.0
    %2304 = vmatprep.subr.mxu0 0.0
    %2305 = vmatpush2.msra.mxu0 0.0
    %2306 = vmatprep.subr.mxu0 0.0
    %2307 = vmatpush2.msra.mxu0 0.0
    %2308 = vmatprep.subr.mxu0 0.0
    %2309 = vmatpush2.msra.mxu0 0.0
    %2310 = vmatprep.mubr.f32.mxu0 0.0
    %2311 = vmatmul.mubr.f32.gmra.mxu0 %v2173
    %v2312 = vpop.f32.mrf.mxu0
    %v2313 = vadd.f32 %v2168, %v2312
    %v2314 = vpop.f32.mrf.mxu0
    %v2315 = vadd.f32 %v2170, %v2314
    %2316 = vdwg.mxu0
    %v2317 = vadd.f32 %v2242, %v434
    %v2318 = vadd.f32 %v2244, %v438
    %v2319 = vadd.f32 %v2313, %v442
    %v2320 = vadd.f32 %v2315, %v446
    %v2321 = vmul.f32 %v2317, 0.5
    %v2322 = vtanh.pop %v2321
    %v2323 = vadd.f32 %v2322, 1.0
    %v2324 = vmul.f32 %v2323, 0.5
    %v2325 = vmul.f32 %v2318, 0.5
    %v2326 = vtanh.pop %v2325
    %v2327 = vadd.f32 %v2326, 1.0
    %v2328 = vmul.f32 %v2327, 0.5
    %v2329 = vtanh.pop %v2319
    %v2330 = vmul.f32 %v2320, 0.5
    %v2331 = vtanh.pop %v2330
    %v2332 = vadd.f32 %v2331, 1.0
    %v2333 = vmul.f32 %v2332, 0.5
    %v2334 = vmul.f32 %v2328, %v2025
    %v2335 = vmul.f32 %v2324, %v2329
    %v2336 = vadd.f32 %v2334, %v2335
    %v2337 = vtanh.pop %v2336
    %v2338 = vmul.f32 %v2333, %v2337
    %s2339 = scalar_lea.vmem [#allocation3], 56
    %v2340 = vld [vmem:[%s2339] sm:$0xff]
    %2341 = vmatprep.subr.mxu0 %v134
    %2342 = vmatpush1.msra.mxu0 %v133
    %2343 = vmatprep.subr.mxu0 %v130
    %2344 = vmatpush1.msra.mxu0 %v129
    %2345 = vmatprep.subr.mxu0 %v126
    %2346 = vmatpush1.msra.mxu0 %v125
    %2347 = vmatprep.subr.mxu0 %v122
    %2348 = vmatpush1.msra.mxu0 %v121
    %2349 = vmatprep.subr.mxu0 %v118
    %2350 = vmatpush1.msra.mxu0 %v117
    %2351 = vmatprep.subr.mxu0 %v114
    %2352 = vmatpush1.msra.mxu0 %v113
    %2353 = vmatprep.subr.mxu0 %v110
    %2354 = vmatpush1.msra.mxu0 %v109
    %2355 = vmatprep.subr.mxu0 %v106
    %2356 = vmatpush1.msra.mxu0 %v105
    %2357 = vmatprep.subr.mxu0 %v102
    %2358 = vmatpush1.msra.mxu0 %v101
    %2359 = vmatprep.subr.mxu0 %v98
    %2360 = vmatpush1.msra.mxu0 %v97
    %2361 = vmatprep.subr.mxu0 %v94
    %2362 = vmatpush1.msra.mxu0 %v93
    %2363 = vmatprep.subr.mxu0 %v90
    %2364 = vmatpush1.msra.mxu0 %v89
    %2365 = vmatprep.subr.mxu0 %v86
    %2366 = vmatpush1.msra.mxu0 %v85
    %2367 = vmatprep.subr.mxu0 %v82
    %2368 = vmatpush1.msra.mxu0 %v81
    %2369 = vmatprep.subr.mxu0 %v78
    %2370 = vmatpush1.msra.mxu0 %v77
    %2371 = vmatprep.subr.mxu0 %v74
    %2372 = vmatpush1.msra.mxu0 %v73
    %2373 = vmatprep.subr.mxu0 0.0
    %2374 = vmatpush2.msra.mxu0 0.0
    %2375 = vmatprep.subr.mxu0 0.0
    %2376 = vmatpush2.msra.mxu0 0.0
    %2377 = vmatprep.subr.mxu0 0.0
    %2378 = vmatpush2.msra.mxu0 0.0
    %2379 = vmatprep.subr.mxu0 0.0
    %2380 = vmatpush2.msra.mxu0 0.0
    %2381 = vmatprep.subr.mxu0 0.0
    %2382 = vmatpush2.msra.mxu0 0.0
    %2383 = vmatprep.subr.mxu0 0.0
    %2384 = vmatpush2.msra.mxu0 0.0
    %2385 = vmatprep.subr.mxu0 0.0
    %2386 = vmatpush2.msra.mxu0 0.0
    %2387 = vmatprep.subr.mxu0 0.0
    %2388 = vmatpush2.msra.mxu0 0.0
    %2389 = vmatprep.subr.mxu0 0.0
    %2390 = vmatpush2.msra.mxu0 0.0
    %2391 = vmatprep.subr.mxu0 0.0
    %2392 = vmatpush2.msra.mxu0 0.0
    %2393 = vmatprep.subr.mxu0 0.0
    %2394 = vmatpush2.msra.mxu0 0.0
    %2395 = vmatprep.subr.mxu0 0.0
    %2396 = vmatpush2.msra.mxu0 0.0
    %2397 = vmatprep.subr.mxu0 0.0
    %2398 = vmatpush2.msra.mxu0 0.0
    %2399 = vmatprep.subr.mxu0 0.0
    %2400 = vmatpush2.msra.mxu0 0.0
    %2401 = vmatprep.subr.mxu0 0.0
    %2402 = vmatpush2.msra.mxu0 0.0
    %2403 = vmatprep.subr.mxu0 0.0
    %2404 = vmatpush2.msra.mxu0 0.0
    %2405 = vmatprep.mubr.f32.mxu0 0.0
    %2406 = vmatmul.mubr.f32.gmra.mxu0 %v2338
    %v2407 = vpop.f32.mrf.mxu0
    %v2408 = vadd.f32 0.0, %v2407
    %v2409 = vpop.f32.mrf.mxu0
    %v2410 = vadd.f32 0.0, %v2409
    %2411 = vdwg.mxu0
    %2412 = vmatprep.subr.mxu0 %v136
    %2413 = vmatpush1.msra.mxu0 %v135
    %2414 = vmatprep.subr.mxu0 %v132
    %2415 = vmatpush1.msra.mxu0 %v131
    %2416 = vmatprep.subr.mxu0 %v128
    %2417 = vmatpush1.msra.mxu0 %v127
    %2418 = vmatprep.subr.mxu0 %v124
    %2419 = vmatpush1.msra.mxu0 %v123
    %2420 = vmatprep.subr.mxu0 %v120
    %2421 = vmatpush1.msra.mxu0 %v119
    %2422 = vmatprep.subr.mxu0 %v116
    %2423 = vmatpush1.msra.mxu0 %v115
    %2424 = vmatprep.subr.mxu0 %v112
    %2425 = vmatpush1.msra.mxu0 %v111
    %2426 = vmatprep.subr.mxu0 %v108
    %2427 = vmatpush1.msra.mxu0 %v107
    %2428 = vmatprep.subr.mxu0 %v104
    %2429 = vmatpush1.msra.mxu0 %v103
    %2430 = vmatprep.subr.mxu0 %v100
    %2431 = vmatpush1.msra.mxu0 %v99
    %2432 = vmatprep.subr.mxu0 %v96
    %2433 = vmatpush1.msra.mxu0 %v95
    %2434 = vmatprep.subr.mxu0 %v92
    %2435 = vmatpush1.msra.mxu0 %v91
    %2436 = vmatprep.subr.mxu0 %v88
    %2437 = vmatpush1.msra.mxu0 %v87
    %2438 = vmatprep.subr.mxu0 %v84
    %2439 = vmatpush1.msra.mxu0 %v83
    %2440 = vmatprep.subr.mxu0 %v80
    %2441 = vmatpush1.msra.mxu0 %v79
    %2442 = vmatprep.subr.mxu0 %v76
    %2443 = vmatpush1.msra.mxu0 %v75
    %2444 = vmatprep.subr.mxu0 0.0
    %2445 = vmatpush2.msra.mxu0 0.0
    %2446 = vmatprep.subr.mxu0 0.0
    %2447 = vmatpush2.msra.mxu0 0.0
    %2448 = vmatprep.subr.mxu0 0.0
    %2449 = vmatpush2.msra.mxu0 0.0
    %2450 = vmatprep.subr.mxu0 0.0
    %2451 = vmatpush2.msra.mxu0 0.0
    %2452 = vmatprep.subr.mxu0 0.0
    %2453 = vmatpush2.msra.mxu0 0.0
    %2454 = vmatprep.subr.mxu0 0.0
    %2455 = vmatpush2.msra.mxu0 0.0
    %2456 = vmatprep.subr.mxu0 0.0
    %2457 = vmatpush2.msra.mxu0 0.0
    %2458 = vmatprep.subr.mxu0 0.0
    %2459 = vmatpush2.msra.mxu0 0.0
    %2460 = vmatprep.subr.mxu0 0.0
    %2461 = vmatpush2.msra.mxu0 0.0
    %2462 = vmatprep.subr.mxu0 0.0
    %2463 = vmatpush2.msra.mxu0 0.0
    %2464 = vmatprep.subr.mxu0 0.0
    %2465 = vmatpush2.msra.mxu0 0.0
    %2466 = vmatprep.subr.mxu0 0.0
    %2467 = vmatpush2.msra.mxu0 0.0
    %2468 = vmatprep.subr.mxu0 0.0
    %2469 = vmatpush2.msra.mxu0 0.0
    %2470 = vmatprep.subr.mxu0 0.0
    %2471 = vmatpush2.msra.mxu0 0.0
    %2472 = vmatprep.subr.mxu0 0.0
    %2473 = vmatpush2.msra.mxu0 0.0
    %2474 = vmatprep.subr.mxu0 0.0
    %2475 = vmatpush2.msra.mxu0 0.0
    %2476 = vmatprep.mubr.f32.mxu0 0.0
    %2477 = vmatmul.mubr.f32.gmra.mxu0 %v2338
    %v2478 = vpop.f32.mrf.mxu0
    %v2479 = vadd.f32 0.0, %v2478
    %v2480 = vpop.f32.mrf.mxu0
    %v2481 = vadd.f32 0.0, %v2480
    %2482 = vdwg.mxu0
    %v2484 = vsel %vm284, %v2340, 0
    %2486 = vmatprep.subr.mxu0 0.0
    %2487 = vmatpush1.msra.mxu0 0.0
    %2488 = vmatprep.subr.mxu0 0.0
    %2489 = vmatpush1.msra.mxu0 0.0
    %2490 = vmatprep.subr.mxu0 0.0
    %2491 = vmatpush1.msra.mxu0 0.0
    %2492 = vmatprep.subr.mxu0 0.0
    %2493 = vmatpush1.msra.mxu0 0.0
    %2494 = vmatprep.subr.mxu0 0.0
    %2495 = vmatpush1.msra.mxu0 0.0
    %2496 = vmatprep.subr.mxu0 0.0
    %2497 = vmatpush1.msra.mxu0 0.0
    %2498 = vmatprep.subr.mxu0 0.0
    %2499 = vmatpush1.msra.mxu0 0.0
    %2500 = vmatprep.subr.mxu0 0.0
    %2501 = vmatpush1.msra.mxu0 0.0
    %2502 = vmatprep.subr.mxu0 0.0
    %2503 = vmatpush1.msra.mxu0 0.0
    %2504 = vmatprep.subr.mxu0 0.0
    %2505 = vmatpush1.msra.mxu0 0.0
    %2506 = vmatprep.subr.mxu0 0.0
    %2507 = vmatpush1.msra.mxu0 0.0
    %2508 = vmatprep.subr.mxu0 0.0
    %2509 = vmatpush1.msra.mxu0 0.0
    %2510 = vmatprep.subr.mxu0 0.0
    %2511 = vmatpush1.msra.mxu0 0.0
    %2512 = vmatprep.subr.mxu0 0.0
    %2513 = vmatpush1.msra.mxu0 0.0
    %2514 = vmatprep.subr.mxu0 %v70
    %2515 = vmatpush1.msra.mxu0 %v69
    %2516 = vmatprep.subr.mxu0 %v66
    %2517 = vmatpush1.msra.mxu0 %v65
    %2518 = vmatprep.subr.mxu0 0.0
    %2519 = vmatpush2.msra.mxu0 0.0
    %2520 = vmatprep.subr.mxu0 0.0
    %2521 = vmatpush2.msra.mxu0 0.0
    %2522 = vmatprep.subr.mxu0 0.0
    %2523 = vmatpush2.msra.mxu0 0.0
    %2524 = vmatprep.subr.mxu0 0.0
    %2525 = vmatpush2.msra.mxu0 0.0
    %2526 = vmatprep.subr.mxu0 0.0
    %2527 = vmatpush2.msra.mxu0 0.0
    %2528 = vmatprep.subr.mxu0 0.0
    %2529 = vmatpush2.msra.mxu0 0.0
    %2530 = vmatprep.subr.mxu0 0.0
    %2531 = vmatpush2.msra.mxu0 0.0
    %2532 = vmatprep.subr.mxu0 0.0
    %2533 = vmatpush2.msra.mxu0 0.0
    %2534 = vmatprep.subr.mxu0 0.0
    %2535 = vmatpush2.msra.mxu0 0.0
    %2536 = vmatprep.subr.mxu0 0.0
    %2537 = vmatpush2.msra.mxu0 0.0
    %2538 = vmatprep.subr.mxu0 0.0
    %2539 = vmatpush2.msra.mxu0 0.0
    %2540 = vmatprep.subr.mxu0 0.0
    %2541 = vmatpush2.msra.mxu0 0.0
    %2542 = vmatprep.subr.mxu0 0.0
    %2543 = vmatpush2.msra.mxu0 0.0
    %2544 = vmatprep.subr.mxu0 0.0
    %2545 = vmatpush2.msra.mxu0 0.0
    %2546 = vmatprep.subr.mxu0 0.0
    %2547 = vmatpush2.msra.mxu0 0.0
    %2548 = vmatprep.subr.mxu0 0.0
    %2549 = vmatpush2.msra.mxu0 0.0
    %2550 = vmatprep.mubr.f32.mxu0 0.0
    %2551 = vmatmul.mubr.f32.gmra.mxu0 %v2484
    %v2552 = vpop.f32.mrf.mxu0
    %v2553 = vadd.f32 %v2408, %v2552
    %v2554 = vpop.f32.mrf.mxu0
    %v2555 = vadd.f32 %v2410, %v2554
    %2556 = vdwg.mxu0
    %2557 = vmatprep.subr.mxu0 0.0
    %2558 = vmatpush1.msra.mxu0 0.0
    %2559 = vmatprep.subr.mxu0 0.0
    %2560 = vmatpush1.msra.mxu0 0.0
    %2561 = vmatprep.subr.mxu0 0.0
    %2562 = vmatpush1.msra.mxu0 0.0
    %2563 = vmatprep.subr.mxu0 0.0
    %2564 = vmatpush1.msra.mxu0 0.0
    %2565 = vmatprep.subr.mxu0 0.0
    %2566 = vmatpush1.msra.mxu0 0.0
    %2567 = vmatprep.subr.mxu0 0.0
    %2568 = vmatpush1.msra.mxu0 0.0
    %2569 = vmatprep.subr.mxu0 0.0
    %2570 = vmatpush1.msra.mxu0 0.0
    %2571 = vmatprep.subr.mxu0 0.0
    %2572 = vmatpush1.msra.mxu0 0.0
    %2573 = vmatprep.subr.mxu0 0.0
    %2574 = vmatpush1.msra.mxu0 0.0
    %2575 = vmatprep.subr.mxu0 0.0
    %2576 = vmatpush1.msra.mxu0 0.0
    %2577 = vmatprep.subr.mxu0 0.0
    %2578 = vmatpush1.msra.mxu0 0.0
    %2579 = vmatprep.subr.mxu0 0.0
    %2580 = vmatpush1.msra.mxu0 0.0
    %2581 = vmatprep.subr.mxu0 0.0
    %2582 = vmatpush1.msra.mxu0 0.0
    %2583 = vmatprep.subr.mxu0 0.0
    %2584 = vmatpush1.msra.mxu0 0.0
    %2585 = vmatprep.subr.mxu0 %v72
    %2586 = vmatpush1.msra.mxu0 %v71
    %2587 = vmatprep.subr.mxu0 %v68
    %2588 = vmatpush1.msra.mxu0 %v67
    %2589 = vmatprep.subr.mxu0 0.0
    %2590 = vmatpush2.msra.mxu0 0.0
    %2591 = vmatprep.subr.mxu0 0.0
    %2592 = vmatpush2.msra.mxu0 0.0
    %2593 = vmatprep.subr.mxu0 0.0
    %2594 = vmatpush2.msra.mxu0 0.0
    %2595 = vmatprep.subr.mxu0 0.0
    %2596 = vmatpush2.msra.mxu0 0.0
    %2597 = vmatprep.subr.mxu0 0.0
    %2598 = vmatpush2.msra.mxu0 0.0
    %2599 = vmatprep.subr.mxu0 0.0
    %2600 = vmatpush2.msra.mxu0 0.0
    %2601 = vmatprep.subr.mxu0 0.0
    %2602 = vmatpush2.msra.mxu0 0.0
    %2603 = vmatprep.subr.mxu0 0.0
    %2604 = vmatpush2.msra.mxu0 0.0
    %2605 = vmatprep.subr.mxu0 0.0
    %2606 = vmatpush2.msra.mxu0 0.0
    %2607 = vmatprep.subr.mxu0 0.0
    %2608 = vmatpush2.msra.mxu0 0.0
    %2609 = vmatprep.subr.mxu0 0.0
    %2610 = vmatpush2.msra.mxu0 0.0
    %2611 = vmatprep.subr.mxu0 0.0
    %2612 = vmatpush2.msra.mxu0 0.0
    %2613 = vmatprep.subr.mxu0 0.0
    %2614 = vmatpush2.msra.mxu0 0.0
    %2615 = vmatprep.subr.mxu0 0.0
    %2616 = vmatpush2.msra.mxu0 0.0
    %2617 = vmatprep.subr.mxu0 0.0
    %2618 = vmatpush2.msra.mxu0 0.0
    %2619 = vmatprep.subr.mxu0 0.0
    %2620 = vmatpush2.msra.mxu0 0.0
    %2621 = vmatprep.mubr.f32.mxu0 0.0
    %2622 = vmatmul.mubr.f32.gmra.mxu0 %v2484
    %v2623 = vpop.f32.mrf.mxu0
    %v2624 = vadd.f32 %v2479, %v2623
    %v2625 = vpop.f32.mrf.mxu0
    %v2626 = vadd.f32 %v2481, %v2625
    %2627 = vdwg.mxu0
    %v2628 = vadd.f32 %v2553, %v434
    %v2629 = vadd.f32 %v2555, %v438
    %v2630 = vadd.f32 %v2624, %v442
    %v2631 = vadd.f32 %v2626, %v446
    %v2632 = vmul.f32 %v2628, 0.5
    %v2633 = vtanh.pop %v2632
    %v2634 = vadd.f32 %v2633, 1.0
    %v2635 = vmul.f32 %v2634, 0.5
    %v2636 = vmul.f32 %v2629, 0.5
    %v2637 = vtanh.pop %v2636
    %v2638 = vadd.f32 %v2637, 1.0
    %v2639 = vmul.f32 %v2638, 0.5
    %v2640 = vtanh.pop %v2630
    %v2641 = vmul.f32 %v2631, 0.5
    %v2642 = vtanh.pop %v2641
    %v2643 = vadd.f32 %v2642, 1.0
    %v2644 = vmul.f32 %v2643, 0.5
    %v2645 = vmul.f32 %v2639, %v2336
    %v2646 = vmul.f32 %v2635, %v2640
    %v2647 = vadd.f32 %v2645, %v2646
    %v2648 = vtanh.pop %v2647
    %v2649 = vmul.f32 %v2644, %v2648
    %s2650 = scalar_lea.vmem [#allocation3], 64
    %v2651 = vld [vmem:[%s2650] sm:$0xff]
    %2652 = vmatprep.subr.mxu0 %v134
    %2653 = vmatpush1.msra.mxu0 %v133
    %2654 = vmatprep.subr.mxu0 %v130
    %2655 = vmatpush1.msra.mxu0 %v129
    %2656 = vmatprep.subr.mxu0 %v126
    %2657 = vmatpush1.msra.mxu0 %v125
    %2658 = vmatprep.subr.mxu0 %v122
    %2659 = vmatpush1.msra.mxu0 %v121
    %2660 = vmatprep.subr.mxu0 %v118
    %2661 = vmatpush1.msra.mxu0 %v117
    %2662 = vmatprep.subr.mxu0 %v114
    %2663 = vmatpush1.msra.mxu0 %v113
    %2664 = vmatprep.subr.mxu0 %v110
    %2665 = vmatpush1.msra.mxu0 %v109
    %2666 = vmatprep.subr.mxu0 %v106
    %2667 = vmatpush1.msra.mxu0 %v105
    %2668 = vmatprep.subr.mxu0 %v102
    %2669 = vmatpush1.msra.mxu0 %v101
    %2670 = vmatprep.subr.mxu0 %v98
    %2671 = vmatpush1.msra.mxu0 %v97
    %2672 = vmatprep.subr.mxu0 %v94
    %2673 = vmatpush1.msra.mxu0 %v93
    %2674 = vmatprep.subr.mxu0 %v90
    %2675 = vmatpush1.msra.mxu0 %v89
    %2676 = vmatprep.subr.mxu0 %v86
    %2677 = vmatpush1.msra.mxu0 %v85
    %2678 = vmatprep.subr.mxu0 %v82
    %2679 = vmatpush1.msra.mxu0 %v81
    %2680 = vmatprep.subr.mxu0 %v78
    %2681 = vmatpush1.msra.mxu0 %v77
    %2682 = vmatprep.subr.mxu0 %v74
    %2683 = vmatpush1.msra.mxu0 %v73
    %2684 = vmatprep.subr.mxu0 0.0
    %2685 = vmatpush2.msra.mxu0 0.0
    %2686 = vmatprep.subr.mxu0 0.0
    %2687 = vmatpush2.msra.mxu0 0.0
    %2688 = vmatprep.subr.mxu0 0.0
    %2689 = vmatpush2.msra.mxu0 0.0
    %2690 = vmatprep.subr.mxu0 0.0
    %2691 = vmatpush2.msra.mxu0 0.0
    %2692 = vmatprep.subr.mxu0 0.0
    %2693 = vmatpush2.msra.mxu0 0.0
    %2694 = vmatprep.subr.mxu0 0.0
    %2695 = vmatpush2.msra.mxu0 0.0
    %2696 = vmatprep.subr.mxu0 0.0
    %2697 = vmatpush2.msra.mxu0 0.0
    %2698 = vmatprep.subr.mxu0 0.0
    %2699 = vmatpush2.msra.mxu0 0.0
    %2700 = vmatprep.subr.mxu0 0.0
    %2701 = vmatpush2.msra.mxu0 0.0
    %2702 = vmatprep.subr.mxu0 0.0
    %2703 = vmatpush2.msra.mxu0 0.0
    %2704 = vmatprep.subr.mxu0 0.0
    %2705 = vmatpush2.msra.mxu0 0.0
    %2706 = vmatprep.subr.mxu0 0.0
    %2707 = vmatpush2.msra.mxu0 0.0
    %2708 = vmatprep.subr.mxu0 0.0
    %2709 = vmatpush2.msra.mxu0 0.0
    %2710 = vmatprep.subr.mxu0 0.0
    %2711 = vmatpush2.msra.mxu0 0.0
    %2712 = vmatprep.subr.mxu0 0.0
    %2713 = vmatpush2.msra.mxu0 0.0
    %2714 = vmatprep.subr.mxu0 0.0
    %2715 = vmatpush2.msra.mxu0 0.0
    %2716 = vmatprep.mubr.f32.mxu0 0.0
    %2717 = vmatmul.mubr.f32.gmra.mxu0 %v2649
    %v2718 = vpop.f32.mrf.mxu0
    %v2719 = vadd.f32 0.0, %v2718
    %v2720 = vpop.f32.mrf.mxu0
    %v2721 = vadd.f32 0.0, %v2720
    %2722 = vdwg.mxu0
    %2723 = vmatprep.subr.mxu0 %v136
    %2724 = vmatpush1.msra.mxu0 %v135
    %2725 = vmatprep.subr.mxu0 %v132
    %2726 = vmatpush1.msra.mxu0 %v131
    %2727 = vmatprep.subr.mxu0 %v128
    %2728 = vmatpush1.msra.mxu0 %v127
    %2729 = vmatprep.subr.mxu0 %v124
    %2730 = vmatpush1.msra.mxu0 %v123
    %2731 = vmatprep.subr.mxu0 %v120
    %2732 = vmatpush1.msra.mxu0 %v119
    %2733 = vmatprep.subr.mxu0 %v116
    %2734 = vmatpush1.msra.mxu0 %v115
    %2735 = vmatprep.subr.mxu0 %v112
    %2736 = vmatpush1.msra.mxu0 %v111
    %2737 = vmatprep.subr.mxu0 %v108
    %2738 = vmatpush1.msra.mxu0 %v107
    %2739 = vmatprep.subr.mxu0 %v104
    %2740 = vmatpush1.msra.mxu0 %v103
    %2741 = vmatprep.subr.mxu0 %v100
    %2742 = vmatpush1.msra.mxu0 %v99
    %2743 = vmatprep.subr.mxu0 %v96
    %2744 = vmatpush1.msra.mxu0 %v95
    %2745 = vmatprep.subr.mxu0 %v92
    %2746 = vmatpush1.msra.mxu0 %v91
    %2747 = vmatprep.subr.mxu0 %v88
    %2748 = vmatpush1.msra.mxu0 %v87
    %2749 = vmatprep.subr.mxu0 %v84
    %2750 = vmatpush1.msra.mxu0 %v83
    %2751 = vmatprep.subr.mxu0 %v80
    %2752 = vmatpush1.msra.mxu0 %v79
    %2753 = vmatprep.subr.mxu0 %v76
    %2754 = vmatpush1.msra.mxu0 %v75
    %2755 = vmatprep.subr.mxu0 0.0
    %2756 = vmatpush2.msra.mxu0 0.0
    %2757 = vmatprep.subr.mxu0 0.0
    %2758 = vmatpush2.msra.mxu0 0.0
    %2759 = vmatprep.subr.mxu0 0.0
    %2760 = vmatpush2.msra.mxu0 0.0
    %2761 = vmatprep.subr.mxu0 0.0
    %2762 = vmatpush2.msra.mxu0 0.0
    %2763 = vmatprep.subr.mxu0 0.0
    %2764 = vmatpush2.msra.mxu0 0.0
    %2765 = vmatprep.subr.mxu0 0.0
    %2766 = vmatpush2.msra.mxu0 0.0
    %2767 = vmatprep.subr.mxu0 0.0
    %2768 = vmatpush2.msra.mxu0 0.0
    %2769 = vmatprep.subr.mxu0 0.0
    %2770 = vmatpush2.msra.mxu0 0.0
    %2771 = vmatprep.subr.mxu0 0.0
    %2772 = vmatpush2.msra.mxu0 0.0
    %2773 = vmatprep.subr.mxu0 0.0
    %2774 = vmatpush2.msra.mxu0 0.0
    %2775 = vmatprep.subr.mxu0 0.0
    %2776 = vmatpush2.msra.mxu0 0.0
    %2777 = vmatprep.subr.mxu0 0.0
    %2778 = vmatpush2.msra.mxu0 0.0
    %2779 = vmatprep.subr.mxu0 0.0
    %2780 = vmatpush2.msra.mxu0 0.0
    %2781 = vmatprep.subr.mxu0 0.0
    %2782 = vmatpush2.msra.mxu0 0.0
    %2783 = vmatprep.subr.mxu0 0.0
    %2784 = vmatpush2.msra.mxu0 0.0
    %2785 = vmatprep.subr.mxu0 0.0
    %2786 = vmatpush2.msra.mxu0 0.0
    %2787 = vmatprep.mubr.f32.mxu0 0.0
    %2788 = vmatmul.mubr.f32.gmra.mxu0 %v2649
    %v2789 = vpop.f32.mrf.mxu0
    %v2790 = vadd.f32 0.0, %v2789
    %v2791 = vpop.f32.mrf.mxu0
    %v2792 = vadd.f32 0.0, %v2791
    %2793 = vdwg.mxu0
    %v2795 = vsel %vm284, %v2651, 0
    %2797 = vmatprep.subr.mxu0 0.0
    %2798 = vmatpush1.msra.mxu0 0.0
    %2799 = vmatprep.subr.mxu0 0.0
    %2800 = vmatpush1.msra.mxu0 0.0
    %2801 = vmatprep.subr.mxu0 0.0
    %2802 = vmatpush1.msra.mxu0 0.0
    %2803 = vmatprep.subr.mxu0 0.0
    %2804 = vmatpush1.msra.mxu0 0.0
    %2805 = vmatprep.subr.mxu0 0.0
    %2806 = vmatpush1.msra.mxu0 0.0
    %2807 = vmatprep.subr.mxu0 0.0
    %2808 = vmatpush1.msra.mxu0 0.0
    %2809 = vmatprep.subr.mxu0 0.0
    %2810 = vmatpush1.msra.mxu0 0.0
    %2811 = vmatprep.subr.mxu0 0.0
    %2812 = vmatpush1.msra.mxu0 0.0
    %2813 = vmatprep.subr.mxu0 0.0
    %2814 = vmatpush1.msra.mxu0 0.0
    %2815 = vmatprep.subr.mxu0 0.0
    %2816 = vmatpush1.msra.mxu0 0.0
    %2817 = vmatprep.subr.mxu0 0.0
    %2818 = vmatpush1.msra.mxu0 0.0
    %2819 = vmatprep.subr.mxu0 0.0
    %2820 = vmatpush1.msra.mxu0 0.0
    %2821 = vmatprep.subr.mxu0 0.0
    %2822 = vmatpush1.msra.mxu0 0.0
    %2823 = vmatprep.subr.mxu0 0.0
    %2824 = vmatpush1.msra.mxu0 0.0
    %2825 = vmatprep.subr.mxu0 %v70
    %2826 = vmatpush1.msra.mxu0 %v69
    %2827 = vmatprep.subr.mxu0 %v66
    %2828 = vmatpush1.msra.mxu0 %v65
    %2829 = vmatprep.subr.mxu0 0.0
    %2830 = vmatpush2.msra.mxu0 0.0
    %2831 = vmatprep.subr.mxu0 0.0
    %2832 = vmatpush2.msra.mxu0 0.0
    %2833 = vmatprep.subr.mxu0 0.0
    %2834 = vmatpush2.msra.mxu0 0.0
    %2835 = vmatprep.subr.mxu0 0.0
    %2836 = vmatpush2.msra.mxu0 0.0
    %2837 = vmatprep.subr.mxu0 0.0
    %2838 = vmatpush2.msra.mxu0 0.0
    %2839 = vmatprep.subr.mxu0 0.0
    %2840 = vmatpush2.msra.mxu0 0.0
    %2841 = vmatprep.subr.mxu0 0.0
    %2842 = vmatpush2.msra.mxu0 0.0
    %2843 = vmatprep.subr.mxu0 0.0
    %2844 = vmatpush2.msra.mxu0 0.0
    %2845 = vmatprep.subr.mxu0 0.0
    %2846 = vmatpush2.msra.mxu0 0.0
    %2847 = vmatprep.subr.mxu0 0.0
    %2848 = vmatpush2.msra.mxu0 0.0
    %2849 = vmatprep.subr.mxu0 0.0
    %2850 = vmatpush2.msra.mxu0 0.0
    %2851 = vmatprep.subr.mxu0 0.0
    %2852 = vmatpush2.msra.mxu0 0.0
    %2853 = vmatprep.subr.mxu0 0.0
    %2854 = vmatpush2.msra.mxu0 0.0
    %2855 = vmatprep.subr.mxu0 0.0
    %2856 = vmatpush2.msra.mxu0 0.0
    %2857 = vmatprep.subr.mxu0 0.0
    %2858 = vmatpush2.msra.mxu0 0.0
    %2859 = vmatprep.subr.mxu0 0.0
    %2860 = vmatpush2.msra.mxu0 0.0
    %2861 = vmatprep.mubr.f32.mxu0 0.0
    %2862 = vmatmul.mubr.f32.gmra.mxu0 %v2795
    %v2863 = vpop.f32.mrf.mxu0
    %v2864 = vadd.f32 %v2719, %v2863
    %v2865 = vpop.f32.mrf.mxu0
    %v2866 = vadd.f32 %v2721, %v2865
    %2867 = vdwg.mxu0
    %2868 = vmatprep.subr.mxu0 0.0
    %2869 = vmatpush1.msra.mxu0 0.0
    %2870 = vmatprep.subr.mxu0 0.0
    %2871 = vmatpush1.msra.mxu0 0.0
    %2872 = vmatprep.subr.mxu0 0.0
    %2873 = vmatpush1.msra.mxu0 0.0
    %2874 = vmatprep.subr.mxu0 0.0
    %2875 = vmatpush1.msra.mxu0 0.0
    %2876 = vmatprep.subr.mxu0 0.0
    %2877 = vmatpush1.msra.mxu0 0.0
    %2878 = vmatprep.subr.mxu0 0.0
    %2879 = vmatpush1.msra.mxu0 0.0
    %2880 = vmatprep.subr.mxu0 0.0
    %2881 = vmatpush1.msra.mxu0 0.0
    %2882 = vmatprep.subr.mxu0 0.0
    %2883 = vmatpush1.msra.mxu0 0.0
    %2884 = vmatprep.subr.mxu0 0.0
    %2885 = vmatpush1.msra.mxu0 0.0
    %2886 = vmatprep.subr.mxu0 0.0
    %2887 = vmatpush1.msra.mxu0 0.0
    %2888 = vmatprep.subr.mxu0 0.0
    %2889 = vmatpush1.msra.mxu0 0.0
    %2890 = vmatprep.subr.mxu0 0.0
    %2891 = vmatpush1.msra.mxu0 0.0
    %2892 = vmatprep.subr.mxu0 0.0
    %2893 = vmatpush1.msra.mxu0 0.0
    %2894 = vmatprep.subr.mxu0 0.0
    %2895 = vmatpush1.msra.mxu0 0.0
    %2896 = vmatprep.subr.mxu0 %v72
    %2897 = vmatpush1.msra.mxu0 %v71
    %2898 = vmatprep.subr.mxu0 %v68
    %2899 = vmatpush1.msra.mxu0 %v67
    %2900 = vmatprep.subr.mxu0 0.0
    %2901 = vmatpush2.msra.mxu0 0.0
    %2902 = vmatprep.subr.mxu0 0.0
    %2903 = vmatpush2.msra.mxu0 0.0
    %2904 = vmatprep.subr.mxu0 0.0
    %2905 = vmatpush2.msra.mxu0 0.0
    %2906 = vmatprep.subr.mxu0 0.0
    %2907 = vmatpush2.msra.mxu0 0.0
    %2908 = vmatprep.subr.mxu0 0.0
    %2909 = vmatpush2.msra.mxu0 0.0
    %2910 = vmatprep.subr.mxu0 0.0
    %2911 = vmatpush2.msra.mxu0 0.0
    %2912 = vmatprep.subr.mxu0 0.0
    %2913 = vmatpush2.msra.mxu0 0.0
    %2914 = vmatprep.subr.mxu0 0.0
    %2915 = vmatpush2.msra.mxu0 0.0
    %2916 = vmatprep.subr.mxu0 0.0
    %2917 = vmatpush2.msra.mxu0 0.0
    %2918 = vmatprep.subr.mxu0 0.0
    %2919 = vmatpush2.msra.mxu0 0.0
    %2920 = vmatprep.subr.mxu0 0.0
    %2921 = vmatpush2.msra.mxu0 0.0
    %2922 = vmatprep.subr.mxu0 0.0
    %2923 = vmatpush2.msra.mxu0 0.0
    %2924 = vmatprep.subr.mxu0 0.0
    %2925 = vmatpush2.msra.mxu0 0.0
    %2926 = vmatprep.subr.mxu0 0.0
    %2927 = vmatpush2.msra.mxu0 0.0
    %2928 = vmatprep.subr.mxu0 0.0
    %2929 = vmatpush2.msra.mxu0 0.0
    %2930 = vmatprep.subr.mxu0 0.0
    %2931 = vmatpush2.msra.mxu0 0.0
    %2932 = vmatprep.mubr.f32.mxu0 0.0
    %2933 = vmatmul.mubr.f32.gmra.mxu0 %v2795
    %v2934 = vpop.f32.mrf.mxu0
    %v2935 = vadd.f32 %v2790, %v2934
    %v2936 = vpop.f32.mrf.mxu0
    %v2937 = vadd.f32 %v2792, %v2936
    %2938 = vdwg.mxu0
    %v2939 = vadd.f32 %v2864, %v434
    %v2940 = vadd.f32 %v2866, %v438
    %v2941 = vadd.f32 %v2935, %v442
    %v2942 = vadd.f32 %v2937, %v446
    %v2943 = vmul.f32 %v2939, 0.5
    %v2944 = vtanh.pop %v2943
    %v2945 = vadd.f32 %v2944, 1.0
    %v2946 = vmul.f32 %v2945, 0.5
    %v2947 = vmul.f32 %v2940, 0.5
    %v2948 = vtanh.pop %v2947
    %v2949 = vadd.f32 %v2948, 1.0
    %v2950 = vmul.f32 %v2949, 0.5
    %v2951 = vtanh.pop %v2941
    %v2952 = vmul.f32 %v2942, 0.5
    %v2953 = vtanh.pop %v2952
    %v2954 = vadd.f32 %v2953, 1.0
    %v2955 = vmul.f32 %v2954, 0.5
    %v2956 = vmul.f32 %v2950, %v2647
    %v2957 = vmul.f32 %v2946, %v2951
    %v2958 = vadd.f32 %v2956, %v2957
    %v2959 = vtanh.pop %v2958
    %v2960 = vmul.f32 %v2955, %v2959
    %s2961 = scalar_select %p140, 1, 0
    %v2962 = vstv %s2961
    %vm2963 = vcmp.eq.s32.totalorder %v2962, 1
    %v2964 = vsel %vm2963, %v2958, %v2647
    %v2965 = vsel %vm2963, %v2960, %v2649
    %s2966 = scalar_lea.vmem [#allocation3], 72
    %v2967 = vld [vmem:[%s2966] sm:$0xff]
    %2968 = vmatprep.subr.mxu0 %v134
    %2969 = vmatpush1.msra.mxu0 %v133
    %2970 = vmatprep.subr.mxu0 %v130
    %2971 = vmatpush1.msra.mxu0 %v129
    %2972 = vmatprep.subr.mxu0 %v126
    %2973 = vmatpush1.msra.mxu0 %v125
    %2974 = vmatprep.subr.mxu0 %v122
    %2975 = vmatpush1.msra.mxu0 %v121
    %2976 = vmatprep.subr.mxu0 %v118
    %2977 = vmatpush1.msra.mxu0 %v117
    %2978 = vmatprep.subr.mxu0 %v114
    %2979 = vmatpush1.msra.mxu0 %v113
    %2980 = vmatprep.subr.mxu0 %v110
    %2981 = vmatpush1.msra.mxu0 %v109
    %2982 = vmatprep.subr.mxu0 %v106
    %2983 = vmatpush1.msra.mxu0 %v105
    %2984 = vmatprep.subr.mxu0 %v102
    %2985 = vmatpush1.msra.mxu0 %v101
    %2986 = vmatprep.subr.mxu0 %v98
    %2987 = vmatpush1.msra.mxu0 %v97
    %2988 = vmatprep.subr.mxu0 %v94
    %2989 = vmatpush1.msra.mxu0 %v93
    %2990 = vmatprep.subr.mxu0 %v90
    %2991 = vmatpush1.msra.mxu0 %v89
    %2992 = vmatprep.subr.mxu0 %v86
    %2993 = vmatpush1.msra.mxu0 %v85
    %2994 = vmatprep.subr.mxu0 %v82
    %2995 = vmatpush1.msra.mxu0 %v81
    %2996 = vmatprep.subr.mxu0 %v78
    %2997 = vmatpush1.msra.mxu0 %v77
    %2998 = vmatprep.subr.mxu0 %v74
    %2999 = vmatpush1.msra.mxu0 %v73
    %3000 = vmatprep.subr.mxu0 0.0
    %3001 = vmatpush2.msra.mxu0 0.0
    %3002 = vmatprep.subr.mxu0 0.0
    %3003 = vmatpush2.msra.mxu0 0.0
    %3004 = vmatprep.subr.mxu0 0.0
    %3005 = vmatpush2.msra.mxu0 0.0
    %3006 = vmatprep.subr.mxu0 0.0
    %3007 = vmatpush2.msra.mxu0 0.0
    %3008 = vmatprep.subr.mxu0 0.0
    %3009 = vmatpush2.msra.mxu0 0.0
    %3010 = vmatprep.subr.mxu0 0.0
    %3011 = vmatpush2.msra.mxu0 0.0
    %3012 = vmatprep.subr.mxu0 0.0
    %3013 = vmatpush2.msra.mxu0 0.0
    %3014 = vmatprep.subr.mxu0 0.0
    %3015 = vmatpush2.msra.mxu0 0.0
    %3016 = vmatprep.subr.mxu0 0.0
    %3017 = vmatpush2.msra.mxu0 0.0
    %3018 = vmatprep.subr.mxu0 0.0
    %3019 = vmatpush2.msra.mxu0 0.0
    %3020 = vmatprep.subr.mxu0 0.0
    %3021 = vmatpush2.msra.mxu0 0.0
    %3022 = vmatprep.subr.mxu0 0.0
    %3023 = vmatpush2.msra.mxu0 0.0
    %3024 = vmatprep.subr.mxu0 0.0
    %3025 = vmatpush2.msra.mxu0 0.0
    %3026 = vmatprep.subr.mxu0 0.0
    %3027 = vmatpush2.msra.mxu0 0.0
    %3028 = vmatprep.subr.mxu0 0.0
    %3029 = vmatpush2.msra.mxu0 0.0
    %3030 = vmatprep.subr.mxu0 0.0
    %3031 = vmatpush2.msra.mxu0 0.0
    %3032 = vmatprep.mubr.f32.mxu0 0.0
    %3033 = vmatmul.mubr.f32.gmra.mxu0 %v2965
    %v3034 = vpop.f32.mrf.mxu0
    %v3035 = vadd.f32 0.0, %v3034
    %v3036 = vpop.f32.mrf.mxu0
    %v3037 = vadd.f32 0.0, %v3036
    %3038 = vdwg.mxu0
    %3039 = vmatprep.subr.mxu0 %v136
    %3040 = vmatpush1.msra.mxu0 %v135
    %3041 = vmatprep.subr.mxu0 %v132
    %3042 = vmatpush1.msra.mxu0 %v131
    %3043 = vmatprep.subr.mxu0 %v128
    %3044 = vmatpush1.msra.mxu0 %v127
    %3045 = vmatprep.subr.mxu0 %v124
    %3046 = vmatpush1.msra.mxu0 %v123
    %3047 = vmatprep.subr.mxu0 %v120
    %3048 = vmatpush1.msra.mxu0 %v119
    %3049 = vmatprep.subr.mxu0 %v116
    %3050 = vmatpush1.msra.mxu0 %v115
    %3051 = vmatprep.subr.mxu0 %v112
    %3052 = vmatpush1.msra.mxu0 %v111
    %3053 = vmatprep.subr.mxu0 %v108
    %3054 = vmatpush1.msra.mxu0 %v107
    %3055 = vmatprep.subr.mxu0 %v104
    %3056 = vmatpush1.msra.mxu0 %v103
    %3057 = vmatprep.subr.mxu0 %v100
    %3058 = vmatpush1.msra.mxu0 %v99
    %3059 = vmatprep.subr.mxu0 %v96
    %3060 = vmatpush1.msra.mxu0 %v95
    %3061 = vmatprep.subr.mxu0 %v92
    %3062 = vmatpush1.msra.mxu0 %v91
    %3063 = vmatprep.subr.mxu0 %v88
    %3064 = vmatpush1.msra.mxu0 %v87
    %3065 = vmatprep.subr.mxu0 %v84
    %3066 = vmatpush1.msra.mxu0 %v83
    %3067 = vmatprep.subr.mxu0 %v80
    %3068 = vmatpush1.msra.mxu0 %v79
    %3069 = vmatprep.subr.mxu0 %v76
    %3070 = vmatpush1.msra.mxu0 %v75
    %3071 = vmatprep.subr.mxu0 0.0
    %3072 = vmatpush2.msra.mxu0 0.0
    %3073 = vmatprep.subr.mxu0 0.0
    %3074 = vmatpush2.msra.mxu0 0.0
    %3075 = vmatprep.subr.mxu0 0.0
    %3076 = vmatpush2.msra.mxu0 0.0
    %3077 = vmatprep.subr.mxu0 0.0
    %3078 = vmatpush2.msra.mxu0 0.0
    %3079 = vmatprep.subr.mxu0 0.0
    %3080 = vmatpush2.msra.mxu0 0.0
    %3081 = vmatprep.subr.mxu0 0.0
    %3082 = vmatpush2.msra.mxu0 0.0
    %3083 = vmatprep.subr.mxu0 0.0
    %3084 = vmatpush2.msra.mxu0 0.0
    %3085 = vmatprep.subr.mxu0 0.0
    %3086 = vmatpush2.msra.mxu0 0.0
    %3087 = vmatprep.subr.mxu0 0.0
    %3088 = vmatpush2.msra.mxu0 0.0
    %3089 = vmatprep.subr.mxu0 0.0
    %3090 = vmatpush2.msra.mxu0 0.0
    %3091 = vmatprep.subr.mxu0 0.0
    %3092 = vmatpush2.msra.mxu0 0.0
    %3093 = vmatprep.subr.mxu0 0.0
    %3094 = vmatpush2.msra.mxu0 0.0
    %3095 = vmatprep.subr.mxu0 0.0
    %3096 = vmatpush2.msra.mxu0 0.0
    %3097 = vmatprep.subr.mxu0 0.0
    %3098 = vmatpush2.msra.mxu0 0.0
    %3099 = vmatprep.subr.mxu0 0.0
    %3100 = vmatpush2.msra.mxu0 0.0
    %3101 = vmatprep.subr.mxu0 0.0
    %3102 = vmatpush2.msra.mxu0 0.0
    %3103 = vmatprep.mubr.f32.mxu0 0.0
    %3104 = vmatmul.mubr.f32.gmra.mxu0 %v2965
    %v3105 = vpop.f32.mrf.mxu0
    %v3106 = vadd.f32 0.0, %v3105
    %v3107 = vpop.f32.mrf.mxu0
    %v3108 = vadd.f32 0.0, %v3107
    %3109 = vdwg.mxu0
    %v3111 = vsel %vm284, %v2967, 0
    %3113 = vmatprep.subr.mxu0 0.0
    %3114 = vmatpush1.msra.mxu0 0.0
    %3115 = vmatprep.subr.mxu0 0.0
    %3116 = vmatpush1.msra.mxu0 0.0
    %3117 = vmatprep.subr.mxu0 0.0
    %3118 = vmatpush1.msra.mxu0 0.0
    %3119 = vmatprep.subr.mxu0 0.0
    %3120 = vmatpush1.msra.mxu0 0.0
    %3121 = vmatprep.subr.mxu0 0.0
    %3122 = vmatpush1.msra.mxu0 0.0
    %3123 = vmatprep.subr.mxu0 0.0
    %3124 = vmatpush1.msra.mxu0 0.0
    %3125 = vmatprep.subr.mxu0 0.0
    %3126 = vmatpush1.msra.mxu0 0.0
    %3127 = vmatprep.subr.mxu0 0.0
    %3128 = vmatpush1.msra.mxu0 0.0
    %3129 = vmatprep.subr.mxu0 0.0
    %3130 = vmatpush1.msra.mxu0 0.0
    %3131 = vmatprep.subr.mxu0 0.0
    %3132 = vmatpush1.msra.mxu0 0.0
    %3133 = vmatprep.subr.mxu0 0.0
    %3134 = vmatpush1.msra.mxu0 0.0
    %3135 = vmatprep.subr.mxu0 0.0
    %3136 = vmatpush1.msra.mxu0 0.0
    %3137 = vmatprep.subr.mxu0 0.0
    %3138 = vmatpush1.msra.mxu0 0.0
    %3139 = vmatprep.subr.mxu0 0.0
    %3140 = vmatpush1.msra.mxu0 0.0
    %3141 = vmatprep.subr.mxu0 %v70
    %3142 = vmatpush1.msra.mxu0 %v69
    %3143 = vmatprep.subr.mxu0 %v66
    %3144 = vmatpush1.msra.mxu0 %v65
    %3145 = vmatprep.subr.mxu0 0.0
    %3146 = vmatpush2.msra.mxu0 0.0
    %3147 = vmatprep.subr.mxu0 0.0
    %3148 = vmatpush2.msra.mxu0 0.0
    %3149 = vmatprep.subr.mxu0 0.0
    %3150 = vmatpush2.msra.mxu0 0.0
    %3151 = vmatprep.subr.mxu0 0.0
    %3152 = vmatpush2.msra.mxu0 0.0
    %3153 = vmatprep.subr.mxu0 0.0
    %3154 = vmatpush2.msra.mxu0 0.0
    %3155 = vmatprep.subr.mxu0 0.0
    %3156 = vmatpush2.msra.mxu0 0.0
    %3157 = vmatprep.subr.mxu0 0.0
    %3158 = vmatpush2.msra.mxu0 0.0
    %3159 = vmatprep.subr.mxu0 0.0
    %3160 = vmatpush2.msra.mxu0 0.0
    %3161 = vmatprep.subr.mxu0 0.0
    %3162 = vmatpush2.msra.mxu0 0.0
    %3163 = vmatprep.subr.mxu0 0.0
    %3164 = vmatpush2.msra.mxu0 0.0
    %3165 = vmatprep.subr.mxu0 0.0
    %3166 = vmatpush2.msra.mxu0 0.0
    %3167 = vmatprep.subr.mxu0 0.0
    %3168 = vmatpush2.msra.mxu0 0.0
    %3169 = vmatprep.subr.mxu0 0.0
    %3170 = vmatpush2.msra.mxu0 0.0
    %3171 = vmatprep.subr.mxu0 0.0
    %3172 = vmatpush2.msra.mxu0 0.0
    %3173 = vmatprep.subr.mxu0 0.0
    %3174 = vmatpush2.msra.mxu0 0.0
    %3175 = vmatprep.subr.mxu0 0.0
    %3176 = vmatpush2.msra.mxu0 0.0
    %3177 = vmatprep.mubr.f32.mxu0 0.0
    %3178 = vmatmul.mubr.f32.gmra.mxu0 %v3111
    %v3179 = vpop.f32.mrf.mxu0
    %v3180 = vadd.f32 %v3035, %v3179
    %v3181 = vpop.f32.mrf.mxu0
    %v3182 = vadd.f32 %v3037, %v3181
    %3183 = vdwg.mxu0
    %3184 = vmatprep.subr.mxu0 0.0
    %3185 = vmatpush1.msra.mxu0 0.0
    %3186 = vmatprep.subr.mxu0 0.0
    %3187 = vmatpush1.msra.mxu0 0.0
    %3188 = vmatprep.subr.mxu0 0.0
    %3189 = vmatpush1.msra.mxu0 0.0
    %3190 = vmatprep.subr.mxu0 0.0
    %3191 = vmatpush1.msra.mxu0 0.0
    %3192 = vmatprep.subr.mxu0 0.0
    %3193 = vmatpush1.msra.mxu0 0.0
    %3194 = vmatprep.subr.mxu0 0.0
    %3195 = vmatpush1.msra.mxu0 0.0
    %3196 = vmatprep.subr.mxu0 0.0
    %3197 = vmatpush1.msra.mxu0 0.0
    %3198 = vmatprep.subr.mxu0 0.0
    %3199 = vmatpush1.msra.mxu0 0.0
    %3200 = vmatprep.subr.mxu0 0.0
    %3201 = vmatpush1.msra.mxu0 0.0
    %3202 = vmatprep.subr.mxu0 0.0
    %3203 = vmatpush1.msra.mxu0 0.0
    %3204 = vmatprep.subr.mxu0 0.0
    %3205 = vmatpush1.msra.mxu0 0.0
    %3206 = vmatprep.subr.mxu0 0.0
    %3207 = vmatpush1.msra.mxu0 0.0
    %3208 = vmatprep.subr.mxu0 0.0
    %3209 = vmatpush1.msra.mxu0 0.0
    %3210 = vmatprep.subr.mxu0 0.0
    %3211 = vmatpush1.msra.mxu0 0.0
    %3212 = vmatprep.subr.mxu0 %v72
    %3213 = vmatpush1.msra.mxu0 %v71
    %3214 = vmatprep.subr.mxu0 %v68
    %3215 = vmatpush1.msra.mxu0 %v67
    %3216 = vmatprep.subr.mxu0 0.0
    %3217 = vmatpush2.msra.mxu0 0.0
    %3218 = vmatprep.subr.mxu0 0.0
    %3219 = vmatpush2.msra.mxu0 0.0
    %3220 = vmatprep.subr.mxu0 0.0
    %3221 = vmatpush2.msra.mxu0 0.0
    %3222 = vmatprep.subr.mxu0 0.0
    %3223 = vmatpush2.msra.mxu0 0.0
    %3224 = vmatprep.subr.mxu0 0.0
    %3225 = vmatpush2.msra.mxu0 0.0
    %3226 = vmatprep.subr.mxu0 0.0
    %3227 = vmatpush2.msra.mxu0 0.0
    %3228 = vmatprep.subr.mxu0 0.0
    %3229 = vmatpush2.msra.mxu0 0.0
    %3230 = vmatprep.subr.mxu0 0.0
    %3231 = vmatpush2.msra.mxu0 0.0
    %3232 = vmatprep.subr.mxu0 0.0
    %3233 = vmatpush2.msra.mxu0 0.0
    %3234 = vmatprep.subr.mxu0 0.0
    %3235 = vmatpush2.msra.mxu0 0.0
    %3236 = vmatprep.subr.mxu0 0.0
    %3237 = vmatpush2.msra.mxu0 0.0
    %3238 = vmatprep.subr.mxu0 0.0
    %3239 = vmatpush2.msra.mxu0 0.0
    %3240 = vmatprep.subr.mxu0 0.0
    %3241 = vmatpush2.msra.mxu0 0.0
    %3242 = vmatprep.subr.mxu0 0.0
    %3243 = vmatpush2.msra.mxu0 0.0
    %3244 = vmatprep.subr.mxu0 0.0
    %3245 = vmatpush2.msra.mxu0 0.0
    %3246 = vmatprep.subr.mxu0 0.0
    %3247 = vmatpush2.msra.mxu0 0.0
    %3248 = vmatprep.mubr.f32.mxu0 0.0
    %3249 = vmatmul.mubr.f32.gmra.mxu0 %v3111
    %v3250 = vpop.f32.mrf.mxu0
    %v3251 = vadd.f32 %v3106, %v3250
    %v3252 = vpop.f32.mrf.mxu0
    %v3253 = vadd.f32 %v3108, %v3252
    %3254 = vdwg.mxu0
    %v3255 = vadd.f32 %v3180, %v434
    %v3256 = vadd.f32 %v3182, %v438
    %v3257 = vadd.f32 %v3251, %v442
    %v3258 = vadd.f32 %v3253, %v446
    %v3259 = vmul.f32 %v3255, 0.5
    %v3260 = vtanh.pop %v3259
    %v3261 = vadd.f32 %v3260, 1.0
    %v3262 = vmul.f32 %v3261, 0.5
    %v3263 = vmul.f32 %v3256, 0.5
    %v3264 = vtanh.pop %v3263
    %v3265 = vadd.f32 %v3264, 1.0
    %v3266 = vmul.f32 %v3265, 0.5
    %v3267 = vtanh.pop %v3257
    %v3268 = vmul.f32 %v3258, 0.5
    %v3269 = vtanh.pop %v3268
    %v3270 = vadd.f32 %v3269, 1.0
    %v3271 = vmul.f32 %v3270, 0.5
    %v3272 = vmul.f32 %v3266, %v2964
    %v3273 = vmul.f32 %v3262, %v3267
    %v3274 = vadd.f32 %v3272, %v3273
    %v3275 = vtanh.pop %v3274
    %v3276 = vmul.f32 %v3271, %v3275
    %v3277 = vsel %vm2963, %v3274, %v2647
    %v3278 = vsel %vm2963, %v3276, %v2649
    %s3279 = scalar_lea.vmem [#allocation3], 80
    %v3280 = vld [vmem:[%s3279] sm:$0xff]
    %3281 = vmatprep.subr.mxu0 %v134
    %3282 = vmatpush1.msra.mxu0 %v133
    %3283 = vmatprep.subr.mxu0 %v130
    %3284 = vmatpush1.msra.mxu0 %v129
    %3285 = vmatprep.subr.mxu0 %v126
    %3286 = vmatpush1.msra.mxu0 %v125
    %3287 = vmatprep.subr.mxu0 %v122
    %3288 = vmatpush1.msra.mxu0 %v121
    %3289 = vmatprep.subr.mxu0 %v118
    %3290 = vmatpush1.msra.mxu0 %v117
    %3291 = vmatprep.subr.mxu0 %v114
    %3292 = vmatpush1.msra.mxu0 %v113
    %3293 = vmatprep.subr.mxu0 %v110
    %3294 = vmatpush1.msra.mxu0 %v109
    %3295 = vmatprep.subr.mxu0 %v106
    %3296 = vmatpush1.msra.mxu0 %v105
    %3297 = vmatprep.subr.mxu0 %v102
    %3298 = vmatpush1.msra.mxu0 %v101
    %3299 = vmatprep.subr.mxu0 %v98
    %3300 = vmatpush1.msra.mxu0 %v97
    %3301 = vmatprep.subr.mxu0 %v94
    %3302 = vmatpush1.msra.mxu0 %v93
    %3303 = vmatprep.subr.mxu0 %v90
    %3304 = vmatpush1.msra.mxu0 %v89
    %3305 = vmatprep.subr.mxu0 %v86
    %3306 = vmatpush1.msra.mxu0 %v85
    %3307 = vmatprep.subr.mxu0 %v82
    %3308 = vmatpush1.msra.mxu0 %v81
    %3309 = vmatprep.subr.mxu0 %v78
    %3310 = vmatpush1.msra.mxu0 %v77
    %3311 = vmatprep.subr.mxu0 %v74
    %3312 = vmatpush1.msra.mxu0 %v73
    %3313 = vmatprep.subr.mxu0 0.0
    %3314 = vmatpush2.msra.mxu0 0.0
    %3315 = vmatprep.subr.mxu0 0.0
    %3316 = vmatpush2.msra.mxu0 0.0
    %3317 = vmatprep.subr.mxu0 0.0
    %3318 = vmatpush2.msra.mxu0 0.0
    %3319 = vmatprep.subr.mxu0 0.0
    %3320 = vmatpush2.msra.mxu0 0.0
    %3321 = vmatprep.subr.mxu0 0.0
    %3322 = vmatpush2.msra.mxu0 0.0
    %3323 = vmatprep.subr.mxu0 0.0
    %3324 = vmatpush2.msra.mxu0 0.0
    %3325 = vmatprep.subr.mxu0 0.0
    %3326 = vmatpush2.msra.mxu0 0.0
    %3327 = vmatprep.subr.mxu0 0.0
    %3328 = vmatpush2.msra.mxu0 0.0
    %3329 = vmatprep.subr.mxu0 0.0
    %3330 = vmatpush2.msra.mxu0 0.0
    %3331 = vmatprep.subr.mxu0 0.0
    %3332 = vmatpush2.msra.mxu0 0.0
    %3333 = vmatprep.subr.mxu0 0.0
    %3334 = vmatpush2.msra.mxu0 0.0
    %3335 = vmatprep.subr.mxu0 0.0
    %3336 = vmatpush2.msra.mxu0 0.0
    %3337 = vmatprep.subr.mxu0 0.0
    %3338 = vmatpush2.msra.mxu0 0.0
    %3339 = vmatprep.subr.mxu0 0.0
    %3340 = vmatpush2.msra.mxu0 0.0
    %3341 = vmatprep.subr.mxu0 0.0
    %3342 = vmatpush2.msra.mxu0 0.0
    %3343 = vmatprep.subr.mxu0 0.0
    %3344 = vmatpush2.msra.mxu0 0.0
    %3345 = vmatprep.mubr.f32.mxu0 0.0
    %3346 = vmatmul.mubr.f32.gmra.mxu0 %v3278
    %v3347 = vpop.f32.mrf.mxu0
    %v3348 = vadd.f32 0.0, %v3347
    %v3349 = vpop.f32.mrf.mxu0
    %v3350 = vadd.f32 0.0, %v3349
    %3351 = vdwg.mxu0
    %3352 = vmatprep.subr.mxu0 %v136
    %3353 = vmatpush1.msra.mxu0 %v135
    %3354 = vmatprep.subr.mxu0 %v132
    %3355 = vmatpush1.msra.mxu0 %v131
    %3356 = vmatprep.subr.mxu0 %v128
    %3357 = vmatpush1.msra.mxu0 %v127
    %3358 = vmatprep.subr.mxu0 %v124
    %3359 = vmatpush1.msra.mxu0 %v123
    %3360 = vmatprep.subr.mxu0 %v120
    %3361 = vmatpush1.msra.mxu0 %v119
    %3362 = vmatprep.subr.mxu0 %v116
    %3363 = vmatpush1.msra.mxu0 %v115
    %3364 = vmatprep.subr.mxu0 %v112
    %3365 = vmatpush1.msra.mxu0 %v111
    %3366 = vmatprep.subr.mxu0 %v108
    %3367 = vmatpush1.msra.mxu0 %v107
    %3368 = vmatprep.subr.mxu0 %v104
    %3369 = vmatpush1.msra.mxu0 %v103
    %3370 = vmatprep.subr.mxu0 %v100
    %3371 = vmatpush1.msra.mxu0 %v99
    %3372 = vmatprep.subr.mxu0 %v96
    %3373 = vmatpush1.msra.mxu0 %v95
    %3374 = vmatprep.subr.mxu0 %v92
    %3375 = vmatpush1.msra.mxu0 %v91
    %3376 = vmatprep.subr.mxu0 %v88
    %3377 = vmatpush1.msra.mxu0 %v87
    %3378 = vmatprep.subr.mxu0 %v84
    %3379 = vmatpush1.msra.mxu0 %v83
    %3380 = vmatprep.subr.mxu0 %v80
    %3381 = vmatpush1.msra.mxu0 %v79
    %3382 = vmatprep.subr.mxu0 %v76
    %3383 = vmatpush1.msra.mxu0 %v75
    %3384 = vmatprep.subr.mxu0 0.0
    %3385 = vmatpush2.msra.mxu0 0.0
    %3386 = vmatprep.subr.mxu0 0.0
    %3387 = vmatpush2.msra.mxu0 0.0
    %3388 = vmatprep.subr.mxu0 0.0
    %3389 = vmatpush2.msra.mxu0 0.0
    %3390 = vmatprep.subr.mxu0 0.0
    %3391 = vmatpush2.msra.mxu0 0.0
    %3392 = vmatprep.subr.mxu0 0.0
    %3393 = vmatpush2.msra.mxu0 0.0
    %3394 = vmatprep.subr.mxu0 0.0
    %3395 = vmatpush2.msra.mxu0 0.0
    %3396 = vmatprep.subr.mxu0 0.0
    %3397 = vmatpush2.msra.mxu0 0.0
    %3398 = vmatprep.subr.mxu0 0.0
    %3399 = vmatpush2.msra.mxu0 0.0
    %3400 = vmatprep.subr.mxu0 0.0
    %3401 = vmatpush2.msra.mxu0 0.0
    %3402 = vmatprep.subr.mxu0 0.0
    %3403 = vmatpush2.msra.mxu0 0.0
    %3404 = vmatprep.subr.mxu0 0.0
    %3405 = vmatpush2.msra.mxu0 0.0
    %3406 = vmatprep.subr.mxu0 0.0
    %3407 = vmatpush2.msra.mxu0 0.0
    %3408 = vmatprep.subr.mxu0 0.0
    %3409 = vmatpush2.msra.mxu0 0.0
    %3410 = vmatprep.subr.mxu0 0.0
    %3411 = vmatpush2.msra.mxu0 0.0
    %3412 = vmatprep.subr.mxu0 0.0
    %3413 = vmatpush2.msra.mxu0 0.0
    %3414 = vmatprep.subr.mxu0 0.0
    %3415 = vmatpush2.msra.mxu0 0.0
    %3416 = vmatprep.mubr.f32.mxu0 0.0
    %3417 = vmatmul.mubr.f32.gmra.mxu0 %v3278
    %v3418 = vpop.f32.mrf.mxu0
    %v3419 = vadd.f32 0.0, %v3418
    %v3420 = vpop.f32.mrf.mxu0
    %v3421 = vadd.f32 0.0, %v3420
    %3422 = vdwg.mxu0
    %v3424 = vsel %vm284, %v3280, 0
    %3426 = vmatprep.subr.mxu0 0.0
    %3427 = vmatpush1.msra.mxu0 0.0
    %3428 = vmatprep.subr.mxu0 0.0
    %3429 = vmatpush1.msra.mxu0 0.0
    %3430 = vmatprep.subr.mxu0 0.0
    %3431 = vmatpush1.msra.mxu0 0.0
    %3432 = vmatprep.subr.mxu0 0.0
    %3433 = vmatpush1.msra.mxu0 0.0
    %3434 = vmatprep.subr.mxu0 0.0
    %3435 = vmatpush1.msra.mxu0 0.0
    %3436 = vmatprep.subr.mxu0 0.0
    %3437 = vmatpush1.msra.mxu0 0.0
    %3438 = vmatprep.subr.mxu0 0.0
    %3439 = vmatpush1.msra.mxu0 0.0
    %3440 = vmatprep.subr.mxu0 0.0
    %3441 = vmatpush1.msra.mxu0 0.0
    %3442 = vmatprep.subr.mxu0 0.0
    %3443 = vmatpush1.msra.mxu0 0.0
    %3444 = vmatprep.subr.mxu0 0.0
    %3445 = vmatpush1.msra.mxu0 0.0
    %3446 = vmatprep.subr.mxu0 0.0
    %3447 = vmatpush1.msra.mxu0 0.0
    %3448 = vmatprep.subr.mxu0 0.0
    %3449 = vmatpush1.msra.mxu0 0.0
    %3450 = vmatprep.subr.mxu0 0.0
    %3451 = vmatpush1.msra.mxu0 0.0
    %3452 = vmatprep.subr.mxu0 0.0
    %3453 = vmatpush1.msra.mxu0 0.0
    %3454 = vmatprep.subr.mxu0 %v70
    %3455 = vmatpush1.msra.mxu0 %v69
    %3456 = vmatprep.subr.mxu0 %v66
    %3457 = vmatpush1.msra.mxu0 %v65
    %3458 = vmatprep.subr.mxu0 0.0
    %3459 = vmatpush2.msra.mxu0 0.0
    %3460 = vmatprep.subr.mxu0 0.0
    %3461 = vmatpush2.msra.mxu0 0.0
    %3462 = vmatprep.subr.mxu0 0.0
    %3463 = vmatpush2.msra.mxu0 0.0
    %3464 = vmatprep.subr.mxu0 0.0
    %3465 = vmatpush2.msra.mxu0 0.0
    %3466 = vmatprep.subr.mxu0 0.0
    %3467 = vmatpush2.msra.mxu0 0.0
    %3468 = vmatprep.subr.mxu0 0.0
    %3469 = vmatpush2.msra.mxu0 0.0
    %3470 = vmatprep.subr.mxu0 0.0
    %3471 = vmatpush2.msra.mxu0 0.0
    %3472 = vmatprep.subr.mxu0 0.0
    %3473 = vmatpush2.msra.mxu0 0.0
    %3474 = vmatprep.subr.mxu0 0.0
    %3475 = vmatpush2.msra.mxu0 0.0
    %3476 = vmatprep.subr.mxu0 0.0
    %3477 = vmatpush2.msra.mxu0 0.0
    %3478 = vmatprep.subr.mxu0 0.0
    %3479 = vmatpush2.msra.mxu0 0.0
    %3480 = vmatprep.subr.mxu0 0.0
    %3481 = vmatpush2.msra.mxu0 0.0
    %3482 = vmatprep.subr.mxu0 0.0
    %3483 = vmatpush2.msra.mxu0 0.0
    %3484 = vmatprep.subr.mxu0 0.0
    %3485 = vmatpush2.msra.mxu0 0.0
    %3486 = vmatprep.subr.mxu0 0.0
    %3487 = vmatpush2.msra.mxu0 0.0
    %3488 = vmatprep.subr.mxu0 0.0
    %3489 = vmatpush2.msra.mxu0 0.0
    %3490 = vmatprep.mubr.f32.mxu0 0.0
    %3491 = vmatmul.mubr.f32.gmra.mxu0 %v3424
    %v3492 = vpop.f32.mrf.mxu0
    %v3493 = vadd.f32 %v3348, %v3492
    %v3494 = vpop.f32.mrf.mxu0
    %v3495 = vadd.f32 %v3350, %v3494
    %3496 = vdwg.mxu0
    %3497 = vmatprep.subr.mxu0 0.0
    %3498 = vmatpush1.msra.mxu0 0.0
    %3499 = vmatprep.subr.mxu0 0.0
    %3500 = vmatpush1.msra.mxu0 0.0
    %3501 = vmatprep.subr.mxu0 0.0
    %3502 = vmatpush1.msra.mxu0 0.0
    %3503 = vmatprep.subr.mxu0 0.0
    %3504 = vmatpush1.msra.mxu0 0.0
    %3505 = vmatprep.subr.mxu0 0.0
    %3506 = vmatpush1.msra.mxu0 0.0
    %3507 = vmatprep.subr.mxu0 0.0
    %3508 = vmatpush1.msra.mxu0 0.0
    %3509 = vmatprep.subr.mxu0 0.0
    %3510 = vmatpush1.msra.mxu0 0.0
    %3511 = vmatprep.subr.mxu0 0.0
    %3512 = vmatpush1.msra.mxu0 0.0
    %3513 = vmatprep.subr.mxu0 0.0
    %3514 = vmatpush1.msra.mxu0 0.0
    %3515 = vmatprep.subr.mxu0 0.0
    %3516 = vmatpush1.msra.mxu0 0.0
    %3517 = vmatprep.subr.mxu0 0.0
    %3518 = vmatpush1.msra.mxu0 0.0
    %3519 = vmatprep.subr.mxu0 0.0
    %3520 = vmatpush1.msra.mxu0 0.0
    %3521 = vmatprep.subr.mxu0 0.0
    %3522 = vmatpush1.msra.mxu0 0.0
    %3523 = vmatprep.subr.mxu0 0.0
    %3524 = vmatpush1.msra.mxu0 0.0
    %3525 = vmatprep.subr.mxu0 %v72
    %3526 = vmatpush1.msra.mxu0 %v71
    %3527 = vmatprep.subr.mxu0 %v68
    %3528 = vmatpush1.msra.mxu0 %v67
    %3529 = vmatprep.subr.mxu0 0.0
    %3530 = vmatpush2.msra.mxu0 0.0
    %3531 = vmatprep.subr.mxu0 0.0
    %3532 = vmatpush2.msra.mxu0 0.0
    %3533 = vmatprep.subr.mxu0 0.0
    %3534 = vmatpush2.msra.mxu0 0.0
    %3535 = vmatprep.subr.mxu0 0.0
    %3536 = vmatpush2.msra.mxu0 0.0
    %3537 = vmatprep.subr.mxu0 0.0
    %3538 = vmatpush2.msra.mxu0 0.0
    %3539 = vmatprep.subr.mxu0 0.0
    %3540 = vmatpush2.msra.mxu0 0.0
    %3541 = vmatprep.subr.mxu0 0.0
    %3542 = vmatpush2.msra.mxu0 0.0
    %3543 = vmatprep.subr.mxu0 0.0
    %3544 = vmatpush2.msra.mxu0 0.0
    %3545 = vmatprep.subr.mxu0 0.0
    %3546 = vmatpush2.msra.mxu0 0.0
    %3547 = vmatprep.subr.mxu0 0.0
    %3548 = vmatpush2.msra.mxu0 0.0
    %3549 = vmatprep.subr.mxu0 0.0
    %3550 = vmatpush2.msra.mxu0 0.0
    %3551 = vmatprep.subr.mxu0 0.0
    %3552 = vmatpush2.msra.mxu0 0.0
    %3553 = vmatprep.subr.mxu0 0.0
    %3554 = vmatpush2.msra.mxu0 0.0
    %3555 = vmatprep.subr.mxu0 0.0
    %3556 = vmatpush2.msra.mxu0 0.0
    %3557 = vmatprep.subr.mxu0 0.0
    %3558 = vmatpush2.msra.mxu0 0.0
    %3559 = vmatprep.subr.mxu0 0.0
    %3560 = vmatpush2.msra.mxu0 0.0
    %3561 = vmatprep.mubr.f32.mxu0 0.0
    %3562 = vmatmul.mubr.f32.gmra.mxu0 %v3424
    %v3563 = vpop.f32.mrf.mxu0
    %v3564 = vadd.f32 %v3419, %v3563
    %v3565 = vpop.f32.mrf.mxu0
    %v3566 = vadd.f32 %v3421, %v3565
    %3567 = vdwg.mxu0
    %v3568 = vadd.f32 %v3493, %v434
    %v3569 = vadd.f32 %v3495, %v438
    %v3570 = vadd.f32 %v3564, %v442
    %v3571 = vadd.f32 %v3566, %v446
    %v3572 = vmul.f32 %v3568, 0.5
    %v3573 = vtanh.pop %v3572
    %v3574 = vadd.f32 %v3573, 1.0
    %v3575 = vmul.f32 %v3574, 0.5
    %v3576 = vmul.f32 %v3569, 0.5
    %v3577 = vtanh.pop %v3576
    %v3578 = vadd.f32 %v3577, 1.0
    %v3579 = vmul.f32 %v3578, 0.5
    %v3580 = vtanh.pop %v3570
    %v3581 = vmul.f32 %v3571, 0.5
    %v3582 = vtanh.pop %v3581
    %v3583 = vadd.f32 %v3582, 1.0
    %v3584 = vmul.f32 %v3583, 0.5
    %v3585 = vmul.f32 %v3579, %v3277
    %v3586 = vmul.f32 %v3575, %v3580
    %v3587 = vadd.f32 %v3585, %v3586
    %v3588 = vtanh.pop %v3587
    %v3589 = vmul.f32 %v3584, %v3588
    %v3590 = vsel %vm2963, %v3587, %v2647
    %v3591 = vsel %vm2963, %v3589, %v2649
    %s3592 = scalar_lea.vmem [#allocation3], 88
    %v3593 = vld [vmem:[%s3592] sm:$0xff]
    %3594 = vmatprep.subr.mxu0 %v134
    %3595 = vmatpush1.msra.mxu0 %v133
    %3596 = vmatprep.subr.mxu0 %v130
    %3597 = vmatpush1.msra.mxu0 %v129
    %3598 = vmatprep.subr.mxu0 %v126
    %3599 = vmatpush1.msra.mxu0 %v125
    %3600 = vmatprep.subr.mxu0 %v122
    %3601 = vmatpush1.msra.mxu0 %v121
    %3602 = vmatprep.subr.mxu0 %v118
    %3603 = vmatpush1.msra.mxu0 %v117
    %3604 = vmatprep.subr.mxu0 %v114
    %3605 = vmatpush1.msra.mxu0 %v113
    %3606 = vmatprep.subr.mxu0 %v110
    %3607 = vmatpush1.msra.mxu0 %v109
    %3608 = vmatprep.subr.mxu0 %v106
    %3609 = vmatpush1.msra.mxu0 %v105
    %3610 = vmatprep.subr.mxu0 %v102
    %3611 = vmatpush1.msra.mxu0 %v101
    %3612 = vmatprep.subr.mxu0 %v98
    %3613 = vmatpush1.msra.mxu0 %v97
    %3614 = vmatprep.subr.mxu0 %v94
    %3615 = vmatpush1.msra.mxu0 %v93
    %3616 = vmatprep.subr.mxu0 %v90
    %3617 = vmatpush1.msra.mxu0 %v89
    %3618 = vmatprep.subr.mxu0 %v86
    %3619 = vmatpush1.msra.mxu0 %v85
    %3620 = vmatprep.subr.mxu0 %v82
    %3621 = vmatpush1.msra.mxu0 %v81
    %3622 = vmatprep.subr.mxu0 %v78
    %3623 = vmatpush1.msra.mxu0 %v77
    %3624 = vmatprep.subr.mxu0 %v74
    %3625 = vmatpush1.msra.mxu0 %v73
    %3626 = vmatprep.subr.mxu0 0.0
    %3627 = vmatpush2.msra.mxu0 0.0
    %3628 = vmatprep.subr.mxu0 0.0
    %3629 = vmatpush2.msra.mxu0 0.0
    %3630 = vmatprep.subr.mxu0 0.0
    %3631 = vmatpush2.msra.mxu0 0.0
    %3632 = vmatprep.subr.mxu0 0.0
    %3633 = vmatpush2.msra.mxu0 0.0
    %3634 = vmatprep.subr.mxu0 0.0
    %3635 = vmatpush2.msra.mxu0 0.0
    %3636 = vmatprep.subr.mxu0 0.0
    %3637 = vmatpush2.msra.mxu0 0.0
    %3638 = vmatprep.subr.mxu0 0.0
    %3639 = vmatpush2.msra.mxu0 0.0
    %3640 = vmatprep.subr.mxu0 0.0
    %3641 = vmatpush2.msra.mxu0 0.0
    %3642 = vmatprep.subr.mxu0 0.0
    %3643 = vmatpush2.msra.mxu0 0.0
    %3644 = vmatprep.subr.mxu0 0.0
    %3645 = vmatpush2.msra.mxu0 0.0
    %3646 = vmatprep.subr.mxu0 0.0
    %3647 = vmatpush2.msra.mxu0 0.0
    %3648 = vmatprep.subr.mxu0 0.0
    %3649 = vmatpush2.msra.mxu0 0.0
    %3650 = vmatprep.subr.mxu0 0.0
    %3651 = vmatpush2.msra.mxu0 0.0
    %3652 = vmatprep.subr.mxu0 0.0
    %3653 = vmatpush2.msra.mxu0 0.0
    %3654 = vmatprep.subr.mxu0 0.0
    %3655 = vmatpush2.msra.mxu0 0.0
    %3656 = vmatprep.subr.mxu0 0.0
    %3657 = vmatpush2.msra.mxu0 0.0
    %3658 = vmatprep.mubr.f32.mxu0 0.0
    %3659 = vmatmul.mubr.f32.gmra.mxu0 %v3591
    %v3660 = vpop.f32.mrf.mxu0
    %v3661 = vadd.f32 0.0, %v3660
    %v3662 = vpop.f32.mrf.mxu0
    %v3663 = vadd.f32 0.0, %v3662
    %3664 = vdwg.mxu0
    %3665 = vmatprep.subr.mxu0 %v136
    %3666 = vmatpush1.msra.mxu0 %v135
    %3667 = vmatprep.subr.mxu0 %v132
    %3668 = vmatpush1.msra.mxu0 %v131
    %3669 = vmatprep.subr.mxu0 %v128
    %3670 = vmatpush1.msra.mxu0 %v127
    %3671 = vmatprep.subr.mxu0 %v124
    %3672 = vmatpush1.msra.mxu0 %v123
    %3673 = vmatprep.subr.mxu0 %v120
    %3674 = vmatpush1.msra.mxu0 %v119
    %3675 = vmatprep.subr.mxu0 %v116
    %3676 = vmatpush1.msra.mxu0 %v115
    %3677 = vmatprep.subr.mxu0 %v112
    %3678 = vmatpush1.msra.mxu0 %v111
    %3679 = vmatprep.subr.mxu0 %v108
    %3680 = vmatpush1.msra.mxu0 %v107
    %3681 = vmatprep.subr.mxu0 %v104
    %3682 = vmatpush1.msra.mxu0 %v103
    %3683 = vmatprep.subr.mxu0 %v100
    %3684 = vmatpush1.msra.mxu0 %v99
    %3685 = vmatprep.subr.mxu0 %v96
    %3686 = vmatpush1.msra.mxu0 %v95
    %3687 = vmatprep.subr.mxu0 %v92
    %3688 = vmatpush1.msra.mxu0 %v91
    %3689 = vmatprep.subr.mxu0 %v88
    %3690 = vmatpush1.msra.mxu0 %v87
    %3691 = vmatprep.subr.mxu0 %v84
    %3692 = vmatpush1.msra.mxu0 %v83
    %3693 = vmatprep.subr.mxu0 %v80
    %3694 = vmatpush1.msra.mxu0 %v79
    %3695 = vmatprep.subr.mxu0 %v76
    %3696 = vmatpush1.msra.mxu0 %v75
    %3697 = vmatprep.subr.mxu0 0.0
    %3698 = vmatpush2.msra.mxu0 0.0
    %3699 = vmatprep.subr.mxu0 0.0
    %3700 = vmatpush2.msra.mxu0 0.0
    %3701 = vmatprep.subr.mxu0 0.0
    %3702 = vmatpush2.msra.mxu0 0.0
    %3703 = vmatprep.subr.mxu0 0.0
    %3704 = vmatpush2.msra.mxu0 0.0
    %3705 = vmatprep.subr.mxu0 0.0
    %3706 = vmatpush2.msra.mxu0 0.0
    %3707 = vmatprep.subr.mxu0 0.0
    %3708 = vmatpush2.msra.mxu0 0.0
    %3709 = vmatprep.subr.mxu0 0.0
    %3710 = vmatpush2.msra.mxu0 0.0
    %3711 = vmatprep.subr.mxu0 0.0
    %3712 = vmatpush2.msra.mxu0 0.0
    %3713 = vmatprep.subr.mxu0 0.0
    %3714 = vmatpush2.msra.mxu0 0.0
    %3715 = vmatprep.subr.mxu0 0.0
    %3716 = vmatpush2.msra.mxu0 0.0
    %3717 = vmatprep.subr.mxu0 0.0
    %3718 = vmatpush2.msra.mxu0 0.0
    %3719 = vmatprep.subr.mxu0 0.0
    %3720 = vmatpush2.msra.mxu0 0.0
    %3721 = vmatprep.subr.mxu0 0.0
    %3722 = vmatpush2.msra.mxu0 0.0
    %3723 = vmatprep.subr.mxu0 0.0
    %3724 = vmatpush2.msra.mxu0 0.0
    %3725 = vmatprep.subr.mxu0 0.0
    %3726 = vmatpush2.msra.mxu0 0.0
    %3727 = vmatprep.subr.mxu0 0.0
    %3728 = vmatpush2.msra.mxu0 0.0
    %3729 = vmatprep.mubr.f32.mxu0 0.0
    %3730 = vmatmul.mubr.f32.gmra.mxu0 %v3591
    %v3731 = vpop.f32.mrf.mxu0
    %v3732 = vadd.f32 0.0, %v3731
    %v3733 = vpop.f32.mrf.mxu0
    %v3734 = vadd.f32 0.0, %v3733
    %3735 = vdwg.mxu0
    %v3737 = vsel %vm284, %v3593, 0
    %3739 = vmatprep.subr.mxu0 0.0
    %3740 = vmatpush1.msra.mxu0 0.0
    %3741 = vmatprep.subr.mxu0 0.0
    %3742 = vmatpush1.msra.mxu0 0.0
    %3743 = vmatprep.subr.mxu0 0.0
    %3744 = vmatpush1.msra.mxu0 0.0
    %3745 = vmatprep.subr.mxu0 0.0
    %3746 = vmatpush1.msra.mxu0 0.0
    %3747 = vmatprep.subr.mxu0 0.0
    %3748 = vmatpush1.msra.mxu0 0.0
    %3749 = vmatprep.subr.mxu0 0.0
    %3750 = vmatpush1.msra.mxu0 0.0
    %3751 = vmatprep.subr.mxu0 0.0
    %3752 = vmatpush1.msra.mxu0 0.0
    %3753 = vmatprep.subr.mxu0 0.0
    %3754 = vmatpush1.msra.mxu0 0.0
    %3755 = vmatprep.subr.mxu0 0.0
    %3756 = vmatpush1.msra.mxu0 0.0
    %3757 = vmatprep.subr.mxu0 0.0
    %3758 = vmatpush1.msra.mxu0 0.0
    %3759 = vmatprep.subr.mxu0 0.0
    %3760 = vmatpush1.msra.mxu0 0.0
    %3761 = vmatprep.subr.mxu0 0.0
    %3762 = vmatpush1.msra.mxu0 0.0
    %3763 = vmatprep.subr.mxu0 0.0
    %3764 = vmatpush1.msra.mxu0 0.0
    %3765 = vmatprep.subr.mxu0 0.0
    %3766 = vmatpush1.msra.mxu0 0.0
    %3767 = vmatprep.subr.mxu0 %v70
    %3768 = vmatpush1.msra.mxu0 %v69
    %3769 = vmatprep.subr.mxu0 %v66
    %3770 = vmatpush1.msra.mxu0 %v65
    %3771 = vmatprep.subr.mxu0 0.0
    %3772 = vmatpush2.msra.mxu0 0.0
    %3773 = vmatprep.subr.mxu0 0.0
    %3774 = vmatpush2.msra.mxu0 0.0
    %3775 = vmatprep.subr.mxu0 0.0
    %3776 = vmatpush2.msra.mxu0 0.0
    %3777 = vmatprep.subr.mxu0 0.0
    %3778 = vmatpush2.msra.mxu0 0.0
    %3779 = vmatprep.subr.mxu0 0.0
    %3780 = vmatpush2.msra.mxu0 0.0
    %3781 = vmatprep.subr.mxu0 0.0
    %3782 = vmatpush2.msra.mxu0 0.0
    %3783 = vmatprep.subr.mxu0 0.0
    %3784 = vmatpush2.msra.mxu0 0.0
    %3785 = vmatprep.subr.mxu0 0.0
    %3786 = vmatpush2.msra.mxu0 0.0
    %3787 = vmatprep.subr.mxu0 0.0
    %3788 = vmatpush2.msra.mxu0 0.0
    %3789 = vmatprep.subr.mxu0 0.0
    %3790 = vmatpush2.msra.mxu0 0.0
    %3791 = vmatprep.subr.mxu0 0.0
    %3792 = vmatpush2.msra.mxu0 0.0
    %3793 = vmatprep.subr.mxu0 0.0
    %3794 = vmatpush2.msra.mxu0 0.0
    %3795 = vmatprep.subr.mxu0 0.0
    %3796 = vmatpush2.msra.mxu0 0.0
    %3797 = vmatprep.subr.mxu0 0.0
    %3798 = vmatpush2.msra.mxu0 0.0
    %3799 = vmatprep.subr.mxu0 0.0
    %3800 = vmatpush2.msra.mxu0 0.0
    %3801 = vmatprep.subr.mxu0 0.0
    %3802 = vmatpush2.msra.mxu0 0.0
    %3803 = vmatprep.mubr.f32.mxu0 0.0
    %3804 = vmatmul.mubr.f32.gmra.mxu0 %v3737
    %v3805 = vpop.f32.mrf.mxu0
    %v3806 = vadd.f32 %v3661, %v3805
    %v3807 = vpop.f32.mrf.mxu0
    %v3808 = vadd.f32 %v3663, %v3807
    %3809 = vdwg.mxu0
    %3810 = vmatprep.subr.mxu0 0.0
    %3811 = vmatpush1.msra.mxu0 0.0
    %3812 = vmatprep.subr.mxu0 0.0
    %3813 = vmatpush1.msra.mxu0 0.0
    %3814 = vmatprep.subr.mxu0 0.0
    %3815 = vmatpush1.msra.mxu0 0.0
    %3816 = vmatprep.subr.mxu0 0.0
    %3817 = vmatpush1.msra.mxu0 0.0
    %3818 = vmatprep.subr.mxu0 0.0
    %3819 = vmatpush1.msra.mxu0 0.0
    %3820 = vmatprep.subr.mxu0 0.0
    %3821 = vmatpush1.msra.mxu0 0.0
    %3822 = vmatprep.subr.mxu0 0.0
    %3823 = vmatpush1.msra.mxu0 0.0
    %3824 = vmatprep.subr.mxu0 0.0
    %3825 = vmatpush1.msra.mxu0 0.0
    %3826 = vmatprep.subr.mxu0 0.0
    %3827 = vmatpush1.msra.mxu0 0.0
    %3828 = vmatprep.subr.mxu0 0.0
    %3829 = vmatpush1.msra.mxu0 0.0
    %3830 = vmatprep.subr.mxu0 0.0
    %3831 = vmatpush1.msra.mxu0 0.0
    %3832 = vmatprep.subr.mxu0 0.0
    %3833 = vmatpush1.msra.mxu0 0.0
    %3834 = vmatprep.subr.mxu0 0.0
    %3835 = vmatpush1.msra.mxu0 0.0
    %3836 = vmatprep.subr.mxu0 0.0
    %3837 = vmatpush1.msra.mxu0 0.0
    %3838 = vmatprep.subr.mxu0 %v72
    %3839 = vmatpush1.msra.mxu0 %v71
    %3840 = vmatprep.subr.mxu0 %v68
    %3841 = vmatpush1.msra.mxu0 %v67
    %3842 = vmatprep.subr.mxu0 0.0
    %3843 = vmatpush2.msra.mxu0 0.0
    %3844 = vmatprep.subr.mxu0 0.0
    %3845 = vmatpush2.msra.mxu0 0.0
    %3846 = vmatprep.subr.mxu0 0.0
    %3847 = vmatpush2.msra.mxu0 0.0
    %3848 = vmatprep.subr.mxu0 0.0
    %3849 = vmatpush2.msra.mxu0 0.0
    %3850 = vmatprep.subr.mxu0 0.0
    %3851 = vmatpush2.msra.mxu0 0.0
    %3852 = vmatprep.subr.mxu0 0.0
    %3853 = vmatpush2.msra.mxu0 0.0
    %3854 = vmatprep.subr.mxu0 0.0
    %3855 = vmatpush2.msra.mxu0 0.0
    %3856 = vmatprep.subr.mxu0 0.0
    %3857 = vmatpush2.msra.mxu0 0.0
    %3858 = vmatprep.subr.mxu0 0.0
    %3859 = vmatpush2.msra.mxu0 0.0
    %3860 = vmatprep.subr.mxu0 0.0
    %3861 = vmatpush2.msra.mxu0 0.0
    %3862 = vmatprep.subr.mxu0 0.0
    %3863 = vmatpush2.msra.mxu0 0.0
    %3864 = vmatprep.subr.mxu0 0.0
    %3865 = vmatpush2.msra.mxu0 0.0
    %3866 = vmatprep.subr.mxu0 0.0
    %3867 = vmatpush2.msra.mxu0 0.0
    %3868 = vmatprep.subr.mxu0 0.0
    %3869 = vmatpush2.msra.mxu0 0.0
    %3870 = vmatprep.subr.mxu0 0.0
    %3871 = vmatpush2.msra.mxu0 0.0
    %3872 = vmatprep.subr.mxu0 0.0
    %3873 = vmatpush2.msra.mxu0 0.0
    %3874 = vmatprep.mubr.f32.mxu0 0.0
    %3875 = vmatmul.mubr.f32.gmra.mxu0 %v3737
    %v3876 = vpop.f32.mrf.mxu0
    %v3877 = vadd.f32 %v3732, %v3876
    %v3878 = vpop.f32.mrf.mxu0
    %v3879 = vadd.f32 %v3734, %v3878
    %3880 = vdwg.mxu0
    %v3881 = vadd.f32 %v3806, %v434
    %v3882 = vadd.f32 %v3808, %v438
    %v3883 = vadd.f32 %v3877, %v442
    %v3884 = vadd.f32 %v3879, %v446
    %v3885 = vmul.f32 %v3881, 0.5
    %v3886 = vtanh.pop %v3885
    %v3887 = vadd.f32 %v3886, 1.0
    %v3888 = vmul.f32 %v3887, 0.5
    %v3889 = vmul.f32 %v3882, 0.5
    %v3890 = vtanh.pop %v3889
    %v3891 = vadd.f32 %v3890, 1.0
    %v3892 = vmul.f32 %v3891, 0.5
    %v3893 = vtanh.pop %v3883
    %v3894 = vmul.f32 %v3884, 0.5
    %v3895 = vtanh.pop %v3894
    %v3896 = vadd.f32 %v3895, 1.0
    %v3897 = vmul.f32 %v3896, 0.5
    %v3898 = vmul.f32 %v3892, %v3590
    %v3899 = vmul.f32 %v3888, %v3893
    %v3900 = vadd.f32 %v3898, %v3899
    %v3901 = vtanh.pop %v3900
    %v3902 = vmul.f32 %v3897, %v3901
    %v3903 = vsel %vm2963, %v3900, %v2647
    %v3904 = vsel %vm2963, %v3902, %v2649
    %s3905 = scalar_lea.vmem [#allocation3], 96
    %v3906 = vld [vmem:[%s3905] sm:$0xff]
    %3907 = vmatprep.subr.mxu0 %v134
    %3908 = vmatpush1.msra.mxu0 %v133
    %3909 = vmatprep.subr.mxu0 %v130
    %3910 = vmatpush1.msra.mxu0 %v129
    %3911 = vmatprep.subr.mxu0 %v126
    %3912 = vmatpush1.msra.mxu0 %v125
    %3913 = vmatprep.subr.mxu0 %v122
    %3914 = vmatpush1.msra.mxu0 %v121
    %3915 = vmatprep.subr.mxu0 %v118
    %3916 = vmatpush1.msra.mxu0 %v117
    %3917 = vmatprep.subr.mxu0 %v114
    %3918 = vmatpush1.msra.mxu0 %v113
    %3919 = vmatprep.subr.mxu0 %v110
    %3920 = vmatpush1.msra.mxu0 %v109
    %3921 = vmatprep.subr.mxu0 %v106
    %3922 = vmatpush1.msra.mxu0 %v105
    %3923 = vmatprep.subr.mxu0 %v102
    %3924 = vmatpush1.msra.mxu0 %v101
    %3925 = vmatprep.subr.mxu0 %v98
    %3926 = vmatpush1.msra.mxu0 %v97
    %3927 = vmatprep.subr.mxu0 %v94
    %3928 = vmatpush1.msra.mxu0 %v93
    %3929 = vmatprep.subr.mxu0 %v90
    %3930 = vmatpush1.msra.mxu0 %v89
    %3931 = vmatprep.subr.mxu0 %v86
    %3932 = vmatpush1.msra.mxu0 %v85
    %3933 = vmatprep.subr.mxu0 %v82
    %3934 = vmatpush1.msra.mxu0 %v81
    %3935 = vmatprep.subr.mxu0 %v78
    %3936 = vmatpush1.msra.mxu0 %v77
    %3937 = vmatprep.subr.mxu0 %v74
    %3938 = vmatpush1.msra.mxu0 %v73
    %3939 = vmatprep.subr.mxu0 0.0
    %3940 = vmatpush2.msra.mxu0 0.0
    %3941 = vmatprep.subr.mxu0 0.0
    %3942 = vmatpush2.msra.mxu0 0.0
    %3943 = vmatprep.subr.mxu0 0.0
    %3944 = vmatpush2.msra.mxu0 0.0
    %3945 = vmatprep.subr.mxu0 0.0
    %3946 = vmatpush2.msra.mxu0 0.0
    %3947 = vmatprep.subr.mxu0 0.0
    %3948 = vmatpush2.msra.mxu0 0.0
    %3949 = vmatprep.subr.mxu0 0.0
    %3950 = vmatpush2.msra.mxu0 0.0
    %3951 = vmatprep.subr.mxu0 0.0
    %3952 = vmatpush2.msra.mxu0 0.0
    %3953 = vmatprep.subr.mxu0 0.0
    %3954 = vmatpush2.msra.mxu0 0.0
    %3955 = vmatprep.subr.mxu0 0.0
    %3956 = vmatpush2.msra.mxu0 0.0
    %3957 = vmatprep.subr.mxu0 0.0
    %3958 = vmatpush2.msra.mxu0 0.0
    %3959 = vmatprep.subr.mxu0 0.0
    %3960 = vmatpush2.msra.mxu0 0.0
    %3961 = vmatprep.subr.mxu0 0.0
    %3962 = vmatpush2.msra.mxu0 0.0
    %3963 = vmatprep.subr.mxu0 0.0
    %3964 = vmatpush2.msra.mxu0 0.0
    %3965 = vmatprep.subr.mxu0 0.0
    %3966 = vmatpush2.msra.mxu0 0.0
    %3967 = vmatprep.subr.mxu0 0.0
    %3968 = vmatpush2.msra.mxu0 0.0
    %3969 = vmatprep.subr.mxu0 0.0
    %3970 = vmatpush2.msra.mxu0 0.0
    %3971 = vmatprep.mubr.f32.mxu0 0.0
    %3972 = vmatmul.mubr.f32.gmra.mxu0 %v3904
    %v3973 = vpop.f32.mrf.mxu0
    %v3974 = vadd.f32 0.0, %v3973
    %v3975 = vpop.f32.mrf.mxu0
    %v3976 = vadd.f32 0.0, %v3975
    %3977 = vdwg.mxu0
    %3978 = vmatprep.subr.mxu0 %v136
    %3979 = vmatpush1.msra.mxu0 %v135
    %3980 = vmatprep.subr.mxu0 %v132
    %3981 = vmatpush1.msra.mxu0 %v131
    %3982 = vmatprep.subr.mxu0 %v128
    %3983 = vmatpush1.msra.mxu0 %v127
    %3984 = vmatprep.subr.mxu0 %v124
    %3985 = vmatpush1.msra.mxu0 %v123
    %3986 = vmatprep.subr.mxu0 %v120
    %3987 = vmatpush1.msra.mxu0 %v119
    %3988 = vmatprep.subr.mxu0 %v116
    %3989 = vmatpush1.msra.mxu0 %v115
    %3990 = vmatprep.subr.mxu0 %v112
    %3991 = vmatpush1.msra.mxu0 %v111
    %3992 = vmatprep.subr.mxu0 %v108
    %3993 = vmatpush1.msra.mxu0 %v107
    %3994 = vmatprep.subr.mxu0 %v104
    %3995 = vmatpush1.msra.mxu0 %v103
    %3996 = vmatprep.subr.mxu0 %v100
    %3997 = vmatpush1.msra.mxu0 %v99
    %3998 = vmatprep.subr.mxu0 %v96
    %3999 = vmatpush1.msra.mxu0 %v95
    %4000 = vmatprep.subr.mxu0 %v92
    %4001 = vmatpush1.msra.mxu0 %v91
    %4002 = vmatprep.subr.mxu0 %v88
    %4003 = vmatpush1.msra.mxu0 %v87
    %4004 = vmatprep.subr.mxu0 %v84
    %4005 = vmatpush1.msra.mxu0 %v83
    %4006 = vmatprep.subr.mxu0 %v80
    %4007 = vmatpush1.msra.mxu0 %v79
    %4008 = vmatprep.subr.mxu0 %v76
    %4009 = vmatpush1.msra.mxu0 %v75
    %4010 = vmatprep.subr.mxu0 0.0
    %4011 = vmatpush2.msra.mxu0 0.0
    %4012 = vmatprep.subr.mxu0 0.0
    %4013 = vmatpush2.msra.mxu0 0.0
    %4014 = vmatprep.subr.mxu0 0.0
    %4015 = vmatpush2.msra.mxu0 0.0
    %4016 = vmatprep.subr.mxu0 0.0
    %4017 = vmatpush2.msra.mxu0 0.0
    %4018 = vmatprep.subr.mxu0 0.0
    %4019 = vmatpush2.msra.mxu0 0.0
    %4020 = vmatprep.subr.mxu0 0.0
    %4021 = vmatpush2.msra.mxu0 0.0
    %4022 = vmatprep.subr.mxu0 0.0
    %4023 = vmatpush2.msra.mxu0 0.0
    %4024 = vmatprep.subr.mxu0 0.0
    %4025 = vmatpush2.msra.mxu0 0.0
    %4026 = vmatprep.subr.mxu0 0.0
    %4027 = vmatpush2.msra.mxu0 0.0
    %4028 = vmatprep.subr.mxu0 0.0
    %4029 = vmatpush2.msra.mxu0 0.0
    %4030 = vmatprep.subr.mxu0 0.0
    %4031 = vmatpush2.msra.mxu0 0.0
    %4032 = vmatprep.subr.mxu0 0.0
    %4033 = vmatpush2.msra.mxu0 0.0
    %4034 = vmatprep.subr.mxu0 0.0
    %4035 = vmatpush2.msra.mxu0 0.0
    %4036 = vmatprep.subr.mxu0 0.0
    %4037 = vmatpush2.msra.mxu0 0.0
    %4038 = vmatprep.subr.mxu0 0.0
    %4039 = vmatpush2.msra.mxu0 0.0
    %4040 = vmatprep.subr.mxu0 0.0
    %4041 = vmatpush2.msra.mxu0 0.0
    %4042 = vmatprep.mubr.f32.mxu0 0.0
    %4043 = vmatmul.mubr.f32.gmra.mxu0 %v3904
    %v4044 = vpop.f32.mrf.mxu0
    %v4045 = vadd.f32 0.0, %v4044
    %v4046 = vpop.f32.mrf.mxu0
    %v4047 = vadd.f32 0.0, %v4046
    %4048 = vdwg.mxu0
    %v4050 = vsel %vm284, %v3906, 0
    %4052 = vmatprep.subr.mxu0 0.0
    %4053 = vmatpush1.msra.mxu0 0.0
    %4054 = vmatprep.subr.mxu0 0.0
    %4055 = vmatpush1.msra.mxu0 0.0
    %4056 = vmatprep.subr.mxu0 0.0
    %4057 = vmatpush1.msra.mxu0 0.0
    %4058 = vmatprep.subr.mxu0 0.0
    %4059 = vmatpush1.msra.mxu0 0.0
    %4060 = vmatprep.subr.mxu0 0.0
    %4061 = vmatpush1.msra.mxu0 0.0
    %4062 = vmatprep.subr.mxu0 0.0
    %4063 = vmatpush1.msra.mxu0 0.0
    %4064 = vmatprep.subr.mxu0 0.0
    %4065 = vmatpush1.msra.mxu0 0.0
    %4066 = vmatprep.subr.mxu0 0.0
    %4067 = vmatpush1.msra.mxu0 0.0
    %4068 = vmatprep.subr.mxu0 0.0
    %4069 = vmatpush1.msra.mxu0 0.0
    %4070 = vmatprep.subr.mxu0 0.0
    %4071 = vmatpush1.msra.mxu0 0.0
    %4072 = vmatprep.subr.mxu0 0.0
    %4073 = vmatpush1.msra.mxu0 0.0
    %4074 = vmatprep.subr.mxu0 0.0
    %4075 = vmatpush1.msra.mxu0 0.0
    %4076 = vmatprep.subr.mxu0 0.0
    %4077 = vmatpush1.msra.mxu0 0.0
    %4078 = vmatprep.subr.mxu0 0.0
    %4079 = vmatpush1.msra.mxu0 0.0
    %4080 = vmatprep.subr.mxu0 %v70
    %4081 = vmatpush1.msra.mxu0 %v69
    %4082 = vmatprep.subr.mxu0 %v66
    %4083 = vmatpush1.msra.mxu0 %v65
    %4084 = vmatprep.subr.mxu0 0.0
    %4085 = vmatpush2.msra.mxu0 0.0
    %4086 = vmatprep.subr.mxu0 0.0
    %4087 = vmatpush2.msra.mxu0 0.0
    %4088 = vmatprep.subr.mxu0 0.0
    %4089 = vmatpush2.msra.mxu0 0.0
    %4090 = vmatprep.subr.mxu0 0.0
    %4091 = vmatpush2.msra.mxu0 0.0
    %4092 = vmatprep.subr.mxu0 0.0
    %4093 = vmatpush2.msra.mxu0 0.0
    %4094 = vmatprep.subr.mxu0 0.0
    %4095 = vmatpush2.msra.mxu0 0.0
    %4096 = vmatprep.subr.mxu0 0.0
    %4097 = vmatpush2.msra.mxu0 0.0
    %4098 = vmatprep.subr.mxu0 0.0
    %4099 = vmatpush2.msra.mxu0 0.0
    %4100 = vmatprep.subr.mxu0 0.0
    %4101 = vmatpush2.msra.mxu0 0.0
    %4102 = vmatprep.subr.mxu0 0.0
    %4103 = vmatpush2.msra.mxu0 0.0
    %4104 = vmatprep.subr.mxu0 0.0
    %4105 = vmatpush2.msra.mxu0 0.0
    %4106 = vmatprep.subr.mxu0 0.0
    %4107 = vmatpush2.msra.mxu0 0.0
    %4108 = vmatprep.subr.mxu0 0.0
    %4109 = vmatpush2.msra.mxu0 0.0
    %4110 = vmatprep.subr.mxu0 0.0
    %4111 = vmatpush2.msra.mxu0 0.0
    %4112 = vmatprep.subr.mxu0 0.0
    %4113 = vmatpush2.msra.mxu0 0.0
    %4114 = vmatprep.subr.mxu0 0.0
    %4115 = vmatpush2.msra.mxu0 0.0
    %4116 = vmatprep.mubr.f32.mxu0 0.0
    %4117 = vmatmul.mubr.f32.gmra.mxu0 %v4050
    %v4118 = vpop.f32.mrf.mxu0
    %v4119 = vadd.f32 %v3974, %v4118
    %v4120 = vpop.f32.mrf.mxu0
    %v4121 = vadd.f32 %v3976, %v4120
    %4122 = vdwg.mxu0
    %4123 = vmatprep.subr.mxu0 0.0
    %4124 = vmatpush1.msra.mxu0 0.0
    %4125 = vmatprep.subr.mxu0 0.0
    %4126 = vmatpush1.msra.mxu0 0.0
    %4127 = vmatprep.subr.mxu0 0.0
    %4128 = vmatpush1.msra.mxu0 0.0
    %4129 = vmatprep.subr.mxu0 0.0
    %4130 = vmatpush1.msra.mxu0 0.0
    %4131 = vmatprep.subr.mxu0 0.0
    %4132 = vmatpush1.msra.mxu0 0.0
    %4133 = vmatprep.subr.mxu0 0.0
    %4134 = vmatpush1.msra.mxu0 0.0
    %4135 = vmatprep.subr.mxu0 0.0
    %4136 = vmatpush1.msra.mxu0 0.0
    %4137 = vmatprep.subr.mxu0 0.0
    %4138 = vmatpush1.msra.mxu0 0.0
    %4139 = vmatprep.subr.mxu0 0.0
    %4140 = vmatpush1.msra.mxu0 0.0
    %4141 = vmatprep.subr.mxu0 0.0
    %4142 = vmatpush1.msra.mxu0 0.0
    %4143 = vmatprep.subr.mxu0 0.0
    %4144 = vmatpush1.msra.mxu0 0.0
    %4145 = vmatprep.subr.mxu0 0.0
    %4146 = vmatpush1.msra.mxu0 0.0
    %4147 = vmatprep.subr.mxu0 0.0
    %4148 = vmatpush1.msra.mxu0 0.0
    %4149 = vmatprep.subr.mxu0 0.0
    %4150 = vmatpush1.msra.mxu0 0.0
    %4151 = vmatprep.subr.mxu0 %v72
    %4152 = vmatpush1.msra.mxu0 %v71
    %4153 = vmatprep.subr.mxu0 %v68
    %4154 = vmatpush1.msra.mxu0 %v67
    %4155 = vmatprep.subr.mxu0 0.0
    %4156 = vmatpush2.msra.mxu0 0.0
    %4157 = vmatprep.subr.mxu0 0.0
    %4158 = vmatpush2.msra.mxu0 0.0
    %4159 = vmatprep.subr.mxu0 0.0
    %4160 = vmatpush2.msra.mxu0 0.0
    %4161 = vmatprep.subr.mxu0 0.0
    %4162 = vmatpush2.msra.mxu0 0.0
    %4163 = vmatprep.subr.mxu0 0.0
    %4164 = vmatpush2.msra.mxu0 0.0
    %4165 = vmatprep.subr.mxu0 0.0
    %4166 = vmatpush2.msra.mxu0 0.0
    %4167 = vmatprep.subr.mxu0 0.0
    %4168 = vmatpush2.msra.mxu0 0.0
    %4169 = vmatprep.subr.mxu0 0.0
    %4170 = vmatpush2.msra.mxu0 0.0
    %4171 = vmatprep.subr.mxu0 0.0
    %4172 = vmatpush2.msra.mxu0 0.0
    %4173 = vmatprep.subr.mxu0 0.0
    %4174 = vmatpush2.msra.mxu0 0.0
    %4175 = vmatprep.subr.mxu0 0.0
    %4176 = vmatpush2.msra.mxu0 0.0
    %4177 = vmatprep.subr.mxu0 0.0
    %4178 = vmatpush2.msra.mxu0 0.0
    %4179 = vmatprep.subr.mxu0 0.0
    %4180 = vmatpush2.msra.mxu0 0.0
    %4181 = vmatprep.subr.mxu0 0.0
    %4182 = vmatpush2.msra.mxu0 0.0
    %4183 = vmatprep.subr.mxu0 0.0
    %4184 = vmatpush2.msra.mxu0 0.0
    %4185 = vmatprep.subr.mxu0 0.0
    %4186 = vmatpush2.msra.mxu0 0.0
    %4187 = vmatprep.mubr.f32.mxu0 0.0
    %4188 = vmatmul.mubr.f32.gmra.mxu0 %v4050
    %v4189 = vpop.f32.mrf.mxu0
    %v4190 = vadd.f32 %v4045, %v4189
    %v4191 = vpop.f32.mrf.mxu0
    %v4192 = vadd.f32 %v4047, %v4191
    %4193 = vdwg.mxu0
    %v4194 = vadd.f32 %v4119, %v434
    %v4195 = vadd.f32 %v4121, %v438
    %v4196 = vadd.f32 %v4190, %v442
    %v4197 = vadd.f32 %v4192, %v446
    %v4198 = vmul.f32 %v4194, 0.5
    %v4199 = vtanh.pop %v4198
    %v4200 = vadd.f32 %v4199, 1.0
    %v4201 = vmul.f32 %v4200, 0.5
    %v4202 = vmul.f32 %v4195, 0.5
    %v4203 = vtanh.pop %v4202
    %v4204 = vadd.f32 %v4203, 1.0
    %v4205 = vmul.f32 %v4204, 0.5
    %v4206 = vtanh.pop %v4196
    %v4207 = vmul.f32 %v4197, 0.5
    %v4208 = vtanh.pop %v4207
    %v4209 = vadd.f32 %v4208, 1.0
    %v4210 = vmul.f32 %v4209, 0.5
    %v4211 = vmul.f32 %v4205, %v3903
    %v4212 = vmul.f32 %v4201, %v4206
    %v4213 = vadd.f32 %v4211, %v4212
    %v4214 = vtanh.pop %v4213
    %v4215 = vmul.f32 %v4210, %v4214
    %v4216 = vsel %vm2963, %v4213, %v2647
    %v4217 = vsel %vm2963, %v4215, %v2649
    %s4218 = scalar_lea.vmem [#allocation3], 104
    %v4219 = vld [vmem:[%s4218] sm:$0xff]
    %4220 = vmatprep.subr.mxu0 %v134
    %4221 = vmatpush1.msra.mxu0 %v133
    %4222 = vmatprep.subr.mxu0 %v130
    %4223 = vmatpush1.msra.mxu0 %v129
    %4224 = vmatprep.subr.mxu0 %v126
    %4225 = vmatpush1.msra.mxu0 %v125
    %4226 = vmatprep.subr.mxu0 %v122
    %4227 = vmatpush1.msra.mxu0 %v121
    %4228 = vmatprep.subr.mxu0 %v118
    %4229 = vmatpush1.msra.mxu0 %v117
    %4230 = vmatprep.subr.mxu0 %v114
    %4231 = vmatpush1.msra.mxu0 %v113
    %4232 = vmatprep.subr.mxu0 %v110
    %4233 = vmatpush1.msra.mxu0 %v109
    %4234 = vmatprep.subr.mxu0 %v106
    %4235 = vmatpush1.msra.mxu0 %v105
    %4236 = vmatprep.subr.mxu0 %v102
    %4237 = vmatpush1.msra.mxu0 %v101
    %4238 = vmatprep.subr.mxu0 %v98
    %4239 = vmatpush1.msra.mxu0 %v97
    %4240 = vmatprep.subr.mxu0 %v94
    %4241 = vmatpush1.msra.mxu0 %v93
    %4242 = vmatprep.subr.mxu0 %v90
    %4243 = vmatpush1.msra.mxu0 %v89
    %4244 = vmatprep.subr.mxu0 %v86
    %4245 = vmatpush1.msra.mxu0 %v85
    %4246 = vmatprep.subr.mxu0 %v82
    %4247 = vmatpush1.msra.mxu0 %v81
    %4248 = vmatprep.subr.mxu0 %v78
    %4249 = vmatpush1.msra.mxu0 %v77
    %4250 = vmatprep.subr.mxu0 %v74
    %4251 = vmatpush1.msra.mxu0 %v73
    %4252 = vmatprep.subr.mxu0 0.0
    %4253 = vmatpush2.msra.mxu0 0.0
    %4254 = vmatprep.subr.mxu0 0.0
    %4255 = vmatpush2.msra.mxu0 0.0
    %4256 = vmatprep.subr.mxu0 0.0
    %4257 = vmatpush2.msra.mxu0 0.0
    %4258 = vmatprep.subr.mxu0 0.0
    %4259 = vmatpush2.msra.mxu0 0.0
    %4260 = vmatprep.subr.mxu0 0.0
    %4261 = vmatpush2.msra.mxu0 0.0
    %4262 = vmatprep.subr.mxu0 0.0
    %4263 = vmatpush2.msra.mxu0 0.0
    %4264 = vmatprep.subr.mxu0 0.0
    %4265 = vmatpush2.msra.mxu0 0.0
    %4266 = vmatprep.subr.mxu0 0.0
    %4267 = vmatpush2.msra.mxu0 0.0
    %4268 = vmatprep.subr.mxu0 0.0
    %4269 = vmatpush2.msra.mxu0 0.0
    %4270 = vmatprep.subr.mxu0 0.0
    %4271 = vmatpush2.msra.mxu0 0.0
    %4272 = vmatprep.subr.mxu0 0.0
    %4273 = vmatpush2.msra.mxu0 0.0
    %4274 = vmatprep.subr.mxu0 0.0
    %4275 = vmatpush2.msra.mxu0 0.0
    %4276 = vmatprep.subr.mxu0 0.0
    %4277 = vmatpush2.msra.mxu0 0.0
    %4278 = vmatprep.subr.mxu0 0.0
    %4279 = vmatpush2.msra.mxu0 0.0
    %4280 = vmatprep.subr.mxu0 0.0
    %4281 = vmatpush2.msra.mxu0 0.0
    %4282 = vmatprep.subr.mxu0 0.0
    %4283 = vmatpush2.msra.mxu0 0.0
    %4284 = vmatprep.mubr.f32.mxu0 0.0
    %4285 = vmatmul.mubr.f32.gmra.mxu0 %v4217
    %v4286 = vpop.f32.mrf.mxu0
    %v4287 = vadd.f32 0.0, %v4286
    %v4288 = vpop.f32.mrf.mxu0
    %v4289 = vadd.f32 0.0, %v4288
    %4290 = vdwg.mxu0
    %4291 = vmatprep.subr.mxu0 %v136
    %4292 = vmatpush1.msra.mxu0 %v135
    %4293 = vmatprep.subr.mxu0 %v132
    %4294 = vmatpush1.msra.mxu0 %v131
    %4295 = vmatprep.subr.mxu0 %v128
    %4296 = vmatpush1.msra.mxu0 %v127
    %4297 = vmatprep.subr.mxu0 %v124
    %4298 = vmatpush1.msra.mxu0 %v123
    %4299 = vmatprep.subr.mxu0 %v120
    %4300 = vmatpush1.msra.mxu0 %v119
    %4301 = vmatprep.subr.mxu0 %v116
    %4302 = vmatpush1.msra.mxu0 %v115
    %4303 = vmatprep.subr.mxu0 %v112
    %4304 = vmatpush1.msra.mxu0 %v111
    %4305 = vmatprep.subr.mxu0 %v108
    %4306 = vmatpush1.msra.mxu0 %v107
    %4307 = vmatprep.subr.mxu0 %v104
    %4308 = vmatpush1.msra.mxu0 %v103
    %4309 = vmatprep.subr.mxu0 %v100
    %4310 = vmatpush1.msra.mxu0 %v99
    %4311 = vmatprep.subr.mxu0 %v96
    %4312 = vmatpush1.msra.mxu0 %v95
    %4313 = vmatprep.subr.mxu0 %v92
    %4314 = vmatpush1.msra.mxu0 %v91
    %4315 = vmatprep.subr.mxu0 %v88
    %4316 = vmatpush1.msra.mxu0 %v87
    %4317 = vmatprep.subr.mxu0 %v84
    %4318 = vmatpush1.msra.mxu0 %v83
    %4319 = vmatprep.subr.mxu0 %v80
    %4320 = vmatpush1.msra.mxu0 %v79
    %4321 = vmatprep.subr.mxu0 %v76
    %4322 = vmatpush1.msra.mxu0 %v75
    %4323 = vmatprep.subr.mxu0 0.0
    %4324 = vmatpush2.msra.mxu0 0.0
    %4325 = vmatprep.subr.mxu0 0.0
    %4326 = vmatpush2.msra.mxu0 0.0
    %4327 = vmatprep.subr.mxu0 0.0
    %4328 = vmatpush2.msra.mxu0 0.0
    %4329 = vmatprep.subr.mxu0 0.0
    %4330 = vmatpush2.msra.mxu0 0.0
    %4331 = vmatprep.subr.mxu0 0.0
    %4332 = vmatpush2.msra.mxu0 0.0
    %4333 = vmatprep.subr.mxu0 0.0
    %4334 = vmatpush2.msra.mxu0 0.0
    %4335 = vmatprep.subr.mxu0 0.0
    %4336 = vmatpush2.msra.mxu0 0.0
    %4337 = vmatprep.subr.mxu0 0.0
    %4338 = vmatpush2.msra.mxu0 0.0
    %4339 = vmatprep.subr.mxu0 0.0
    %4340 = vmatpush2.msra.mxu0 0.0
    %4341 = vmatprep.subr.mxu0 0.0
    %4342 = vmatpush2.msra.mxu0 0.0
    %4343 = vmatprep.subr.mxu0 0.0
    %4344 = vmatpush2.msra.mxu0 0.0
    %4345 = vmatprep.subr.mxu0 0.0
    %4346 = vmatpush2.msra.mxu0 0.0
    %4347 = vmatprep.subr.mxu0 0.0
    %4348 = vmatpush2.msra.mxu0 0.0
    %4349 = vmatprep.subr.mxu0 0.0
    %4350 = vmatpush2.msra.mxu0 0.0
    %4351 = vmatprep.subr.mxu0 0.0
    %4352 = vmatpush2.msra.mxu0 0.0
    %4353 = vmatprep.subr.mxu0 0.0
    %4354 = vmatpush2.msra.mxu0 0.0
    %4355 = vmatprep.mubr.f32.mxu0 0.0
    %4356 = vmatmul.mubr.f32.gmra.mxu0 %v4217
    %v4357 = vpop.f32.mrf.mxu0
    %v4358 = vadd.f32 0.0, %v4357
    %v4359 = vpop.f32.mrf.mxu0
    %v4360 = vadd.f32 0.0, %v4359
    %4361 = vdwg.mxu0
    %v4363 = vsel %vm284, %v4219, 0
    %4365 = vmatprep.subr.mxu0 0.0
    %4366 = vmatpush1.msra.mxu0 0.0
    %4367 = vmatprep.subr.mxu0 0.0
    %4368 = vmatpush1.msra.mxu0 0.0
    %4369 = vmatprep.subr.mxu0 0.0
    %4370 = vmatpush1.msra.mxu0 0.0
    %4371 = vmatprep.subr.mxu0 0.0
    %4372 = vmatpush1.msra.mxu0 0.0
    %4373 = vmatprep.subr.mxu0 0.0
    %4374 = vmatpush1.msra.mxu0 0.0
    %4375 = vmatprep.subr.mxu0 0.0
    %4376 = vmatpush1.msra.mxu0 0.0
    %4377 = vmatprep.subr.mxu0 0.0
    %4378 = vmatpush1.msra.mxu0 0.0
    %4379 = vmatprep.subr.mxu0 0.0
    %4380 = vmatpush1.msra.mxu0 0.0
    %4381 = vmatprep.subr.mxu0 0.0
    %4382 = vmatpush1.msra.mxu0 0.0
    %4383 = vmatprep.subr.mxu0 0.0
    %4384 = vmatpush1.msra.mxu0 0.0
    %4385 = vmatprep.subr.mxu0 0.0
    %4386 = vmatpush1.msra.mxu0 0.0
    %4387 = vmatprep.subr.mxu0 0.0
    %4388 = vmatpush1.msra.mxu0 0.0
    %4389 = vmatprep.subr.mxu0 0.0
    %4390 = vmatpush1.msra.mxu0 0.0
    %4391 = vmatprep.subr.mxu0 0.0
    %4392 = vmatpush1.msra.mxu0 0.0
    %4393 = vmatprep.subr.mxu0 %v70
    %4394 = vmatpush1.msra.mxu0 %v69
    %4395 = vmatprep.subr.mxu0 %v66
    %4396 = vmatpush1.msra.mxu0 %v65
    %4397 = vmatprep.subr.mxu0 0.0
    %4398 = vmatpush2.msra.mxu0 0.0
    %4399 = vmatprep.subr.mxu0 0.0
    %4400 = vmatpush2.msra.mxu0 0.0
    %4401 = vmatprep.subr.mxu0 0.0
    %4402 = vmatpush2.msra.mxu0 0.0
    %4403 = vmatprep.subr.mxu0 0.0
    %4404 = vmatpush2.msra.mxu0 0.0
    %4405 = vmatprep.subr.mxu0 0.0
    %4406 = vmatpush2.msra.mxu0 0.0
    %4407 = vmatprep.subr.mxu0 0.0
    %4408 = vmatpush2.msra.mxu0 0.0
    %4409 = vmatprep.subr.mxu0 0.0
    %4410 = vmatpush2.msra.mxu0 0.0
    %4411 = vmatprep.subr.mxu0 0.0
    %4412 = vmatpush2.msra.mxu0 0.0
    %4413 = vmatprep.subr.mxu0 0.0
    %4414 = vmatpush2.msra.mxu0 0.0
    %4415 = vmatprep.subr.mxu0 0.0
    %4416 = vmatpush2.msra.mxu0 0.0
    %4417 = vmatprep.subr.mxu0 0.0
    %4418 = vmatpush2.msra.mxu0 0.0
    %4419 = vmatprep.subr.mxu0 0.0
    %4420 = vmatpush2.msra.mxu0 0.0
    %4421 = vmatprep.subr.mxu0 0.0
    %4422 = vmatpush2.msra.mxu0 0.0
    %4423 = vmatprep.subr.mxu0 0.0
    %4424 = vmatpush2.msra.mxu0 0.0
    %4425 = vmatprep.subr.mxu0 0.0
    %4426 = vmatpush2.msra.mxu0 0.0
    %4427 = vmatprep.subr.mxu0 0.0
    %4428 = vmatpush2.msra.mxu0 0.0
    %4429 = vmatprep.mubr.f32.mxu0 0.0
    %4430 = vmatmul.mubr.f32.gmra.mxu0 %v4363
    %v4431 = vpop.f32.mrf.mxu0
    %v4432 = vadd.f32 %v4287, %v4431
    %v4433 = vpop.f32.mrf.mxu0
    %v4434 = vadd.f32 %v4289, %v4433
    %4435 = vdwg.mxu0
    %4436 = vmatprep.subr.mxu0 0.0
    %4437 = vmatpush1.msra.mxu0 0.0
    %4438 = vmatprep.subr.mxu0 0.0
    %4439 = vmatpush1.msra.mxu0 0.0
    %4440 = vmatprep.subr.mxu0 0.0
    %4441 = vmatpush1.msra.mxu0 0.0
    %4442 = vmatprep.subr.mxu0 0.0
    %4443 = vmatpush1.msra.mxu0 0.0
    %4444 = vmatprep.subr.mxu0 0.0
    %4445 = vmatpush1.msra.mxu0 0.0
    %4446 = vmatprep.subr.mxu0 0.0
    %4447 = vmatpush1.msra.mxu0 0.0
    %4448 = vmatprep.subr.mxu0 0.0
    %4449 = vmatpush1.msra.mxu0 0.0
    %4450 = vmatprep.subr.mxu0 0.0
    %4451 = vmatpush1.msra.mxu0 0.0
    %4452 = vmatprep.subr.mxu0 0.0
    %4453 = vmatpush1.msra.mxu0 0.0
    %4454 = vmatprep.subr.mxu0 0.0
    %4455 = vmatpush1.msra.mxu0 0.0
    %4456 = vmatprep.subr.mxu0 0.0
    %4457 = vmatpush1.msra.mxu0 0.0
    %4458 = vmatprep.subr.mxu0 0.0
    %4459 = vmatpush1.msra.mxu0 0.0
    %4460 = vmatprep.subr.mxu0 0.0
    %4461 = vmatpush1.msra.mxu0 0.0
    %4462 = vmatprep.subr.mxu0 0.0
    %4463 = vmatpush1.msra.mxu0 0.0
    %4464 = vmatprep.subr.mxu0 %v72
    %4465 = vmatpush1.msra.mxu0 %v71
    %4466 = vmatprep.subr.mxu0 %v68
    %4467 = vmatpush1.msra.mxu0 %v67
    %4468 = vmatprep.subr.mxu0 0.0
    %4469 = vmatpush2.msra.mxu0 0.0
    %4470 = vmatprep.subr.mxu0 0.0
    %4471 = vmatpush2.msra.mxu0 0.0
    %4472 = vmatprep.subr.mxu0 0.0
    %4473 = vmatpush2.msra.mxu0 0.0
    %4474 = vmatprep.subr.mxu0 0.0
    %4475 = vmatpush2.msra.mxu0 0.0
    %4476 = vmatprep.subr.mxu0 0.0
    %4477 = vmatpush2.msra.mxu0 0.0
    %4478 = vmatprep.subr.mxu0 0.0
    %4479 = vmatpush2.msra.mxu0 0.0
    %4480 = vmatprep.subr.mxu0 0.0
    %4481 = vmatpush2.msra.mxu0 0.0
    %4482 = vmatprep.subr.mxu0 0.0
    %4483 = vmatpush2.msra.mxu0 0.0
    %4484 = vmatprep.subr.mxu0 0.0
    %4485 = vmatpush2.msra.mxu0 0.0
    %4486 = vmatprep.subr.mxu0 0.0
    %4487 = vmatpush2.msra.mxu0 0.0
    %4488 = vmatprep.subr.mxu0 0.0
    %4489 = vmatpush2.msra.mxu0 0.0
    %4490 = vmatprep.subr.mxu0 0.0
    %4491 = vmatpush2.msra.mxu0 0.0
    %4492 = vmatprep.subr.mxu0 0.0
    %4493 = vmatpush2.msra.mxu0 0.0
    %4494 = vmatprep.subr.mxu0 0.0
    %4495 = vmatpush2.msra.mxu0 0.0
    %4496 = vmatprep.subr.mxu0 0.0
    %4497 = vmatpush2.msra.mxu0 0.0
    %4498 = vmatprep.subr.mxu0 0.0
    %4499 = vmatpush2.msra.mxu0 0.0
    %4500 = vmatprep.mubr.f32.mxu0 0.0
    %4501 = vmatmul.mubr.f32.gmra.mxu0 %v4363
    %v4502 = vpop.f32.mrf.mxu0
    %v4503 = vadd.f32 %v4358, %v4502
    %v4504 = vpop.f32.mrf.mxu0
    %v4505 = vadd.f32 %v4360, %v4504
    %4506 = vdwg.mxu0
    %v4507 = vadd.f32 %v4432, %v434
    %v4508 = vadd.f32 %v4434, %v438
    %v4509 = vadd.f32 %v4503, %v442
    %v4510 = vadd.f32 %v4505, %v446
    %v4511 = vmul.f32 %v4507, 0.5
    %v4512 = vtanh.pop %v4511
    %v4513 = vadd.f32 %v4512, 1.0
    %v4514 = vmul.f32 %v4513, 0.5
    %v4515 = vmul.f32 %v4508, 0.5
    %v4516 = vtanh.pop %v4515
    %v4517 = vadd.f32 %v4516, 1.0
    %v4518 = vmul.f32 %v4517, 0.5
    %v4519 = vtanh.pop %v4509
    %v4520 = vmul.f32 %v4510, 0.5
    %v4521 = vtanh.pop %v4520
    %v4522 = vadd.f32 %v4521, 1.0
    %v4523 = vmul.f32 %v4522, 0.5
    %v4524 = vmul.f32 %v4518, %v4216
    %v4525 = vmul.f32 %v4514, %v4519
    %v4526 = vadd.f32 %v4524, %v4525
    %v4527 = vtanh.pop %v4526
    %v4528 = vmul.f32 %v4523, %v4527
    %v4529 = vsel %vm2963, %v4526, %v2647
    %v4530 = vsel %vm2963, %v4528, %v2649
    %s4531 = scalar_lea.vmem [#allocation3], 112
    %v4532 = vld [vmem:[%s4531] sm:$0xff]
    %4533 = vmatprep.subr.mxu0 %v134
    %4534 = vmatpush1.msra.mxu0 %v133
    %4535 = vmatprep.subr.mxu0 %v130
    %4536 = vmatpush1.msra.mxu0 %v129
    %4537 = vmatprep.subr.mxu0 %v126
    %4538 = vmatpush1.msra.mxu0 %v125
    %4539 = vmatprep.subr.mxu0 %v122
    %4540 = vmatpush1.msra.mxu0 %v121
    %4541 = vmatprep.subr.mxu0 %v118
    %4542 = vmatpush1.msra.mxu0 %v117
    %4543 = vmatprep.subr.mxu0 %v114
    %4544 = vmatpush1.msra.mxu0 %v113
    %4545 = vmatprep.subr.mxu0 %v110
    %4546 = vmatpush1.msra.mxu0 %v109
    %4547 = vmatprep.subr.mxu0 %v106
    %4548 = vmatpush1.msra.mxu0 %v105
    %4549 = vmatprep.subr.mxu0 %v102
    %4550 = vmatpush1.msra.mxu0 %v101
    %4551 = vmatprep.subr.mxu0 %v98
    %4552 = vmatpush1.msra.mxu0 %v97
    %4553 = vmatprep.subr.mxu0 %v94
    %4554 = vmatpush1.msra.mxu0 %v93
    %4555 = vmatprep.subr.mxu0 %v90
    %4556 = vmatpush1.msra.mxu0 %v89
    %4557 = vmatprep.subr.mxu0 %v86
    %4558 = vmatpush1.msra.mxu0 %v85
    %4559 = vmatprep.subr.mxu0 %v82
    %4560 = vmatpush1.msra.mxu0 %v81
    %4561 = vmatprep.subr.mxu0 %v78
    %4562 = vmatpush1.msra.mxu0 %v77
    %4563 = vmatprep.subr.mxu0 %v74
    %4564 = vmatpush1.msra.mxu0 %v73
    %4565 = vmatprep.subr.mxu0 0.0
    %4566 = vmatpush2.msra.mxu0 0.0
    %4567 = vmatprep.subr.mxu0 0.0
    %4568 = vmatpush2.msra.mxu0 0.0
    %4569 = vmatprep.subr.mxu0 0.0
    %4570 = vmatpush2.msra.mxu0 0.0
    %4571 = vmatprep.subr.mxu0 0.0
    %4572 = vmatpush2.msra.mxu0 0.0
    %4573 = vmatprep.subr.mxu0 0.0
    %4574 = vmatpush2.msra.mxu0 0.0
    %4575 = vmatprep.subr.mxu0 0.0
    %4576 = vmatpush2.msra.mxu0 0.0
    %4577 = vmatprep.subr.mxu0 0.0
    %4578 = vmatpush2.msra.mxu0 0.0
    %4579 = vmatprep.subr.mxu0 0.0
    %4580 = vmatpush2.msra.mxu0 0.0
    %4581 = vmatprep.subr.mxu0 0.0
    %4582 = vmatpush2.msra.mxu0 0.0
    %4583 = vmatprep.subr.mxu0 0.0
    %4584 = vmatpush2.msra.mxu0 0.0
    %4585 = vmatprep.subr.mxu0 0.0
    %4586 = vmatpush2.msra.mxu0 0.0
    %4587 = vmatprep.subr.mxu0 0.0
    %4588 = vmatpush2.msra.mxu0 0.0
    %4589 = vmatprep.subr.mxu0 0.0
    %4590 = vmatpush2.msra.mxu0 0.0
    %4591 = vmatprep.subr.mxu0 0.0
    %4592 = vmatpush2.msra.mxu0 0.0
    %4593 = vmatprep.subr.mxu0 0.0
    %4594 = vmatpush2.msra.mxu0 0.0
    %4595 = vmatprep.subr.mxu0 0.0
    %4596 = vmatpush2.msra.mxu0 0.0
    %4597 = vmatprep.mubr.f32.mxu0 0.0
    %4598 = vmatmul.mubr.f32.gmra.mxu0 %v4530
    %v4599 = vpop.f32.mrf.mxu0
    %v4600 = vadd.f32 0.0, %v4599
    %v4601 = vpop.f32.mrf.mxu0
    %v4602 = vadd.f32 0.0, %v4601
    %4603 = vdwg.mxu0
    %4604 = vmatprep.subr.mxu0 %v136
    %4605 = vmatpush1.msra.mxu0 %v135
    %4606 = vmatprep.subr.mxu0 %v132
    %4607 = vmatpush1.msra.mxu0 %v131
    %4608 = vmatprep.subr.mxu0 %v128
    %4609 = vmatpush1.msra.mxu0 %v127
    %4610 = vmatprep.subr.mxu0 %v124
    %4611 = vmatpush1.msra.mxu0 %v123
    %4612 = vmatprep.subr.mxu0 %v120
    %4613 = vmatpush1.msra.mxu0 %v119
    %4614 = vmatprep.subr.mxu0 %v116
    %4615 = vmatpush1.msra.mxu0 %v115
    %4616 = vmatprep.subr.mxu0 %v112
    %4617 = vmatpush1.msra.mxu0 %v111
    %4618 = vmatprep.subr.mxu0 %v108
    %4619 = vmatpush1.msra.mxu0 %v107
    %4620 = vmatprep.subr.mxu0 %v104
    %4621 = vmatpush1.msra.mxu0 %v103
    %4622 = vmatprep.subr.mxu0 %v100
    %4623 = vmatpush1.msra.mxu0 %v99
    %4624 = vmatprep.subr.mxu0 %v96
    %4625 = vmatpush1.msra.mxu0 %v95
    %4626 = vmatprep.subr.mxu0 %v92
    %4627 = vmatpush1.msra.mxu0 %v91
    %4628 = vmatprep.subr.mxu0 %v88
    %4629 = vmatpush1.msra.mxu0 %v87
    %4630 = vmatprep.subr.mxu0 %v84
    %4631 = vmatpush1.msra.mxu0 %v83
    %4632 = vmatprep.subr.mxu0 %v80
    %4633 = vmatpush1.msra.mxu0 %v79
    %4634 = vmatprep.subr.mxu0 %v76
    %4635 = vmatpush1.msra.mxu0 %v75
    %4636 = vmatprep.subr.mxu0 0.0
    %4637 = vmatpush2.msra.mxu0 0.0
    %4638 = vmatprep.subr.mxu0 0.0
    %4639 = vmatpush2.msra.mxu0 0.0
    %4640 = vmatprep.subr.mxu0 0.0
    %4641 = vmatpush2.msra.mxu0 0.0
    %4642 = vmatprep.subr.mxu0 0.0
    %4643 = vmatpush2.msra.mxu0 0.0
    %4644 = vmatprep.subr.mxu0 0.0
    %4645 = vmatpush2.msra.mxu0 0.0
    %4646 = vmatprep.subr.mxu0 0.0
    %4647 = vmatpush2.msra.mxu0 0.0
    %4648 = vmatprep.subr.mxu0 0.0
    %4649 = vmatpush2.msra.mxu0 0.0
    %4650 = vmatprep.subr.mxu0 0.0
    %4651 = vmatpush2.msra.mxu0 0.0
    %4652 = vmatprep.subr.mxu0 0.0
    %4653 = vmatpush2.msra.mxu0 0.0
    %4654 = vmatprep.subr.mxu0 0.0
    %4655 = vmatpush2.msra.mxu0 0.0
    %4656 = vmatprep.subr.mxu0 0.0
    %4657 = vmatpush2.msra.mxu0 0.0
    %4658 = vmatprep.subr.mxu0 0.0
    %4659 = vmatpush2.msra.mxu0 0.0
    %4660 = vmatprep.subr.mxu0 0.0
    %4661 = vmatpush2.msra.mxu0 0.0
    %4662 = vmatprep.subr.mxu0 0.0
    %4663 = vmatpush2.msra.mxu0 0.0
    %4664 = vmatprep.subr.mxu0 0.0
    %4665 = vmatpush2.msra.mxu0 0.0
    %4666 = vmatprep.subr.mxu0 0.0
    %4667 = vmatpush2.msra.mxu0 0.0
    %4668 = vmatprep.mubr.f32.mxu0 0.0
    %4669 = vmatmul.mubr.f32.gmra.mxu0 %v4530
    %v4670 = vpop.f32.mrf.mxu0
    %v4671 = vadd.f32 0.0, %v4670
    %v4672 = vpop.f32.mrf.mxu0
    %v4673 = vadd.f32 0.0, %v4672
    %4674 = vdwg.mxu0
    %v4676 = vsel %vm284, %v4532, 0
    %4678 = vmatprep.subr.mxu0 0.0
    %4679 = vmatpush1.msra.mxu0 0.0
    %4680 = vmatprep.subr.mxu0 0.0
    %4681 = vmatpush1.msra.mxu0 0.0
    %4682 = vmatprep.subr.mxu0 0.0
    %4683 = vmatpush1.msra.mxu0 0.0
    %4684 = vmatprep.subr.mxu0 0.0
    %4685 = vmatpush1.msra.mxu0 0.0
    %4686 = vmatprep.subr.mxu0 0.0
    %4687 = vmatpush1.msra.mxu0 0.0
    %4688 = vmatprep.subr.mxu0 0.0
    %4689 = vmatpush1.msra.mxu0 0.0
    %4690 = vmatprep.subr.mxu0 0.0
    %4691 = vmatpush1.msra.mxu0 0.0
    %4692 = vmatprep.subr.mxu0 0.0
    %4693 = vmatpush1.msra.mxu0 0.0
    %4694 = vmatprep.subr.mxu0 0.0
    %4695 = vmatpush1.msra.mxu0 0.0
    %4696 = vmatprep.subr.mxu0 0.0
    %4697 = vmatpush1.msra.mxu0 0.0
    %4698 = vmatprep.subr.mxu0 0.0
    %4699 = vmatpush1.msra.mxu0 0.0
    %4700 = vmatprep.subr.mxu0 0.0
    %4701 = vmatpush1.msra.mxu0 0.0
    %4702 = vmatprep.subr.mxu0 0.0
    %4703 = vmatpush1.msra.mxu0 0.0
    %4704 = vmatprep.subr.mxu0 0.0
    %4705 = vmatpush1.msra.mxu0 0.0
    %4706 = vmatprep.subr.mxu0 %v70
    %4707 = vmatpush1.msra.mxu0 %v69
    %4708 = vmatprep.subr.mxu0 %v66
    %4709 = vmatpush1.msra.mxu0 %v65
    %4710 = vmatprep.subr.mxu0 0.0
    %4711 = vmatpush2.msra.mxu0 0.0
    %4712 = vmatprep.subr.mxu0 0.0
    %4713 = vmatpush2.msra.mxu0 0.0
    %4714 = vmatprep.subr.mxu0 0.0
    %4715 = vmatpush2.msra.mxu0 0.0
    %4716 = vmatprep.subr.mxu0 0.0
    %4717 = vmatpush2.msra.mxu0 0.0
    %4718 = vmatprep.subr.mxu0 0.0
    %4719 = vmatpush2.msra.mxu0 0.0
    %4720 = vmatprep.subr.mxu0 0.0
    %4721 = vmatpush2.msra.mxu0 0.0
    %4722 = vmatprep.subr.mxu0 0.0
    %4723 = vmatpush2.msra.mxu0 0.0
    %4724 = vmatprep.subr.mxu0 0.0
    %4725 = vmatpush2.msra.mxu0 0.0
    %4726 = vmatprep.subr.mxu0 0.0
    %4727 = vmatpush2.msra.mxu0 0.0
    %4728 = vmatprep.subr.mxu0 0.0
    %4729 = vmatpush2.msra.mxu0 0.0
    %4730 = vmatprep.subr.mxu0 0.0
    %4731 = vmatpush2.msra.mxu0 0.0
    %4732 = vmatprep.subr.mxu0 0.0
    %4733 = vmatpush2.msra.mxu0 0.0
    %4734 = vmatprep.subr.mxu0 0.0
    %4735 = vmatpush2.msra.mxu0 0.0
    %4736 = vmatprep.subr.mxu0 0.0
    %4737 = vmatpush2.msra.mxu0 0.0
    %4738 = vmatprep.subr.mxu0 0.0
    %4739 = vmatpush2.msra.mxu0 0.0
    %4740 = vmatprep.subr.mxu0 0.0
    %4741 = vmatpush2.msra.mxu0 0.0
    %4742 = vmatprep.mubr.f32.mxu0 0.0
    %4743 = vmatmul.mubr.f32.gmra.mxu0 %v4676
    %v4744 = vpop.f32.mrf.mxu0
    %v4745 = vadd.f32 %v4600, %v4744
    %v4746 = vpop.f32.mrf.mxu0
    %v4747 = vadd.f32 %v4602, %v4746
    %4748 = vdwg.mxu0
    %4749 = vmatprep.subr.mxu0 0.0
    %4750 = vmatpush1.msra.mxu0 0.0
    %4751 = vmatprep.subr.mxu0 0.0
    %4752 = vmatpush1.msra.mxu0 0.0
    %4753 = vmatprep.subr.mxu0 0.0
    %4754 = vmatpush1.msra.mxu0 0.0
    %4755 = vmatprep.subr.mxu0 0.0
    %4756 = vmatpush1.msra.mxu0 0.0
    %4757 = vmatprep.subr.mxu0 0.0
    %4758 = vmatpush1.msra.mxu0 0.0
    %4759 = vmatprep.subr.mxu0 0.0
    %4760 = vmatpush1.msra.mxu0 0.0
    %4761 = vmatprep.subr.mxu0 0.0
    %4762 = vmatpush1.msra.mxu0 0.0
    %4763 = vmatprep.subr.mxu0 0.0
    %4764 = vmatpush1.msra.mxu0 0.0
    %4765 = vmatprep.subr.mxu0 0.0
    %4766 = vmatpush1.msra.mxu0 0.0
    %4767 = vmatprep.subr.mxu0 0.0
    %4768 = vmatpush1.msra.mxu0 0.0
    %4769 = vmatprep.subr.mxu0 0.0
    %4770 = vmatpush1.msra.mxu0 0.0
    %4771 = vmatprep.subr.mxu0 0.0
    %4772 = vmatpush1.msra.mxu0 0.0
    %4773 = vmatprep.subr.mxu0 0.0
    %4774 = vmatpush1.msra.mxu0 0.0
    %4775 = vmatprep.subr.mxu0 0.0
    %4776 = vmatpush1.msra.mxu0 0.0
    %4777 = vmatprep.subr.mxu0 %v72
    %4778 = vmatpush1.msra.mxu0 %v71
    %4779 = vmatprep.subr.mxu0 %v68
    %4780 = vmatpush1.msra.mxu0 %v67
    %4781 = vmatprep.subr.mxu0 0.0
    %4782 = vmatpush2.msra.mxu0 0.0
    %4783 = vmatprep.subr.mxu0 0.0
    %4784 = vmatpush2.msra.mxu0 0.0
    %4785 = vmatprep.subr.mxu0 0.0
    %4786 = vmatpush2.msra.mxu0 0.0
    %4787 = vmatprep.subr.mxu0 0.0
    %4788 = vmatpush2.msra.mxu0 0.0
    %4789 = vmatprep.subr.mxu0 0.0
    %4790 = vmatpush2.msra.mxu0 0.0
    %4791 = vmatprep.subr.mxu0 0.0
    %4792 = vmatpush2.msra.mxu0 0.0
    %4793 = vmatprep.subr.mxu0 0.0
    %4794 = vmatpush2.msra.mxu0 0.0
    %4795 = vmatprep.subr.mxu0 0.0
    %4796 = vmatpush2.msra.mxu0 0.0
    %4797 = vmatprep.subr.mxu0 0.0
    %4798 = vmatpush2.msra.mxu0 0.0
    %4799 = vmatprep.subr.mxu0 0.0
    %4800 = vmatpush2.msra.mxu0 0.0
    %4801 = vmatprep.subr.mxu0 0.0
    %4802 = vmatpush2.msra.mxu0 0.0
    %4803 = vmatprep.subr.mxu0 0.0
    %4804 = vmatpush2.msra.mxu0 0.0
    %4805 = vmatprep.subr.mxu0 0.0
    %4806 = vmatpush2.msra.mxu0 0.0
    %4807 = vmatprep.subr.mxu0 0.0
    %4808 = vmatpush2.msra.mxu0 0.0
    %4809 = vmatprep.subr.mxu0 0.0
    %4810 = vmatpush2.msra.mxu0 0.0
    %4811 = vmatprep.subr.mxu0 0.0
    %4812 = vmatpush2.msra.mxu0 0.0
    %4813 = vmatprep.mubr.f32.mxu0 0.0
    %4814 = vmatmul.mubr.f32.gmra.mxu0 %v4676
    %v4815 = vpop.f32.mrf.mxu0
    %v4816 = vadd.f32 %v4671, %v4815
    %v4817 = vpop.f32.mrf.mxu0
    %v4818 = vadd.f32 %v4673, %v4817
    %4819 = vdwg.mxu0
    %v4820 = vadd.f32 %v4745, %v434
    %v4821 = vadd.f32 %v4747, %v438
    %v4822 = vadd.f32 %v4816, %v442
    %v4823 = vadd.f32 %v4818, %v446
    %v4824 = vmul.f32 %v4820, 0.5
    %v4825 = vtanh.pop %v4824
    %v4826 = vadd.f32 %v4825, 1.0
    %v4827 = vmul.f32 %v4826, 0.5
    %v4828 = vmul.f32 %v4821, 0.5
    %v4829 = vtanh.pop %v4828
    %v4830 = vadd.f32 %v4829, 1.0
    %v4831 = vmul.f32 %v4830, 0.5
    %v4832 = vtanh.pop %v4822
    %v4833 = vmul.f32 %v4823, 0.5
    %v4834 = vtanh.pop %v4833
    %v4835 = vadd.f32 %v4834, 1.0
    %v4836 = vmul.f32 %v4835, 0.5
    %v4837 = vmul.f32 %v4831, %v4529
    %v4838 = vmul.f32 %v4827, %v4832
    %v4839 = vadd.f32 %v4837, %v4838
    %v4840 = vtanh.pop %v4839
    %v4841 = vmul.f32 %v4836, %v4840
    %v4842 = vsel %vm2963, %v4839, %v2647
    %v4843 = vsel %vm2963, %v4841, %v2649
    %s4844 = scalar_lea.vmem [#allocation3], 120
    %v4845 = vld [vmem:[%s4844] sm:$0xff]
    %4846 = vmatprep.subr.mxu0 %v134
    %4847 = vmatpush1.msra.mxu0 %v133
    %4848 = vmatprep.subr.mxu0 %v130
    %4849 = vmatpush1.msra.mxu0 %v129
    %4850 = vmatprep.subr.mxu0 %v126
    %4851 = vmatpush1.msra.mxu0 %v125
    %4852 = vmatprep.subr.mxu0 %v122
    %4853 = vmatpush1.msra.mxu0 %v121
    %4854 = vmatprep.subr.mxu0 %v118
    %4855 = vmatpush1.msra.mxu0 %v117
    %4856 = vmatprep.subr.mxu0 %v114
    %4857 = vmatpush1.msra.mxu0 %v113
    %4858 = vmatprep.subr.mxu0 %v110
    %4859 = vmatpush1.msra.mxu0 %v109
    %4860 = vmatprep.subr.mxu0 %v106
    %4861 = vmatpush1.msra.mxu0 %v105
    %4862 = vmatprep.subr.mxu0 %v102
    %4863 = vmatpush1.msra.mxu0 %v101
    %4864 = vmatprep.subr.mxu0 %v98
    %4865 = vmatpush1.msra.mxu0 %v97
    %4866 = vmatprep.subr.mxu0 %v94
    %4867 = vmatpush1.msra.mxu0 %v93
    %4868 = vmatprep.subr.mxu0 %v90
    %4869 = vmatpush1.msra.mxu0 %v89
    %4870 = vmatprep.subr.mxu0 %v86
    %4871 = vmatpush1.msra.mxu0 %v85
    %4872 = vmatprep.subr.mxu0 %v82
    %4873 = vmatpush1.msra.mxu0 %v81
    %4874 = vmatprep.subr.mxu0 %v78
    %4875 = vmatpush1.msra.mxu0 %v77
    %4876 = vmatprep.subr.mxu0 %v74
    %4877 = vmatpush1.msra.mxu0 %v73
    %4878 = vmatprep.subr.mxu0 0.0
    %4879 = vmatpush2.msra.mxu0 0.0
    %4880 = vmatprep.subr.mxu0 0.0
    %4881 = vmatpush2.msra.mxu0 0.0
    %4882 = vmatprep.subr.mxu0 0.0
    %4883 = vmatpush2.msra.mxu0 0.0
    %4884 = vmatprep.subr.mxu0 0.0
    %4885 = vmatpush2.msra.mxu0 0.0
    %4886 = vmatprep.subr.mxu0 0.0
    %4887 = vmatpush2.msra.mxu0 0.0
    %4888 = vmatprep.subr.mxu0 0.0
    %4889 = vmatpush2.msra.mxu0 0.0
    %4890 = vmatprep.subr.mxu0 0.0
    %4891 = vmatpush2.msra.mxu0 0.0
    %4892 = vmatprep.subr.mxu0 0.0
    %4893 = vmatpush2.msra.mxu0 0.0
    %4894 = vmatprep.subr.mxu0 0.0
    %4895 = vmatpush2.msra.mxu0 0.0
    %4896 = vmatprep.subr.mxu0 0.0
    %4897 = vmatpush2.msra.mxu0 0.0
    %4898 = vmatprep.subr.mxu0 0.0
    %4899 = vmatpush2.msra.mxu0 0.0
    %4900 = vmatprep.subr.mxu0 0.0
    %4901 = vmatpush2.msra.mxu0 0.0
    %4902 = vmatprep.subr.mxu0 0.0
    %4903 = vmatpush2.msra.mxu0 0.0
    %4904 = vmatprep.subr.mxu0 0.0
    %4905 = vmatpush2.msra.mxu0 0.0
    %4906 = vmatprep.subr.mxu0 0.0
    %4907 = vmatpush2.msra.mxu0 0.0
    %4908 = vmatprep.subr.mxu0 0.0
    %4909 = vmatpush2.msra.mxu0 0.0
    %4910 = vmatprep.mubr.f32.mxu0 0.0
    %4911 = vmatmul.mubr.f32.gmra.mxu0 %v4843
    %v4912 = vpop.f32.mrf.mxu0
    %v4913 = vadd.f32 0.0, %v4912
    %v4914 = vpop.f32.mrf.mxu0
    %v4915 = vadd.f32 0.0, %v4914
    %4916 = vdwg.mxu0
    %4917 = vmatprep.subr.mxu0 %v136
    %4918 = vmatpush1.msra.mxu0 %v135
    %4919 = vmatprep.subr.mxu0 %v132
    %4920 = vmatpush1.msra.mxu0 %v131
    %4921 = vmatprep.subr.mxu0 %v128
    %4922 = vmatpush1.msra.mxu0 %v127
    %4923 = vmatprep.subr.mxu0 %v124
    %4924 = vmatpush1.msra.mxu0 %v123
    %4925 = vmatprep.subr.mxu0 %v120
    %4926 = vmatpush1.msra.mxu0 %v119
    %4927 = vmatprep.subr.mxu0 %v116
    %4928 = vmatpush1.msra.mxu0 %v115
    %4929 = vmatprep.subr.mxu0 %v112
    %4930 = vmatpush1.msra.mxu0 %v111
    %4931 = vmatprep.subr.mxu0 %v108
    %4932 = vmatpush1.msra.mxu0 %v107
    %4933 = vmatprep.subr.mxu0 %v104
    %4934 = vmatpush1.msra.mxu0 %v103
    %4935 = vmatprep.subr.mxu0 %v100
    %4936 = vmatpush1.msra.mxu0 %v99
    %4937 = vmatprep.subr.mxu0 %v96
    %4938 = vmatpush1.msra.mxu0 %v95
    %4939 = vmatprep.subr.mxu0 %v92
    %4940 = vmatpush1.msra.mxu0 %v91
    %4941 = vmatprep.subr.mxu0 %v88
    %4942 = vmatpush1.msra.mxu0 %v87
    %4943 = vmatprep.subr.mxu0 %v84
    %4944 = vmatpush1.msra.mxu0 %v83
    %4945 = vmatprep.subr.mxu0 %v80
    %4946 = vmatpush1.msra.mxu0 %v79
    %4947 = vmatprep.subr.mxu0 %v76
    %4948 = vmatpush1.msra.mxu0 %v75
    %4949 = vmatprep.subr.mxu0 0.0
    %4950 = vmatpush2.msra.mxu0 0.0
    %4951 = vmatprep.subr.mxu0 0.0
    %4952 = vmatpush2.msra.mxu0 0.0
    %4953 = vmatprep.subr.mxu0 0.0
    %4954 = vmatpush2.msra.mxu0 0.0
    %4955 = vmatprep.subr.mxu0 0.0
    %4956 = vmatpush2.msra.mxu0 0.0
    %4957 = vmatprep.subr.mxu0 0.0
    %4958 = vmatpush2.msra.mxu0 0.0
    %4959 = vmatprep.subr.mxu0 0.0
    %4960 = vmatpush2.msra.mxu0 0.0
    %4961 = vmatprep.subr.mxu0 0.0
    %4962 = vmatpush2.msra.mxu0 0.0
    %4963 = vmatprep.subr.mxu0 0.0
    %4964 = vmatpush2.msra.mxu0 0.0
    %4965 = vmatprep.subr.mxu0 0.0
    %4966 = vmatpush2.msra.mxu0 0.0
    %4967 = vmatprep.subr.mxu0 0.0
    %4968 = vmatpush2.msra.mxu0 0.0
    %4969 = vmatprep.subr.mxu0 0.0
    %4970 = vmatpush2.msra.mxu0 0.0
    %4971 = vmatprep.subr.mxu0 0.0
    %4972 = vmatpush2.msra.mxu0 0.0
    %4973 = vmatprep.subr.mxu0 0.0
    %4974 = vmatpush2.msra.mxu0 0.0
    %4975 = vmatprep.subr.mxu0 0.0
    %4976 = vmatpush2.msra.mxu0 0.0
    %4977 = vmatprep.subr.mxu0 0.0
    %4978 = vmatpush2.msra.mxu0 0.0
    %4979 = vmatprep.subr.mxu0 0.0
    %4980 = vmatpush2.msra.mxu0 0.0
    %4981 = vmatprep.mubr.f32.mxu0 0.0
    %4982 = vmatmul.mubr.f32.gmra.mxu0 %v4843
    %v4983 = vpop.f32.mrf.mxu0
    %v4984 = vadd.f32 0.0, %v4983
    %v4985 = vpop.f32.mrf.mxu0
    %v4986 = vadd.f32 0.0, %v4985
    %4987 = vdwg.mxu0
    %v4989 = vsel %vm284, %v4845, 0
    %4991 = vmatprep.subr.mxu0 0.0
    %4992 = vmatpush1.msra.mxu0 0.0
    %4993 = vmatprep.subr.mxu0 0.0
    %4994 = vmatpush1.msra.mxu0 0.0
    %4995 = vmatprep.subr.mxu0 0.0
    %4996 = vmatpush1.msra.mxu0 0.0
    %4997 = vmatprep.subr.mxu0 0.0
    %4998 = vmatpush1.msra.mxu0 0.0
    %4999 = vmatprep.subr.mxu0 0.0
    %5000 = vmatpush1.msra.mxu0 0.0
    %5001 = vmatprep.subr.mxu0 0.0
    %5002 = vmatpush1.msra.mxu0 0.0
    %5003 = vmatprep.subr.mxu0 0.0
    %5004 = vmatpush1.msra.mxu0 0.0
    %5005 = vmatprep.subr.mxu0 0.0
    %5006 = vmatpush1.msra.mxu0 0.0
    %5007 = vmatprep.subr.mxu0 0.0
    %5008 = vmatpush1.msra.mxu0 0.0
    %5009 = vmatprep.subr.mxu0 0.0
    %5010 = vmatpush1.msra.mxu0 0.0
    %5011 = vmatprep.subr.mxu0 0.0
    %5012 = vmatpush1.msra.mxu0 0.0
    %5013 = vmatprep.subr.mxu0 0.0
    %5014 = vmatpush1.msra.mxu0 0.0
    %5015 = vmatprep.subr.mxu0 0.0
    %5016 = vmatpush1.msra.mxu0 0.0
    %5017 = vmatprep.subr.mxu0 0.0
    %5018 = vmatpush1.msra.mxu0 0.0
    %5019 = vmatprep.subr.mxu0 %v70
    %5020 = vmatpush1.msra.mxu0 %v69
    %5021 = vmatprep.subr.mxu0 %v66
    %5022 = vmatpush1.msra.mxu0 %v65
    %5023 = vmatprep.subr.mxu0 0.0
    %5024 = vmatpush2.msra.mxu0 0.0
    %5025 = vmatprep.subr.mxu0 0.0
    %5026 = vmatpush2.msra.mxu0 0.0
    %5027 = vmatprep.subr.mxu0 0.0
    %5028 = vmatpush2.msra.mxu0 0.0
    %5029 = vmatprep.subr.mxu0 0.0
    %5030 = vmatpush2.msra.mxu0 0.0
    %5031 = vmatprep.subr.mxu0 0.0
    %5032 = vmatpush2.msra.mxu0 0.0
    %5033 = vmatprep.subr.mxu0 0.0
    %5034 = vmatpush2.msra.mxu0 0.0
    %5035 = vmatprep.subr.mxu0 0.0
    %5036 = vmatpush2.msra.mxu0 0.0
    %5037 = vmatprep.subr.mxu0 0.0
    %5038 = vmatpush2.msra.mxu0 0.0
    %5039 = vmatprep.subr.mxu0 0.0
    %5040 = vmatpush2.msra.mxu0 0.0
    %5041 = vmatprep.subr.mxu0 0.0
    %5042 = vmatpush2.msra.mxu0 0.0
    %5043 = vmatprep.subr.mxu0 0.0
    %5044 = vmatpush2.msra.mxu0 0.0
    %5045 = vmatprep.subr.mxu0 0.0
    %5046 = vmatpush2.msra.mxu0 0.0
    %5047 = vmatprep.subr.mxu0 0.0
    %5048 = vmatpush2.msra.mxu0 0.0
    %5049 = vmatprep.subr.mxu0 0.0
    %5050 = vmatpush2.msra.mxu0 0.0
    %5051 = vmatprep.subr.mxu0 0.0
    %5052 = vmatpush2.msra.mxu0 0.0
    %5053 = vmatprep.subr.mxu0 0.0
    %5054 = vmatpush2.msra.mxu0 0.0
    %5055 = vmatprep.mubr.f32.mxu0 0.0
    %5056 = vmatmul.mubr.f32.gmra.mxu0 %v4989
    %v5057 = vpop.f32.mrf.mxu0
    %v5058 = vadd.f32 %v4913, %v5057
    %v5059 = vpop.f32.mrf.mxu0
    %v5060 = vadd.f32 %v4915, %v5059
    %5061 = vdwg.mxu0
    %5062 = vmatprep.subr.mxu0 0.0
    %5063 = vmatpush1.msra.mxu0 0.0
    %5064 = vmatprep.subr.mxu0 0.0
    %5065 = vmatpush1.msra.mxu0 0.0
    %5066 = vmatprep.subr.mxu0 0.0
    %5067 = vmatpush1.msra.mxu0 0.0
    %5068 = vmatprep.subr.mxu0 0.0
    %5069 = vmatpush1.msra.mxu0 0.0
    %5070 = vmatprep.subr.mxu0 0.0
    %5071 = vmatpush1.msra.mxu0 0.0
    %5072 = vmatprep.subr.mxu0 0.0
    %5073 = vmatpush1.msra.mxu0 0.0
    %5074 = vmatprep.subr.mxu0 0.0
    %5075 = vmatpush1.msra.mxu0 0.0
    %5076 = vmatprep.subr.mxu0 0.0
    %5077 = vmatpush1.msra.mxu0 0.0
    %5078 = vmatprep.subr.mxu0 0.0
    %5079 = vmatpush1.msra.mxu0 0.0
    %5080 = vmatprep.subr.mxu0 0.0
    %5081 = vmatpush1.msra.mxu0 0.0
    %5082 = vmatprep.subr.mxu0 0.0
    %5083 = vmatpush1.msra.mxu0 0.0
    %5084 = vmatprep.subr.mxu0 0.0
    %5085 = vmatpush1.msra.mxu0 0.0
    %5086 = vmatprep.subr.mxu0 0.0
    %5087 = vmatpush1.msra.mxu0 0.0
    %5088 = vmatprep.subr.mxu0 0.0
    %5089 = vmatpush1.msra.mxu0 0.0
    %5090 = vmatprep.subr.mxu0 %v72
    %5091 = vmatpush1.msra.mxu0 %v71
    %5092 = vmatprep.subr.mxu0 %v68
    %5093 = vmatpush1.msra.mxu0 %v67
    %5094 = vmatprep.subr.mxu0 0.0
    %5095 = vmatpush2.msra.mxu0 0.0
    %5096 = vmatprep.subr.mxu0 0.0
    %5097 = vmatpush2.msra.mxu0 0.0
    %5098 = vmatprep.subr.mxu0 0.0
    %5099 = vmatpush2.msra.mxu0 0.0
    %5100 = vmatprep.subr.mxu0 0.0
    %5101 = vmatpush2.msra.mxu0 0.0
    %5102 = vmatprep.subr.mxu0 0.0
    %5103 = vmatpush2.msra.mxu0 0.0
    %5104 = vmatprep.subr.mxu0 0.0
    %5105 = vmatpush2.msra.mxu0 0.0
    %5106 = vmatprep.subr.mxu0 0.0
    %5107 = vmatpush2.msra.mxu0 0.0
    %5108 = vmatprep.subr.mxu0 0.0
    %5109 = vmatpush2.msra.mxu0 0.0
    %5110 = vmatprep.subr.mxu0 0.0
    %5111 = vmatpush2.msra.mxu0 0.0
    %5112 = vmatprep.subr.mxu0 0.0
    %5113 = vmatpush2.msra.mxu0 0.0
    %5114 = vmatprep.subr.mxu0 0.0
    %5115 = vmatpush2.msra.mxu0 0.0
    %5116 = vmatprep.subr.mxu0 0.0
    %5117 = vmatpush2.msra.mxu0 0.0
    %5118 = vmatprep.subr.mxu0 0.0
    %5119 = vmatpush2.msra.mxu0 0.0
    %5120 = vmatprep.subr.mxu0 0.0
    %5121 = vmatpush2.msra.mxu0 0.0
    %5122 = vmatprep.subr.mxu0 0.0
    %5123 = vmatpush2.msra.mxu0 0.0
    %5124 = vmatprep.subr.mxu0 0.0
    %5125 = vmatpush2.msra.mxu0 0.0
    %5126 = vmatprep.mubr.f32.mxu0 0.0
    %5127 = vmatmul.mubr.f32.gmra.mxu0 %v4989
    %v5128 = vpop.f32.mrf.mxu0
    %v5129 = vadd.f32 %v4984, %v5128
    %v5130 = vpop.f32.mrf.mxu0
    %v5131 = vadd.f32 %v4986, %v5130
    %5132 = vdwg.mxu0
    %v5133 = vadd.f32 %v5058, %v434
    %v5134 = vadd.f32 %v5060, %v438
    %v5135 = vadd.f32 %v5129, %v442
    %v5136 = vadd.f32 %v5131, %v446
    %v5137 = vmul.f32 %v5133, 0.5
    %v5138 = vtanh.pop %v5137
    %v5139 = vadd.f32 %v5138, 1.0
    %v5140 = vmul.f32 %v5139, 0.5
    %v5141 = vmul.f32 %v5134, 0.5
    %v5142 = vtanh.pop %v5141
    %v5143 = vadd.f32 %v5142, 1.0
    %v5144 = vmul.f32 %v5143, 0.5
    %v5145 = vtanh.pop %v5135
    %v5146 = vmul.f32 %v5136, 0.5
    %v5147 = vtanh.pop %v5146
    %v5148 = vadd.f32 %v5147, 1.0
    %v5149 = vmul.f32 %v5148, 0.5
    %v5150 = vmul.f32 %v5144, %v4842
    %v5151 = vmul.f32 %v5140, %v5145
    %v5152 = vadd.f32 %v5150, %v5151
    %v5153 = vtanh.pop %v5152
    %v5154 = vmul.f32 %v5149, %v5153
    %v5155 = vsel %vm2963, %v5152, %v2647
    %v5156 = vsel %vm2963, %v5154, %v2649
    %5157 = vst [vmem:[#allocation9] sm:$0xff] %v5156
    %5158 = vst [vmem:[#allocation2] sm:$0xff] %v5155
    // Predicated region
    $region34: #{tpu_custom_call.1} parent=1 // pred_check
      _
    $region35: #{tpu_custom_call.1} parent=1 // pred_check_branch
      %5160 = sbr.rel (0) target = $region37
    $region36: #{tpu_custom_call.1} parent=1 // pred_region
      %s5162 = ssub.s32 128, 128
      %5163 = vsyncadd [#allocation5], %s5162
      %s5165 = sshll.u32 [#allocation9], 4
      %s5166 = int_to_ptr.vmem [resolvable:$true] %s5165
      %5168 = dma.vmem_to_hbm [thread:$0]  %s5166, 128, %s4, [#allocation5]
    $region37: #{tpu_custom_call.1} parent=1 // pred_fallthru
      _
    // Predicated region
    $region38: #{tpu_custom_call.1} parent=1 // pred_check
      _
    $region39: #{tpu_custom_call.1} parent=1 // pred_check_branch
      %5170 = sbr.rel (0) target = $region41
    $region40: #{tpu_custom_call.1} parent=1 // pred_region
      %5171 = dma.done [#allocation5], 128
    $region41: #{tpu_custom_call.1} parent=1 // pred_fallthru
      _
    %5172 = vsyncpa [#allocation4], 1
    %5173 = vsyncpa [#allocation7], 1
    %5174 = vsyncpa [#allocation5], 1

</llo_original>
